<compile_context>
chip_gen: v5e
topology: v5e:2x2
jax: 0.10.0
libtpu: 0.0.40
codegen_flags: <defaults>
</compile_context>

<pallas_src>
import math
from functools import partial

import jax
import jax.numpy as jnp
from jax.experimental import pallas as pl
from jax.experimental.pallas import tpu as pltpu  # noqa: F401

# ---------------- config (small synthetic shapes) ----------------
B = 2               # batch
L = 8               # pad_size (sequence length)
D = 32              # dim_model (per channel)
NUM_HEADS = 4       # s_num_head
FF = 64             # s_forward_hidden  -> mlp_ratio = FF / D = 2
N_ENC = 1           # s_num_encoder
N_ENC_MULTI = 1     # s_num_encoder_multi
FC_HID = 32         # s_fc_hidden
NUM_CLASSES = 4     # num_classes

D3 = 3 * D                       # fused single-stage width == multi-stage width (96)
FF3 = 3 * FF                     # fused single-stage FFN width == FF_MULTI (192)
assert FF3 == int(D3 * (FF / D))

W_SLAB = 3 * D3                  # lane width of both parameter slabs (288)
LAYER_W_ROWS = 3 * D3 + FF3      # bf16 rows per encoder layer: qkv(96)+proj(96)+fc1(96)+fc2(192)
LAYER_P_ROWS = 8                 # f32 rows per layer: ln1_w/b, qkv_b, proj_b, ln2_w/b, fc1_b, fc2_b
N_LAYERS = N_ENC + N_ENC_MULTI


# ---------------- in-kernel helpers (pure jnp on VMEM-resident values) ----------------
def _layernorm(x, w, b, eps=1e-5):
    mu = jnp.mean(x, axis=-1, keepdims=True)
    var = jnp.mean(jnp.square(x - mu), axis=-1, keepdims=True)
    return (x - mu) * jax.lax.rsqrt(var + eps) * w + b


def _grouped_layernorm(x, w, b, group, eps=1e-5):
    """LayerNorm applied independently to each `group`-lane block (the per-branch LN of the
    fused single-channel stage).  Pure lane-mask arithmetic: no reshapes / transposes."""
    d = x.shape[-1]
    if group == d:
        return _layernorm(x, w, b, eps)
    lane = jax.lax.broadcasted_iota(jnp.int32, (1, d), 1)
    mu = jnp.zeros_like(x)
    inv = jnp.zeros_like(x)
    for g in range(d // group):                       # 3 lane-masked reductions (VPU/XLU only)
        m = ((lane >= g * group) & (lane < (g + 1) * group)).astype(x.dtype)
        mu_g = jnp.sum(x * m, axis=-1, keepdims=True) * (1.0 / group)
        var_g = jnp.sum(jnp.square(x - mu_g) * m, axis=-1, keepdims=True) * (1.0 / group)
        mu = mu + mu_g * m
        inv = inv + jax.lax.rsqrt(var_g + eps) * m
    return (x - mu) * inv * w + b


def _mm(a, w):
    """MXU matmul: bf16 operands, f32 accumulation (v5e keeps all elementwise math in f32)."""
    return jnp.dot(a.astype(jnp.bfloat16), w.astype(jnp.bfloat16),
                   preferred_element_type=jnp.float32)


def _encoder_layer(x2d, bsz, seq, n_heads, ln_group,
                   ln1_w, ln1_b, qkv_w, qkv_b, proj_w, proj_b,
                   ln2_w, ln2_b, fc1_w, fc1_b, fc2_w, fc2_b):
    """Pre-norm MHSA + GELU MLP on a (bsz*seq, d) lane-dense activation slab."""
    n, d = x2d.shape
    hd = d // n_heads
    scale = 1.0 / math.sqrt(hd)

    # --- multi-head self-attention (pre-norm) ---
    h = _grouped_layernorm(x2d, ln1_w, ln1_b, ln_group)
    qkv = _mm(h, qkv_w) + qkv_b                               # one K=d, N=3d matmul
    q = qkv[:, :d].reshape(bsz, seq, d).astype(jnp.bfloat16)
    k = qkv[:, d:2 * d].reshape(bsz, seq, d).astype(jnp.bfloat16)
    v = qkv[:, 2 * d:].reshape(bsz, seq, d).astype(jnp.bfloat16)

    head_out = []
    for hi in range(n_heads):                                 # static unroll over (branch, head)
        sl = slice(hi * hd, (hi + 1) * hd)
        s = jnp.einsum('bqc,bkc->bqk', q[:, :, sl], k[:, :, sl],
                       preferred_element_type=jnp.float32) * scale
        s = s - jnp.max(s, axis=-1, keepdims=True)
        p = jnp.exp(s)
        p = p / jnp.sum(p, axis=-1, keepdims=True)
        head_out.append(jnp.einsum('bqk,bkc->bqc', p.astype(jnp.bfloat16), v[:, :, sl],
                                   preferred_element_type=jnp.float32))
    attn = jnp.concatenate(head_out, axis=-1).reshape(n, d)
    x2d = x2d + _mm(attn, proj_w) + proj_b                    # single output projection

    # --- feed-forward (pre-norm) ---
    h = _grouped_layernorm(x2d, ln2_w, ln2_b, ln_group)
    h = _mm(h, fc1_w) + fc1_b
    # TODO(synk): PyTorch nn.GELU defaults to exact erf; tanh approximation used here (erf has no
    # guaranteed Mosaic lowering).
    h = jax.nn.gelu(h)
    return x2d + _mm(h, fc2_w) + fc2_b


def _layer_params(w_ref, p_ref, layer_idx, seq):
    """Static (free) slab slices for one encoder layer."""
    r0 = layer_idx * LAYER_W_ROWS
    qkv_w = w_ref[r0:r0 + D3, 0:3 * D3]
    proj_w = w_ref[r0 + D3:r0 + 2 * D3, 0:D3]
    fc1_w = w_ref[r0 + 2 * D3:r0 + 3 * D3, 0:FF3]
    fc2_w = w_ref[r0 + 3 * D3:r0 + 3 * D3 + FF3, 0:D3]
    p0 = 2 * seq + 2 + layer_idx * LAYER_P_ROWS
    ln1_w = p_ref[p0:p0 + 1, 0:D3]
    ln1_b = p_ref[p0 + 1:p0 + 2, 0:D3]
    qkv_b = p_ref[p0 + 2:p0 + 3, 0:3 * D3]
    proj_b = p_ref[p0 + 3:p0 + 4, 0:D3]
    ln2_w = p_ref[p0 + 4:p0 + 5, 0:D3]
    ln2_b = p_ref[p0 + 5:p0 + 6, 0:D3]
    fc1_b = p_ref[p0 + 6:p0 + 7, 0:FF3]
    fc2_b = p_ref[p0 + 7:p0 + 8, 0:D3]
    return (ln1_w, ln1_b, qkv_w, qkv_b, proj_w, proj_b,
            ln2_w, ln2_b, fc1_w, fc1_b, fc2_w, fc2_b)


# ---------------- fused whole-forward kernel ----------------
def fused_forward_kernel(x_ref, w_ref, p_ref, o_ref, *,
                         bsz, seq, n_enc, n_enc_multi, num_heads, fc_hid, n_cls):
    n = bsz * seq
    x = x_ref[...]                                   # (B*L, 3D) f32, pre-laid-out in the wrapper

    pe_s = p_ref[0:seq, 0:D3]                        # per-branch PE tiled to 96 lanes host-side
    pe_m = p_ref[seq:2 * seq, 0:D3]
    ln_w = p_ref[2 * seq:2 * seq + 1, 0:D3]          # shared LayerNormSuper — the PyTorch source
    ln_b = p_ref[2 * seq + 1:2 * seq + 2, 0:D3]      # reuses the SAME module for both norms.

    # --- three single-channel encoder branches, fused via block-diagonal weights ---
    xs = (x.reshape(bsz, seq, D3) + pe_s[None]).reshape(n, D3)          # position_single
    for li in range(n_enc):
        xs = _encoder_layer(xs, bsz, seq, 3 * num_heads, D,
                            *_layer_params(w_ref, p_ref, li, seq))

    # xs is already the lane layout of torch.cat([x1, x2, x3], dim=2)  (== f1; dropout = identity)
    residual = _layernorm(xs, ln_w, ln_b)
    xm = (residual.reshape(bsz, seq, D3) + pe_m[None]).reshape(n, D3)   # position_multi
    for li in range(n_enc_multi):
        xm = _encoder_layer(xm, bsz, seq, num_heads, D3,
                            *_layer_params(w_ref, p_ref, n_enc + li, seq))
    xo = _layernorm(xm + residual, ln_w, ln_b)                          # (B*L, 3D)

    # --- classifier head: one M=B*L, K=3D, N=L*FC_HID matmul + VPU block-select ---
    h0 = (n_enc + n_enc_multi) * LAYER_W_ROWS
    w1 = w_ref[h0:h0 + D3, 0:seq * fc_hid]           # (3D, L*FC_HID): column block l = position l
    w2 = w_ref[h0 + D3:h0 + D3 + fc_hid, 0:n_cls]    # (FC_HID, n_cls)
    p0 = 2 * seq + 2 + (n_enc + n_enc_multi) * LAYER_P_ROWS
    b1 = p_ref[p0:p0 + 1, 0:fc_hid]
    b2 = p_ref[p0 + 1:p0 + 2, 0:n_cls]

    big = _mm(xo, w1).reshape(bsz, seq, seq * fc_hid)        # (B, L, L*FC_HID)
    h = b1
    for li in range(seq):                                    # block-select runs on the VPU
        h = h + big[:, li, li * fc_hid:(li + 1) * fc_hid]
    h = jnp.maximum(h, 0.0)                                  # fc1 + ReLU (dropout = identity)
    o_ref[...] = _mm(h, w2) + b2                             # fc2


# ---------------- single-launch wrapper ----------------
@jax.jit
def transformer_forward(x, packed):
    wslab, pslab = packed
    bsz = x.shape[0]
    # pre-lay-out input: (B, 3, L, D) -> (B*L, 3D) with channel ch in lanes [ch*D, (ch+1)*D)
    x2d = jnp.transpose(x, (0, 2, 1, 3)).reshape(bsz * L, D3)
    kernel = partial(fused_forward_kernel,
                     bsz=bsz, seq=L, n_enc=N_ENC, n_enc_multi=N_ENC_MULTI,
                     num_heads=NUM_HEADS, fc_hid=FC_HID, n_cls=NUM_CLASSES)
    # No grid: one fused step; every operand is a whole-array VMEM block (total < 1 MiB).
    return pl.pallas_call(
        kernel,
        out_shape=jax.ShapeDtypeStruct((bsz, NUM_CLASSES), jnp.float32),
    )(x2d, wslab, pslab)


# ---------------- parameter / buffer construction ----------------
def positional_encoding(max_len, d_model):
    position = jnp.arange(max_len, dtype=jnp.float32)[:, None]
    div_term = jnp.exp(jnp.arange(0, d_model, 2, dtype=jnp.float32)
                       * (-math.log(10000.0) / d_model))
    ang = position * div_term
    pe = jnp.zeros((max_len, d_model), jnp.float32)
    pe = pe.at[:, 0::2].set(jnp.sin(ang))
    pe = pe.at[:, 1::2].set(jnp.cos(ang))
    return pe


def init_linear(key, fan_in, fan_out):
    w = jax.random.normal(key, (fan_in, fan_out), jnp.float32) * 0.02
    b = jnp.zeros((1, fan_out), jnp.float32)
    return w, b


def init_encoder_layer(key, d, hid):
    k0, k1, k2, k3 = jax.random.split(key, 4)
    qkv_w, qkv_b = init_linear(k0, d, 3 * d)
    proj_w, proj_b = init_linear(k1, d, d)
    fc1_w, fc1_b = init_linear(k2, d, hid)
    fc2_w, fc2_b = init_linear(k3, hid, d)
    return dict(ln1_w=jnp.ones((1, d)), ln1_b=jnp.zeros((1, d)),
                qkv_w=qkv_w, qkv_b=qkv_b, proj_w=proj_w, proj_b=proj_b,
                ln2_w=jnp.ones((1, d)), ln2_b=jnp.zeros((1, d)),
                fc1_w=fc1_w, fc1_b=fc1_b, fc2_w=fc2_w, fc2_b=fc2_b)


def init_params(key):
    n_keys = 3 * N_ENC + N_ENC_MULTI + 2
    keys = jax.random.split(key, n_keys)
    ki = iter(range(n_keys))
    params = {
        "pe_single": positional_encoding(30, D),
        "pe_multi": positional_encoding(30, D3),
        "ln_w": jnp.ones((1, D3)),               # shared LayerNormSuper(3*D)
        "ln_b": jnp.zeros((1, D3)),
        "enc1": [init_encoder_layer(keys[next(ki)], D, FF) for _ in range(N_ENC)],
        "enc2": [init_encoder_layer(keys[next(ki)], D, FF) for _ in range(N_ENC)],
        "enc3": [init_encoder_layer(keys[next(ki)], D, FF) for _ in range(N_ENC)],
        "enc_multi": [init_encoder_layer(keys[next(ki)], D3, FF3) for _ in range(N_ENC_MULTI)],
    }
    params["fc1_w"], params["fc1_b"] = init_linear(keys[next(ki)], L * D3, FC_HID)
    params["fc2_w"], params["fc2_b"] = init_linear(keys[next(ki)], FC_HID, NUM_CLASSES)
    return params


def _pad_cols(a, width):
    return jnp.pad(a, ((0, 0), (0, width - a.shape[1])))


def _fuse_single_layer(branch_layers):
    """Fold the 3 per-channel encoder layers of one depth into block-diagonal weights that act on
    the lane-concatenated (B*L, 3D) activation slab.  qkv output lanes are [q_all | k_all | v_all]
    with each *_all ordered [branch0 | branch1 | branch2]."""
    qkv_w = jnp.zeros((D3, 3 * D3), jnp.float32)
    qkv_b = jnp.zeros((1, 3 * D3), jnp.float32)
    proj_w = jnp.zeros((D3, D3), jnp.float32)
    fc1_w = jnp.zeros((D3, FF3), jnp.float32)
    fc2_w = jnp.zeros((FF3, D3), jnp.float32)
    cat = lambda key: jnp.concatenate([lp[key] for lp in branch_layers], axis=-1)
    for br, lp in enumerate(branch_layers):
        for part in range(3):                      # q, k, v
            qkv_w = qkv_w.at[br * D:(br + 1) * D,
                             part * D3 + br * D: part * D3 + (br + 1) * D].set(
                lp["qkv_w"][:, part * D:(part + 1) * D])
            qkv_b = qkv_b.at[:, part * D3 + br * D: part * D3 + (br + 1) * D].set(
                lp["qkv_b"][:, part * D:(part + 1) * D])
        proj_w = proj_w.at[br * D:(br + 1) * D, br * D:(br + 1) * D].set(lp["proj_w"])
        fc1_w = fc1_w.at[br * D:(br + 1) * D, br * FF:(br + 1) * FF].set(lp["fc1_w"])
        fc2_w = fc2_w.at[br * FF:(br + 1) * FF, br * D:(br + 1) * D].set(lp["fc2_w"])
    return dict(ln1_w=cat("ln1_w"), ln1_b=cat("ln1_b"),
                qkv_w=qkv_w, qkv_b=qkv_b, proj_w=proj_w, proj_b=cat("proj_b"),
                ln2_w=cat("ln2_w"), ln2_b=cat("ln2_b"),
                fc1_w=fc1_w, fc1_b=cat("fc1_b"), fc2_w=fc2_w, fc2_b=cat("fc2_b"))


def pack_params(params):
    """Pack everything into TWO slabs: one bf16 matmul-weight slab and one f32 LN/bias/PE slab."""
    wblocks, prows = [], []
    pe_s = params["pe_single"][:L]
    prows.append(_pad_cols(jnp.concatenate([pe_s, pe_s, pe_s], axis=-1), W_SLAB))  # rows 0:L
    prows.append(_pad_cols(params["pe_multi"][:L], W_SLAB))                        # rows L:2L
    prows.append(_pad_cols(params["ln_w"], W_SLAB))                                # row 2L
    prows.append(_pad_cols(params["ln_b"], W_SLAB))                                # row 2L+1

    fused_single = [_fuse_single_layer([params["enc1"][li], params["enc2"][li],
                                        params["enc3"][li]]) for li in range(N_ENC)]
    for lp in fused_single + params["enc_multi"]:
        for key in ("qkv_w", "proj_w", "fc1_w", "fc2_w"):
            wblocks.append(_pad_cols(lp[key], W_SLAB))
        for key in ("ln1_w", "ln1_b", "qkv_b", "proj_b", "ln2_w", "ln2_b", "fc1_b", "fc2_b"):
            prows.append(_pad_cols(lp[key], W_SLAB))

    # classifier fc1 re-laid-out so that column block l holds the weights of position l
    # (x.view(B, -1) in PyTorch flattens (B, L, 3D) batch-first, row-major in (l, c)).
    w1 = params["fc1_w"].reshape(L, D3, FC_HID).transpose(1, 0, 2).reshape(D3, L * FC_HID)
    wblocks.append(_pad_cols(w1, W_SLAB))
    wblocks.append(_pad_cols(params["fc2_w"], W_SLAB))
    prows.append(_pad_cols(params["fc1_b"], W_SLAB))
    prows.append(_pad_cols(params["fc2_b"], W_SLAB))

    wslab = jnp.concatenate(wblocks, axis=0).astype(jnp.bfloat16)   # (N_LAYERS*480+128, 288)
    pslab = jnp.concatenate(prows, axis=0).astype(jnp.float32)      # (2L+2+8*N_LAYERS+2, 288)
    assert wslab.shape == (N_LAYERS * LAYER_W_ROWS + D3 + FC_HID, W_SLAB)
    assert pslab.shape == (2 * L + 2 + LAYER_P_ROWS * N_LAYERS + 2, W_SLAB)
    return (wslab, pslab)


# ---------------- main ----------------
if __name__ == "__main__":
    key = jax.random.PRNGKey(0)
    k_x, k_p = jax.random.split(key)
    x = jax.random.normal(k_x, (B, 3, L, D), jnp.float32)
    params = init_params(k_p)
    packed = pack_params(params)

    out = transformer_forward(x, packed)
    out = jax.block_until_ready(out)
    assert out.shape == (B, NUM_CLASSES), out.shape
    assert jnp.all(jnp.isfinite(out))
    print("KERNEL_OK")
</pallas_src>

<mosaic_0001>
module attributes {stable_mosaic.version = 11 : i64} {
  func.func @fused_forward_kernel(%arg0: memref<16x96xf32, #tpu.memory_space<vmem>>, %arg1: memref<1088x288xbf16, #tpu.memory_space<vmem>>, %arg2: memref<36x288xf32, #tpu.memory_space<vmem>>, %arg3: memref<2x4xf32, #tpu.memory_space<vmem>>) attributes {dimension_semantics = [], scalar_prefetch = 0 : i64, scratch_operands = 0 : i64, tpu.core_type = #tpu.core_type<tc>} {
    %c0 = arith.constant 0 : index
    %c0_0 = arith.constant 0 : index
    %0 = vector.load %arg0[%c0, %c0_0] : memref<16x96xf32, #tpu.memory_space<vmem>>, vector<16x96xf32>
    %c0_1 = arith.constant 0 : index
    %c0_2 = arith.constant 0 : index
    %1 = vector.load %arg2[%c0_1, %c0_2] : memref<36x288xf32, #tpu.memory_space<vmem>>, vector<8x96xf32>
    %c8 = arith.constant 8 : index
    %c0_3 = arith.constant 0 : index
    %2 = vector.load %arg2[%c8, %c0_3] : memref<36x288xf32, #tpu.memory_space<vmem>>, vector<8x96xf32>
    %c16 = arith.constant 16 : index
    %c0_4 = arith.constant 0 : index
    %3 = vector.load %arg2[%c16, %c0_4] : memref<36x288xf32, #tpu.memory_space<vmem>>, vector<1x96xf32>
    %c17 = arith.constant 17 : index
    %c0_5 = arith.constant 0 : index
    %4 = vector.load %arg2[%c17, %c0_5] : memref<36x288xf32, #tpu.memory_space<vmem>>, vector<1x96xf32>
    %5 = vector.shape_cast %0 : vector<16x96xf32> to vector<2x8x96xf32>
    %6 = vector.shape_cast %1 : vector<8x96xf32> to vector<1x8x96xf32>
    %7 = vector.broadcast %6 : vector<1x8x96xf32> to vector<2x8x96xf32>
    %8 = arith.addf %5, %7 : vector<2x8x96xf32>
    %9 = vector.shape_cast %8 : vector<2x8x96xf32> to vector<16x96xf32>
    %c0_6 = arith.constant 0 : index
    %c0_7 = arith.constant 0 : index
    %10 = vector.load %arg1[%c0_6, %c0_7] : memref<1088x288xbf16, #tpu.memory_space<vmem>>, vector<96x288xbf16>
    %c96 = arith.constant 96 : index
    %c0_8 = arith.constant 0 : index
    %11 = vector.load %arg1[%c96, %c0_8] : memref<1088x288xbf16, #tpu.memory_space<vmem>>, vector<96x96xbf16>
    %c192 = arith.constant 192 : index
    %c0_9 = arith.constant 0 : index
    %12 = vector.load %arg1[%c192, %c0_9] : memref<1088x288xbf16, #tpu.memory_space<vmem>>, vector<96x192xbf16>
    %c288 = arith.constant 288 : index
    %c0_10 = arith.constant 0 : index
    %13 = vector.load %arg1[%c288, %c0_10] : memref<1088x288xbf16, #tpu.memory_space<vmem>>, vector<192x96xbf16>
    %c18 = arith.constant 18 : index
    %c0_11 = arith.constant 0 : index
    %14 = vector.load %arg2[%c18, %c0_11] : memref<36x288xf32, #tpu.memory_space<vmem>>, vector<1x96xf32>
    %c19 = arith.constant 19 : index
    %c0_12 = arith.constant 0 : index
    %15 = vector.load %arg2[%c19, %c0_12] : memref<36x288xf32, #tpu.memory_space<vmem>>, vector<1x96xf32>
    %c20 = arith.constant 20 : index
    %c0_13 = arith.constant 0 : index
    %16 = vector.load %arg2[%c20, %c0_13] : memref<36x288xf32, #tpu.memory_space<vmem>>, vector<1x288xf32>
    %c21 = arith.constant 21 : index
    %c0_14 = arith.constant 0 : index
    %17 = vector.load %arg2[%c21, %c0_14] : memref<36x288xf32, #tpu.memory_space<vmem>>, vector<1x96xf32>
    %c22 = arith.constant 22 : index
    %c0_15 = arith.constant 0 : index
    %18 = vector.load %arg2[%c22, %c0_15] : memref<36x288xf32, #tpu.memory_space<vmem>>, vector<1x96xf32>
    %c23 = arith.constant 23 : index
    %c0_16 = arith.constant 0 : index
    %19 = vector.load %arg2[%c23, %c0_16] : memref<36x288xf32, #tpu.memory_space<vmem>>, vector<1x96xf32>
    %c24 = arith.constant 24 : index
    %c0_17 = arith.constant 0 : index
    %20 = vector.load %arg2[%c24, %c0_17] : memref<36x288xf32, #tpu.memory_space<vmem>>, vector<1x192xf32>
    %c25 = arith.constant 25 : index
    %c0_18 = arith.constant 0 : index
    %21 = vector.load %arg2[%c25, %c0_18] : memref<36x288xf32, #tpu.memory_space<vmem>>, vector<1x96xf32>
    %22 = tpu.iota {dimensions = array<i32: 1>} : vector<1x96xi32>
    %cst = arith.constant 0.000000e+00 : f32
    %23 = vector.broadcast %cst : f32 to vector<16x96xf32>
    %cst_19 = arith.constant 0.000000e+00 : f32
    %24 = vector.broadcast %cst_19 : f32 to vector<16x96xf32>
    %c0_i32 = arith.constant 0 : i32
    %25 = vector.broadcast %c0_i32 : i32 to vector<1x96xi32>
    %26 = arith.cmpi sge, %22, %25 : vector<1x96xi32>
    %c32_i32 = arith.constant 32 : i32
    %27 = vector.broadcast %c32_i32 : i32 to vector<1x96xi32>
    %28 = arith.cmpi slt, %22, %27 : vector<1x96xi32>
    %29 = arith.andi %26, %28 : vector<1x96xi1>
    %30 = arith.extui %29 : vector<1x96xi1> to vector<1x96xi32>
    %31 = arith.sitofp %30 : vector<1x96xi32> to vector<1x96xf32>
    %32 = vector.broadcast %31 : vector<1x96xf32> to vector<16x96xf32>
    %33 = arith.mulf %9, %32 : vector<16x96xf32>
    %cst_20 = arith.constant dense<0.000000e+00> : vector<16xf32>
    %34 = vector.multi_reduction <add>, %33, %cst_20 [1] : vector<16x96xf32> to vector<16xf32>
    %35 = vector.shape_cast %34 : vector<16xf32> to vector<16x1xf32>
    %cst_21 = arith.constant 3.125000e-02 : f32
    %36 = vector.broadcast %cst_21 : f32 to vector<16x1xf32>
    %37 = arith.mulf %35, %36 : vector<16x1xf32>
    %38 = vector.broadcast %37 : vector<16x1xf32> to vector<16x96xf32>
    %39 = arith.subf %9, %38 : vector<16x96xf32>
    %40 = arith.mulf %39, %39 : vector<16x96xf32>
    %41 = vector.broadcast %31 : vector<1x96xf32> to vector<16x96xf32>
    %42 = arith.mulf %40, %41 : vector<16x96xf32>
    %cst_22 = arith.constant dense<0.000000e+00> : vector<16xf32>
    %43 = vector.multi_reduction <add>, %42, %cst_22 [1] : vector<16x96xf32> to vector<16xf32>
    %44 = vector.shape_cast %43 : vector<16xf32> to vector<16x1xf32>
    %cst_23 = arith.constant 3.125000e-02 : f32
    %45 = vector.broadcast %cst_23 : f32 to vector<16x1xf32>
    %46 = arith.mulf %44, %45 : vector<16x1xf32>
    %47 = vector.broadcast %37 : vector<16x1xf32> to vector<16x96xf32>
    %48 = vector.broadcast %31 : vector<1x96xf32> to vector<16x96xf32>
    %49 = arith.mulf %47, %48 : vector<16x96xf32>
    %50 = arith.addf %23, %49 : vector<16x96xf32>
    %cst_24 = arith.constant 9.99999974E-6 : f32
    %51 = vector.broadcast %cst_24 : f32 to vector<16x1xf32>
    %52 = arith.addf %46, %51 : vector<16x1xf32>
    %53 = math.rsqrt %52 : vector<16x1xf32>
    %54 = vector.broadcast %53 : vector<16x1xf32> to vector<16x96xf32>
    %55 = vector.broadcast %31 : vector<1x96xf32> to vector<16x96xf32>
    %56 = arith.mulf %54, %55 : vector<16x96xf32>
    %57 = arith.addf %24, %56 : vector<16x96xf32>
    %c32_i32_25 = arith.constant 32 : i32
    %58 = vector.broadcast %c32_i32_25 : i32 to vector<1x96xi32>
    %59 = arith.cmpi sge, %22, %58 : vector<1x96xi32>
    %c64_i32 = arith.constant 64 : i32
    %60 = vector.broadcast %c64_i32 : i32 to vector<1x96xi32>
    %61 = arith.cmpi slt, %22, %60 : vector<1x96xi32>
    %62 = arith.andi %59, %61 : vector<1x96xi1>
    %63 = arith.extui %62 : vector<1x96xi1> to vector<1x96xi32>
    %64 = arith.sitofp %63 : vector<1x96xi32> to vector<1x96xf32>
    %65 = vector.broadcast %64 : vector<1x96xf32> to vector<16x96xf32>
    %66 = arith.mulf %9, %65 : vector<16x96xf32>
    %cst_26 = arith.constant dense<0.000000e+00> : vector<16xf32>
    %67 = vector.multi_reduction <add>, %66, %cst_26 [1] : vector<16x96xf32> to vector<16xf32>
    %68 = vector.shape_cast %67 : vector<16xf32> to vector<16x1xf32>
    %cst_27 = arith.constant 3.125000e-02 : f32
    %69 = vector.broadcast %cst_27 : f32 to vector<16x1xf32>
    %70 = arith.mulf %68, %69 : vector<16x1xf32>
    %71 = vector.broadcast %70 : vector<16x1xf32> to vector<16x96xf32>
    %72 = arith.subf %9, %71 : vector<16x96xf32>
    %73 = arith.mulf %72, %72 : vector<16x96xf32>
    %74 = vector.broadcast %64 : vector<1x96xf32> to vector<16x96xf32>
    %75 = arith.mulf %73, %74 : vector<16x96xf32>
    %cst_28 = arith.constant dense<0.000000e+00> : vector<16xf32>
    %76 = vector.multi_reduction <add>, %75, %cst_28 [1] : vector<16x96xf32> to vector<16xf32>
    %77 = vector.shape_cast %76 : vector<16xf32> to vector<16x1xf32>
    %cst_29 = arith.constant 3.125000e-02 : f32
    %78 = vector.broadcast %cst_29 : f32 to vector<16x1xf32>
    %79 = arith.mulf %77, %78 : vector<16x1xf32>
    %80 = vector.broadcast %70 : vector<16x1xf32> to vector<16x96xf32>
    %81 = vector.broadcast %64 : vector<1x96xf32> to vector<16x96xf32>
    %82 = arith.mulf %80, %81 : vector<16x96xf32>
    %83 = arith.addf %50, %82 : vector<16x96xf32>
    %cst_30 = arith.constant 9.99999974E-6 : f32
    %84 = vector.broadcast %cst_30 : f32 to vector<16x1xf32>
    %85 = arith.addf %79, %84 : vector<16x1xf32>
    %86 = math.rsqrt %85 : vector<16x1xf32>
    %87 = vector.broadcast %86 : vector<16x1xf32> to vector<16x96xf32>
    %88 = vector.broadcast %64 : vector<1x96xf32> to vector<16x96xf32>
    %89 = arith.mulf %87, %88 : vector<16x96xf32>
    %90 = arith.addf %57, %89 : vector<16x96xf32>
    %c64_i32_31 = arith.constant 64 : i32
    %91 = vector.broadcast %c64_i32_31 : i32 to vector<1x96xi32>
    %92 = arith.cmpi sge, %22, %91 : vector<1x96xi32>
    %c96_i32 = arith.constant 96 : i32
    %93 = vector.broadcast %c96_i32 : i32 to vector<1x96xi32>
    %94 = arith.cmpi slt, %22, %93 : vector<1x96xi32>
    %95 = arith.andi %92, %94 : vector<1x96xi1>
    %96 = arith.extui %95 : vector<1x96xi1> to vector<1x96xi32>
    %97 = arith.sitofp %96 : vector<1x96xi32> to vector<1x96xf32>
    %98 = vector.broadcast %97 : vector<1x96xf32> to vector<16x96xf32>
    %99 = arith.mulf %9, %98 : vector<16x96xf32>
    %cst_32 = arith.constant dense<0.000000e+00> : vector<16xf32>
    %100 = vector.multi_reduction <add>, %99, %cst_32 [1] : vector<16x96xf32> to vector<16xf32>
    %101 = vector.shape_cast %100 : vector<16xf32> to vector<16x1xf32>
    %cst_33 = arith.constant 3.125000e-02 : f32
    %102 = vector.broadcast %cst_33 : f32 to vector<16x1xf32>
    %103 = arith.mulf %101, %102 : vector<16x1xf32>
    %104 = vector.broadcast %103 : vector<16x1xf32> to vector<16x96xf32>
    %105 = arith.subf %9, %104 : vector<16x96xf32>
    %106 = arith.mulf %105, %105 : vector<16x96xf32>
    %107 = vector.broadcast %97 : vector<1x96xf32> to vector<16x96xf32>
    %108 = arith.mulf %106, %107 : vector<16x96xf32>
    %cst_34 = arith.constant dense<0.000000e+00> : vector<16xf32>
    %109 = vector.multi_reduction <add>, %108, %cst_34 [1] : vector<16x96xf32> to vector<16xf32>
    %110 = vector.shape_cast %109 : vector<16xf32> to vector<16x1xf32>
    %cst_35 = arith.constant 3.125000e-02 : f32
    %111 = vector.broadcast %cst_35 : f32 to vector<16x1xf32>
    %112 = arith.mulf %110, %111 : vector<16x1xf32>
    %113 = vector.broadcast %103 : vector<16x1xf32> to vector<16x96xf32>
    %114 = vector.broadcast %97 : vector<1x96xf32> to vector<16x96xf32>
    %115 = arith.mulf %113, %114 : vector<16x96xf32>
    %116 = arith.addf %83, %115 : vector<16x96xf32>
    %cst_36 = arith.constant 9.99999974E-6 : f32
    %117 = vector.broadcast %cst_36 : f32 to vector<16x1xf32>
    %118 = arith.addf %112, %117 : vector<16x1xf32>
    %119 = math.rsqrt %118 : vector<16x1xf32>
    %120 = vector.broadcast %119 : vector<16x1xf32> to vector<16x96xf32>
    %121 = vector.broadcast %97 : vector<1x96xf32> to vector<16x96xf32>
    %122 = arith.mulf %120, %121 : vector<16x96xf32>
    %123 = arith.addf %90, %122 : vector<16x96xf32>
    %124 = arith.subf %9, %116 : vector<16x96xf32>
    %125 = arith.mulf %124, %123 : vector<16x96xf32>
    %126 = vector.broadcast %14 : vector<1x96xf32> to vector<16x96xf32>
    %127 = arith.mulf %125, %126 : vector<16x96xf32>
    %128 = vector.broadcast %15 : vector<1x96xf32> to vector<16x96xf32>
    %129 = arith.addf %127, %128 : vector<16x96xf32>
    %130 = arith.truncf %129 : vector<16x96xf32> to vector<16x96xbf16>
    %cst_37 = arith.constant dense<0.000000e+00> : vector<16x288xf32>
    %131 = tpu.matmul %130, %10, %cst_37 {dimension_numbers = #tpu.dot_dimension_numbers<[1], [0], [0], [1], [0, 0, 1, 1], [], []>} : vector<16x96xbf16>, vector<96x288xbf16>, vector<16x288xf32> -> vector<16x288xf32>
    %132 = vector.broadcast %16 : vector<1x288xf32> to vector<16x288xf32>
    %133 = arith.addf %131, %132 : vector<16x288xf32>
    %134 = vector.extract_strided_slice %133 {offsets = [0, 0], sizes = [16, 96], strides = [1, 1]} : vector<16x288xf32> to vector<16x96xf32>
    %135 = vector.shape_cast %134 : vector<16x96xf32> to vector<2x8x96xf32>
    %136 = arith.truncf %135 : vector<2x8x96xf32> to vector<2x8x96xbf16>
    %137 = vector.extract_strided_slice %133 {offsets = [0, 96], sizes = [16, 96], strides = [1, 1]} : vector<16x288xf32> to vector<16x96xf32>
    %138 = vector.shape_cast %137 : vector<16x96xf32> to vector<2x8x96xf32>
    %139 = arith.truncf %138 : vector<2x8x96xf32> to vector<2x8x96xbf16>
    %140 = vector.extract_strided_slice %133 {offsets = [0, 192], sizes = [16, 96], strides = [1, 1]} : vector<16x288xf32> to vector<16x96xf32>
    %141 = vector.shape_cast %140 : vector<16x96xf32> to vector<2x8x96xf32>
    %142 = arith.truncf %141 : vector<2x8x96xf32> to vector<2x8x96xbf16>
    %143 = vector.extract_strided_slice %136 {offsets = [0, 0, 0], sizes = [2, 8, 8], strides = [1, 1, 1]} : vector<2x8x96xbf16> to vector<2x8x8xbf16>
    %144 = vector.extract_strided_slice %139 {offsets = [0, 0, 0], sizes = [2, 8, 8], strides = [1, 1, 1]} : vector<2x8x96xbf16> to vector<2x8x8xbf16>
    "tpu.trace_start"() <{level = 10 : i32, message = "bqc,bkc->bqk"}> : () -> ()
    %cst_38 = arith.constant dense<0.000000e+00> : vector<2x8x8xf32>
    %145 = tpu.matmul %143, %144, %cst_38 {dimension_numbers = #tpu.dot_dimension_numbers<[2], [2], [1], [1], [0, 0, 0, 1, 1, 1], [0], [0]>} : vector<2x8x8xbf16>, vector<2x8x8xbf16>, vector<2x8x8xf32> -> vector<2x8x8xf32>
    "tpu.trace_stop"() : () -> ()
    %cst_39 = arith.constant 0.353553385 : f32
    %146 = vector.broadcast %cst_39 : f32 to vector<2x8x8xf32>
    %147 = arith.mulf %145, %146 : vector<2x8x8xf32>
    %cst_40 = arith.constant dense<0xFF800000> : vector<2x8xf32>
    %148 = vector.multi_reduction <maximumf>, %147, %cst_40 [2] : vector<2x8x8xf32> to vector<2x8xf32>
    %149 = vector.shape_cast %148 : vector<2x8xf32> to vector<2x8x1xf32>
    %150 = vector.broadcast %149 : vector<2x8x1xf32> to vector<2x8x8xf32>
    %151 = arith.subf %147, %150 : vector<2x8x8xf32>
    %152 = math.exp %151 : vector<2x8x8xf32>
    %cst_41 = arith.constant dense<0.000000e+00> : vector<2x8xf32>
    %153 = vector.multi_reduction <add>, %152, %cst_41 [2] : vector<2x8x8xf32> to vector<2x8xf32>
    %154 = vector.shape_cast %153 : vector<2x8xf32> to vector<2x8x1xf32>
    %155 = vector.broadcast %154 : vector<2x8x1xf32> to vector<2x8x8xf32>
    %156 = arith.divf %152, %155 : vector<2x8x8xf32>
    %157 = arith.truncf %156 : vector<2x8x8xf32> to vector<2x8x8xbf16>
    %158 = vector.extract_strided_slice %142 {offsets = [0, 0, 0], sizes = [2, 8, 8], strides = [1, 1, 1]} : vector<2x8x96xbf16> to vector<2x8x8xbf16>
    "tpu.trace_start"() <{level = 10 : i32, message = "bqk,bkc->bqc"}> : () -> ()
    %cst_42 = arith.constant dense<0.000000e+00> : vector<2x8x8xf32>
    %159 = tpu.matmul %157, %158, %cst_42 {dimension_numbers = #tpu.dot_dimension_numbers<[2], [1], [1], [2], [0, 0, 0, 1, 1, 2], [0], [0]>} : vector<2x8x8xbf16>, vector<2x8x8xbf16>, vector<2x8x8xf32> -> vector<2x8x8xf32>
    "tpu.trace_stop"() : () -> ()
    %160 = vector.extract_strided_slice %136 {offsets = [0, 0, 8], sizes = [2, 8, 8], strides = [1, 1, 1]} : vector<2x8x96xbf16> to vector<2x8x8xbf16>
    %161 = vector.extract_strided_slice %139 {offsets = [0, 0, 8], sizes = [2, 8, 8], strides = [1, 1, 1]} : vector<2x8x96xbf16> to vector<2x8x8xbf16>
    "tpu.trace_start"() <{level = 10 : i32, message = "bqc,bkc->bqk"}> : () -> ()
    %cst_43 = arith.constant dense<0.000000e+00> : vector<2x8x8xf32>
    %162 = tpu.matmul %160, %161, %cst_43 {dimension_numbers = #tpu.dot_dimension_numbers<[2], [2], [1], [1], [0, 0, 0, 1, 1, 1], [0], [0]>} : vector<2x8x8xbf16>, vector<2x8x8xbf16>, vector<2x8x8xf32> -> vector<2x8x8xf32>
    "tpu.trace_stop"() : () -> ()
    %cst_44 = arith.constant 0.353553385 : f32
    %163 = vector.broadcast %cst_44 : f32 to vector<2x8x8xf32>
    %164 = arith.mulf %162, %163 : vector<2x8x8xf32>
    %cst_45 = arith.constant dense<0xFF800000> : vector<2x8xf32>
    %165 = vector.multi_reduction <maximumf>, %164, %cst_45 [2] : vector<2x8x8xf32> to vector<2x8xf32>
    %166 = vector.shape_cast %165 : vector<2x8xf32> to vector<2x8x1xf32>
    %167 = vector.broadcast %166 : vector<2x8x1xf32> to vector<2x8x8xf32>
    %168 = arith.subf %164, %167 : vector<2x8x8xf32>
    %169 = math.exp %168 : vector<2x8x8xf32>
    %cst_46 = arith.constant dense<0.000000e+00> : vector<2x8xf32>
    %170 = vector.multi_reduction <add>, %169, %cst_46 [2] : vector<2x8x8xf32> to vector<2x8xf32>
    %171 = vector.shape_cast %170 : vector<2x8xf32> to vector<2x8x1xf32>
    %172 = vector.broadcast %171 : vector<2x8x1xf32> to vector<2x8x8xf32>
    %173 = arith.divf %169, %172 : vector<2x8x8xf32>
    %174 = arith.truncf %173 : vector<2x8x8xf32> to vector<2x8x8xbf16>
    %175 = vector.extract_strided_slice %142 {offsets = [0, 0, 8], sizes = [2, 8, 8], strides = [1, 1, 1]} : vector<2x8x96xbf16> to vector<2x8x8xbf16>
    "tpu.trace_start"() <{level = 10 : i32, message = "bqk,bkc->bqc"}> : () -> ()
    %cst_47 = arith.constant dense<0.000000e+00> : vector<2x8x8xf32>
    %176 = tpu.matmul %174, %175, %cst_47 {dimension_numbers = #tpu.dot_dimension_numbers<[2], [1], [1], [2], [0, 0, 0, 1, 1, 2], [0], [0]>} : vector<2x8x8xbf16>, vector<2x8x8xbf16>, vector<2x8x8xf32> -> vector<2x8x8xf32>
    "tpu.trace_stop"() : () -> ()
    %177 = vector.extract_strided_slice %136 {offsets = [0, 0, 16], sizes = [2, 8, 8], strides = [1, 1, 1]} : vector<2x8x96xbf16> to vector<2x8x8xbf16>
    %178 = vector.extract_strided_slice %139 {offsets = [0, 0, 16], sizes = [2, 8, 8], strides = [1, 1, 1]} : vector<2x8x96xbf16> to vector<2x8x8xbf16>
    "tpu.trace_start"() <{level = 10 : i32, message = "bqc,bkc->bqk"}> : () -> ()
    %cst_48 = arith.constant dense<0.000000e+00> : vector<2x8x8xf32>
    %179 = tpu.matmul %177, %178, %cst_48 {dimension_numbers = #tpu.dot_dimension_numbers<[2], [2], [1], [1], [0, 0, 0, 1, 1, 1], [0], [0]>} : vector<2x8x8xbf16>, vector<2x8x8xbf16>, vector<2x8x8xf32> -> vector<2x8x8xf32>
    "tpu.trace_stop"() : () -> ()
    %cst_49 = arith.constant 0.353553385 : f32
    %180 = vector.broadcast %cst_49 : f32 to vector<2x8x8xf32>
    %181 = arith.mulf %179, %180 : vector<2x8x8xf32>
    %cst_50 = arith.constant dense<0xFF800000> : vector<2x8xf32>
    %182 = vector.multi_reduction <maximumf>, %181, %cst_50 [2] : vector<2x8x8xf32> to vector<2x8xf32>
    %183 = vector.shape_cast %182 : vector<2x8xf32> to vector<2x8x1xf32>
    %184 = vector.broadcast %183 : vector<2x8x1xf32> to vector<2x8x8xf32>
    %185 = arith.subf %181, %184 : vector<2x8x8xf32>
    %186 = math.exp %185 : vector<2x8x8xf32>
    %cst_51 = arith.constant dense<0.000000e+00> : vector<2x8xf32>
    %187 = vector.multi_reduction <add>, %186, %cst_51 [2] : vector<2x8x8xf32> to vector<2x8xf32>
    %188 = vector.shape_cast %187 : vector<2x8xf32> to vector<2x8x1xf32>
    %189 = vector.broadcast %188 : vector<2x8x1xf32> to vector<2x8x8xf32>
    %190 = arith.divf %186, %189 : vector<2x8x8xf32>
    %191 = arith.truncf %190 : vector<2x8x8xf32> to vector<2x8x8xbf16>
    %192 = vector.extract_strided_slice %142 {offsets = [0, 0, 16], sizes = [2, 8, 8], strides = [1, 1, 1]} : vector<2x8x96xbf16> to vector<2x8x8xbf16>
    "tpu.trace_start"() <{level = 10 : i32, message = "bqk,bkc->bqc"}> : () -> ()
    %cst_52 = arith.constant dense<0.000000e+00> : vector<2x8x8xf32>
    %193 = tpu.matmul %191, %192, %cst_52 {dimension_numbers = #tpu.dot_dimension_numbers<[2], [1], [1], [2], [0, 0, 0, 1, 1, 2], [0], [0]>} : vector<2x8x8xbf16>, vector<2x8x8xbf16>, vector<2x8x8xf32> -> vector<2x8x8xf32>
    "tpu.trace_stop"() : () -> ()
    %194 = vector.extract_strided_slice %136 {offsets = [0, 0, 24], sizes = [2, 8, 8], strides = [1, 1, 1]} : vector<2x8x96xbf16> to vector<2x8x8xbf16>
    %195 = vector.extract_strided_slice %139 {offsets = [0, 0, 24], sizes = [2, 8, 8], strides = [1, 1, 1]} : vector<2x8x96xbf16> to vector<2x8x8xbf16>
    "tpu.trace_start"() <{level = 10 : i32, message = "bqc,bkc->bqk"}> : () -> ()
    %cst_53 = arith.constant dense<0.000000e+00> : vector<2x8x8xf32>
    %196 = tpu.matmul %194, %195, %cst_53 {dimension_numbers = #tpu.dot_dimension_numbers<[2], [2], [1], [1], [0, 0, 0, 1, 1, 1], [0], [0]>} : vector<2x8x8xbf16>, vector<2x8x8xbf16>, vector<2x8x8xf32> -> vector<2x8x8xf32>
    "tpu.trace_stop"() : () -> ()
    %cst_54 = arith.constant 0.353553385 : f32
    %197 = vector.broadcast %cst_54 : f32 to vector<2x8x8xf32>
    %198 = arith.mulf %196, %197 : vector<2x8x8xf32>
    %cst_55 = arith.constant dense<0xFF800000> : vector<2x8xf32>
    %199 = vector.multi_reduction <maximumf>, %198, %cst_55 [2] : vector<2x8x8xf32> to vector<2x8xf32>
    %200 = vector.shape_cast %199 : vector<2x8xf32> to vector<2x8x1xf32>
    %201 = vector.broadcast %200 : vector<2x8x1xf32> to vector<2x8x8xf32>
    %202 = arith.subf %198, %201 : vector<2x8x8xf32>
    %203 = math.exp %202 : vector<2x8x8xf32>
    %cst_56 = arith.constant dense<0.000000e+00> : vector<2x8xf32>
    %204 = vector.multi_reduction <add>, %203, %cst_56 [2] : vector<2x8x8xf32> to vector<2x8xf32>
    %205 = vector.shape_cast %204 : vector<2x8xf32> to vector<2x8x1xf32>
    %206 = vector.broadcast %205 : vector<2x8x1xf32> to vector<2x8x8xf32>
    %207 = arith.divf %203, %206 : vector<2x8x8xf32>
    %208 = arith.truncf %207 : vector<2x8x8xf32> to vector<2x8x8xbf16>
    %209 = vector.extract_strided_slice %142 {offsets = [0, 0, 24], sizes = [2, 8, 8], strides = [1, 1, 1]} : vector<2x8x96xbf16> to vector<2x8x8xbf16>
    "tpu.trace_start"() <{level = 10 : i32, message = "bqk,bkc->bqc"}> : () -> ()
    %cst_57 = arith.constant dense<0.000000e+00> : vector<2x8x8xf32>
    %210 = tpu.matmul %208, %209, %cst_57 {dimension_numbers = #tpu.dot_dimension_numbers<[2], [1], [1], [2], [0, 0, 0, 1, 1, 2], [0], [0]>} : vector<2x8x8xbf16>, vector<2x8x8xbf16>, vector<2x8x8xf32> -> vector<2x8x8xf32>
    "tpu.trace_stop"() : () -> ()
    %211 = vector.extract_strided_slice %136 {offsets = [0, 0, 32], sizes = [2, 8, 8], strides = [1, 1, 1]} : vector<2x8x96xbf16> to vector<2x8x8xbf16>
    %212 = vector.extract_strided_slice %139 {offsets = [0, 0, 32], sizes = [2, 8, 8], strides = [1, 1, 1]} : vector<2x8x96xbf16> to vector<2x8x8xbf16>
    "tpu.trace_start"() <{level = 10 : i32, message = "bqc,bkc->bqk"}> : () -> ()
    %cst_58 = arith.constant dense<0.000000e+00> : vector<2x8x8xf32>
    %213 = tpu.matmul %211, %212, %cst_58 {dimension_numbers = #tpu.dot_dimension_numbers<[2], [2], [1], [1], [0, 0, 0, 1, 1, 1], [0], [0]>} : vector<2x8x8xbf16>, vector<2x8x8xbf16>, vector<2x8x8xf32> -> vector<2x8x8xf32>
    "tpu.trace_stop"() : () -> ()
    %cst_59 = arith.constant 0.353553385 : f32
    %214 = vector.broadcast %cst_59 : f32 to vector<2x8x8xf32>
    %215 = arith.mulf %213, %214 : vector<2x8x8xf32>
    %cst_60 = arith.constant dense<0xFF800000> : vector<2x8xf32>
    %216 = vector.multi_reduction <maximumf>, %215, %cst_60 [2] : vector<2x8x8xf32> to vector<2x8xf32>
    %217 = vector.shape_cast %216 : vector<2x8xf32> to vector<2x8x1xf32>
    %218 = vector.broadcast %217 : vector<2x8x1xf32> to vector<2x8x8xf32>
    %219 = arith.subf %215, %218 : vector<2x8x8xf32>
    %220 = math.exp %219 : vector<2x8x8xf32>
    %cst_61 = arith.constant dense<0.000000e+00> : vector<2x8xf32>
    %221 = vector.multi_reduction <add>, %220, %cst_61 [2] : vector<2x8x8xf32> to vector<2x8xf32>
    %222 = vector.shape_cast %221 : vector<2x8xf32> to vector<2x8x1xf32>
    %223 = vector.broadcast %222 : vector<2x8x1xf32> to vector<2x8x8xf32>
    %224 = arith.divf %220, %223 : vector<2x8x8xf32>
    %225 = arith.truncf %224 : vector<2x8x8xf32> to vector<2x8x8xbf16>
    %226 = vector.extract_strided_slice %142 {offsets = [0, 0, 32], sizes = [2, 8, 8], strides = [1, 1, 1]} : vector<2x8x96xbf16> to vector<2x8x8xbf16>
    "tpu.trace_start"() <{level = 10 : i32, message = "bqk,bkc->bqc"}> : () -> ()
    %cst_62 = arith.constant dense<0.000000e+00> : vector<2x8x8xf32>
    %227 = tpu.matmul %225, %226, %cst_62 {dimension_numbers = #tpu.dot_dimension_numbers<[2], [1], [1], [2], [0, 0, 0, 1, 1, 2], [0], [0]>} : vector<2x8x8xbf16>, vector<2x8x8xbf16>, vector<2x8x8xf32> -> vector<2x8x8xf32>
    "tpu.trace_stop"() : () -> ()
    %228 = vector.extract_strided_slice %136 {offsets = [0, 0, 40], sizes = [2, 8, 8], strides = [1, 1, 1]} : vector<2x8x96xbf16> to vector<2x8x8xbf16>
    %229 = vector.extract_strided_slice %139 {offsets = [0, 0, 40], sizes = [2, 8, 8], strides = [1, 1, 1]} : vector<2x8x96xbf16> to vector<2x8x8xbf16>
    "tpu.trace_start"() <{level = 10 : i32, message = "bqc,bkc->bqk"}> : () -> ()
    %cst_63 = arith.constant dense<0.000000e+00> : vector<2x8x8xf32>
    %230 = tpu.matmul %228, %229, %cst_63 {dimension_numbers = #tpu.dot_dimension_numbers<[2], [2], [1], [1], [0, 0, 0, 1, 1, 1], [0], [0]>} : vector<2x8x8xbf16>, vector<2x8x8xbf16>, vector<2x8x8xf32> -> vector<2x8x8xf32>
    "tpu.trace_stop"() : () -> ()
    %cst_64 = arith.constant 0.353553385 : f32
    %231 = vector.broadcast %cst_64 : f32 to vector<2x8x8xf32>
    %232 = arith.mulf %230, %231 : vector<2x8x8xf32>
    %cst_65 = arith.constant dense<0xFF800000> : vector<2x8xf32>
    %233 = vector.multi_reduction <maximumf>, %232, %cst_65 [2] : vector<2x8x8xf32> to vector<2x8xf32>
    %234 = vector.shape_cast %233 : vector<2x8xf32> to vector<2x8x1xf32>
    %235 = vector.broadcast %234 : vector<2x8x1xf32> to vector<2x8x8xf32>
    %236 = arith.subf %232, %235 : vector<2x8x8xf32>
    %237 = math.exp %236 : vector<2x8x8xf32>
    %cst_66 = arith.constant dense<0.000000e+00> : vector<2x8xf32>
    %238 = vector.multi_reduction <add>, %237, %cst_66 [2] : vector<2x8x8xf32> to vector<2x8xf32>
    %239 = vector.shape_cast %238 : vector<2x8xf32> to vector<2x8x1xf32>
    %240 = vector.broadcast %239 : vector<2x8x1xf32> to vector<2x8x8xf32>
    %241 = arith.divf %237, %240 : vector<2x8x8xf32>
    %242 = arith.truncf %241 : vector<2x8x8xf32> to vector<2x8x8xbf16>
    %243 = vector.extract_strided_slice %142 {offsets = [0, 0, 40], sizes = [2, 8, 8], strides = [1, 1, 1]} : vector<2x8x96xbf16> to vector<2x8x8xbf16>
    "tpu.trace_start"() <{level = 10 : i32, message = "bqk,bkc->bqc"}> : () -> ()
    %cst_67 = arith.constant dense<0.000000e+00> : vector<2x8x8xf32>
    %244 = tpu.matmul %242, %243, %cst_67 {dimension_numbers = #tpu.dot_dimension_numbers<[2], [1], [1], [2], [0, 0, 0, 1, 1, 2], [0], [0]>} : vector<2x8x8xbf16>, vector<2x8x8xbf16>, vector<2x8x8xf32> -> vector<2x8x8xf32>
    "tpu.trace_stop"() : () -> ()
    %245 = vector.extract_strided_slice %136 {offsets = [0, 0, 48], sizes = [2, 8, 8], strides = [1, 1, 1]} : vector<2x8x96xbf16> to vector<2x8x8xbf16>
    %246 = vector.extract_strided_slice %139 {offsets = [0, 0, 48], sizes = [2, 8, 8], strides = [1, 1, 1]} : vector<2x8x96xbf16> to vector<2x8x8xbf16>
    "tpu.trace_start"() <{level = 10 : i32, message = "bqc,bkc->bqk"}> : () -> ()
    %cst_68 = arith.constant dense<0.000000e+00> : vector<2x8x8xf32>
    %247 = tpu.matmul %245, %246, %cst_68 {dimension_numbers = #tpu.dot_dimension_numbers<[2], [2], [1], [1], [0, 0, 0, 1, 1, 1], [0], [0]>} : vector<2x8x8xbf16>, vector<2x8x8xbf16>, vector<2x8x8xf32> -> vector<2x8x8xf32>
    "tpu.trace_stop"() : () -> ()
    %cst_69 = arith.constant 0.353553385 : f32
    %248 = vector.broadcast %cst_69 : f32 to vector<2x8x8xf32>
    %249 = arith.mulf %247, %248 : vector<2x8x8xf32>
    %cst_70 = arith.constant dense<0xFF800000> : vector<2x8xf32>
    %250 = vector.multi_reduction <maximumf>, %249, %cst_70 [2] : vector<2x8x8xf32> to vector<2x8xf32>
    %251 = vector.shape_cast %250 : vector<2x8xf32> to vector<2x8x1xf32>
    %252 = vector.broadcast %251 : vector<2x8x1xf32> to vector<2x8x8xf32>
    %253 = arith.subf %249, %252 : vector<2x8x8xf32>
    %254 = math.exp %253 : vector<2x8x8xf32>
    %cst_71 = arith.constant dense<0.000000e+00> : vector<2x8xf32>
    %255 = vector.multi_reduction <add>, %254, %cst_71 [2] : vector<2x8x8xf32> to vector<2x8xf32>
    %256 = vector.shape_cast %255 : vector<2x8xf32> to vector<2x8x1xf32>
    %257 = vector.broadcast %256 : vector<2x8x1xf32> to vector<2x8x8xf32>
    %258 = arith.divf %254, %257 : vector<2x8x8xf32>
    %259 = arith.truncf %258 : vector<2x8x8xf32> to vector<2x8x8xbf16>
    %260 = vector.extract_strided_slice %142 {offsets = [0, 0, 48], sizes = [2, 8, 8], strides = [1, 1, 1]} : vector<2x8x96xbf16> to vector<2x8x8xbf16>
    "tpu.trace_start"() <{level = 10 : i32, message = "bqk,bkc->bqc"}> : () -> ()
    %cst_72 = arith.constant dense<0.000000e+00> : vector<2x8x8xf32>
    %261 = tpu.matmul %259, %260, %cst_72 {dimension_numbers = #tpu.dot_dimension_numbers<[2], [1], [1], [2], [0, 0, 0, 1, 1, 2], [0], [0]>} : vector<2x8x8xbf16>, vector<2x8x8xbf16>, vector<2x8x8xf32> -> vector<2x8x8xf32>
    "tpu.trace_stop"() : () -> ()
    %262 = vector.extract_strided_slice %136 {offsets = [0, 0, 56], sizes = [2, 8, 8], strides = [1, 1, 1]} : vector<2x8x96xbf16> to vector<2x8x8xbf16>
    %263 = vector.extract_strided_slice %139 {offsets = [0, 0, 56], sizes = [2, 8, 8], strides = [1, 1, 1]} : vector<2x8x96xbf16> to vector<2x8x8xbf16>
    "tpu.trace_start"() <{level = 10 : i32, message = "bqc,bkc->bqk"}> : () -> ()
    %cst_73 = arith.constant dense<0.000000e+00> : vector<2x8x8xf32>
    %264 = tpu.matmul %262, %263, %cst_73 {dimension_numbers = #tpu.dot_dimension_numbers<[2], [2], [1], [1], [0, 0, 0, 1, 1, 1], [0], [0]>} : vector<2x8x8xbf16>, vector<2x8x8xbf16>, vector<2x8x8xf32> -> vector<2x8x8xf32>
    "tpu.trace_stop"() : () -> ()
    %cst_74 = arith.constant 0.353553385 : f32
    %265 = vector.broadcast %cst_74 : f32 to vector<2x8x8xf32>
    %266 = arith.mulf %264, %265 : vector<2x8x8xf32>
    %cst_75 = arith.constant dense<0xFF800000> : vector<2x8xf32>
    %267 = vector.multi_reduction <maximumf>, %266, %cst_75 [2] : vector<2x8x8xf32> to vector<2x8xf32>
    %268 = vector.shape_cast %267 : vector<2x8xf32> to vector<2x8x1xf32>
    %269 = vector.broadcast %268 : vector<2x8x1xf32> to vector<2x8x8xf32>
    %270 = arith.subf %266, %269 : vector<2x8x8xf32>
    %271 = math.exp %270 : vector<2x8x8xf32>
    %cst_76 = arith.constant dense<0.000000e+00> : vector<2x8xf32>
    %272 = vector.multi_reduction <add>, %271, %cst_76 [2] : vector<2x8x8xf32> to vector<2x8xf32>
    %273 = vector.shape_cast %272 : vector<2x8xf32> to vector<2x8x1xf32>
    %274 = vector.broadcast %273 : vector<2x8x1xf32> to vector<2x8x8xf32>
    %275 = arith.divf %271, %274 : vector<2x8x8xf32>
    %276 = arith.truncf %275 : vector<2x8x8xf32> to vector<2x8x8xbf16>
    %277 = vector.extract_strided_slice %142 {offsets = [0, 0, 56], sizes = [2, 8, 8], strides = [1, 1, 1]} : vector<2x8x96xbf16> to vector<2x8x8xbf16>
    "tpu.trace_start"() <{level = 10 : i32, message = "bqk,bkc->bqc"}> : () -> ()
    %cst_77 = arith.constant dense<0.000000e+00> : vector<2x8x8xf32>
    %278 = tpu.matmul %276, %277, %cst_77 {dimension_numbers = #tpu.dot_dimension_numbers<[2], [1], [1], [2], [0, 0, 0, 1, 1, 2], [0], [0]>} : vector<2x8x8xbf16>, vector<2x8x8xbf16>, vector<2x8x8xf32> -> vector<2x8x8xf32>
    "tpu.trace_stop"() : () -> ()
    %279 = vector.extract_strided_slice %136 {offsets = [0, 0, 64], sizes = [2, 8, 8], strides = [1, 1, 1]} : vector<2x8x96xbf16> to vector<2x8x8xbf16>
    %280 = vector.extract_strided_slice %139 {offsets = [0, 0, 64], sizes = [2, 8, 8], strides = [1, 1, 1]} : vector<2x8x96xbf16> to vector<2x8x8xbf16>
    "tpu.trace_start"() <{level = 10 : i32, message = "bqc,bkc->bqk"}> : () -> ()
    %cst_78 = arith.constant dense<0.000000e+00> : vector<2x8x8xf32>
    %281 = tpu.matmul %279, %280, %cst_78 {dimension_numbers = #tpu.dot_dimension_numbers<[2], [2], [1], [1], [0, 0, 0, 1, 1, 1], [0], [0]>} : vector<2x8x8xbf16>, vector<2x8x8xbf16>, vector<2x8x8xf32> -> vector<2x8x8xf32>
    "tpu.trace_stop"() : () -> ()
    %cst_79 = arith.constant 0.353553385 : f32
    %282 = vector.broadcast %cst_79 : f32 to vector<2x8x8xf32>
    %283 = arith.mulf %281, %282 : vector<2x8x8xf32>
    %cst_80 = arith.constant dense<0xFF800000> : vector<2x8xf32>
    %284 = vector.multi_reduction <maximumf>, %283, %cst_80 [2] : vector<2x8x8xf32> to vector<2x8xf32>
    %285 = vector.shape_cast %284 : vector<2x8xf32> to vector<2x8x1xf32>
    %286 = vector.broadcast %285 : vector<2x8x1xf32> to vector<2x8x8xf32>
    %287 = arith.subf %283, %286 : vector<2x8x8xf32>
    %288 = math.exp %287 : vector<2x8x8xf32>
    %cst_81 = arith.constant dense<0.000000e+00> : vector<2x8xf32>
    %289 = vector.multi_reduction <add>, %288, %cst_81 [2] : vector<2x8x8xf32> to vector<2x8xf32>
    %290 = vector.shape_cast %289 : vector<2x8xf32> to vector<2x8x1xf32>
    %291 = vector.broadcast %290 : vector<2x8x1xf32> to vector<2x8x8xf32>
    %292 = arith.divf %288, %291 : vector<2x8x8xf32>
    %293 = arith.truncf %292 : vector<2x8x8xf32> to vector<2x8x8xbf16>
    %294 = vector.extract_strided_slice %142 {offsets = [0, 0, 64], sizes = [2, 8, 8], strides = [1, 1, 1]} : vector<2x8x96xbf16> to vector<2x8x8xbf16>
    "tpu.trace_start"() <{level = 10 : i32, message = "bqk,bkc->bqc"}> : () -> ()
    %cst_82 = arith.constant dense<0.000000e+00> : vector<2x8x8xf32>
    %295 = tpu.matmul %293, %294, %cst_82 {dimension_numbers = #tpu.dot_dimension_numbers<[2], [1], [1], [2], [0, 0, 0, 1, 1, 2], [0], [0]>} : vector<2x8x8xbf16>, vector<2x8x8xbf16>, vector<2x8x8xf32> -> vector<2x8x8xf32>
    "tpu.trace_stop"() : () -> ()
    %296 = vector.extract_strided_slice %136 {offsets = [0, 0, 72], sizes = [2, 8, 8], strides = [1, 1, 1]} : vector<2x8x96xbf16> to vector<2x8x8xbf16>
    %297 = vector.extract_strided_slice %139 {offsets = [0, 0, 72], sizes = [2, 8, 8], strides = [1, 1, 1]} : vector<2x8x96xbf16> to vector<2x8x8xbf16>
    "tpu.trace_start"() <{level = 10 : i32, message = "bqc,bkc->bqk"}> : () -> ()
    %cst_83 = arith.constant dense<0.000000e+00> : vector<2x8x8xf32>
    %298 = tpu.matmul %296, %297, %cst_83 {dimension_numbers = #tpu.dot_dimension_numbers<[2], [2], [1], [1], [0, 0, 0, 1, 1, 1], [0], [0]>} : vector<2x8x8xbf16>, vector<2x8x8xbf16>, vector<2x8x8xf32> -> vector<2x8x8xf32>
    "tpu.trace_stop"() : () -> ()
    %cst_84 = arith.constant 0.353553385 : f32
    %299 = vector.broadcast %cst_84 : f32 to vector<2x8x8xf32>
    %300 = arith.mulf %298, %299 : vector<2x8x8xf32>
    %cst_85 = arith.constant dense<0xFF800000> : vector<2x8xf32>
    %301 = vector.multi_reduction <maximumf>, %300, %cst_85 [2] : vector<2x8x8xf32> to vector<2x8xf32>
    %302 = vector.shape_cast %301 : vector<2x8xf32> to vector<2x8x1xf32>
    %303 = vector.broadcast %302 : vector<2x8x1xf32> to vector<2x8x8xf32>
    %304 = arith.subf %300, %303 : vector<2x8x8xf32>
    %305 = math.exp %304 : vector<2x8x8xf32>
    %cst_86 = arith.constant dense<0.000000e+00> : vector<2x8xf32>
    %306 = vector.multi_reduction <add>, %305, %cst_86 [2] : vector<2x8x8xf32> to vector<2x8xf32>
    %307 = vector.shape_cast %306 : vector<2x8xf32> to vector<2x8x1xf32>
    %308 = vector.broadcast %307 : vector<2x8x1xf32> to vector<2x8x8xf32>
    %309 = arith.divf %305, %308 : vector<2x8x8xf32>
    %310 = arith.truncf %309 : vector<2x8x8xf32> to vector<2x8x8xbf16>
    %311 = vector.extract_strided_slice %142 {offsets = [0, 0, 72], sizes = [2, 8, 8], strides = [1, 1, 1]} : vector<2x8x96xbf16> to vector<2x8x8xbf16>
    "tpu.trace_start"() <{level = 10 : i32, message = "bqk,bkc->bqc"}> : () -> ()
    %cst_87 = arith.constant dense<0.000000e+00> : vector<2x8x8xf32>
    %312 = tpu.matmul %310, %311, %cst_87 {dimension_numbers = #tpu.dot_dimension_numbers<[2], [1], [1], [2], [0, 0, 0, 1, 1, 2], [0], [0]>} : vector<2x8x8xbf16>, vector<2x8x8xbf16>, vector<2x8x8xf32> -> vector<2x8x8xf32>
    "tpu.trace_stop"() : () -> ()
    %313 = vector.extract_strided_slice %136 {offsets = [0, 0, 80], sizes = [2, 8, 8], strides = [1, 1, 1]} : vector<2x8x96xbf16> to vector<2x8x8xbf16>
    %314 = vector.extract_strided_slice %139 {offsets = [0, 0, 80], sizes = [2, 8, 8], strides = [1, 1, 1]} : vector<2x8x96xbf16> to vector<2x8x8xbf16>
    "tpu.trace_start"() <{level = 10 : i32, message = "bqc,bkc->bqk"}> : () -> ()
    %cst_88 = arith.constant dense<0.000000e+00> : vector<2x8x8xf32>
    %315 = tpu.matmul %313, %314, %cst_88 {dimension_numbers = #tpu.dot_dimension_numbers<[2], [2], [1], [1], [0, 0, 0, 1, 1, 1], [0], [0]>} : vector<2x8x8xbf16>, vector<2x8x8xbf16>, vector<2x8x8xf32> -> vector<2x8x8xf32>
    "tpu.trace_stop"() : () -> ()
    %cst_89 = arith.constant 0.353553385 : f32
    %316 = vector.broadcast %cst_89 : f32 to vector<2x8x8xf32>
    %317 = arith.mulf %315, %316 : vector<2x8x8xf32>
    %cst_90 = arith.constant dense<0xFF800000> : vector<2x8xf32>
    %318 = vector.multi_reduction <maximumf>, %317, %cst_90 [2] : vector<2x8x8xf32> to vector<2x8xf32>
    %319 = vector.shape_cast %318 : vector<2x8xf32> to vector<2x8x1xf32>
    %320 = vector.broadcast %319 : vector<2x8x1xf32> to vector<2x8x8xf32>
    %321 = arith.subf %317, %320 : vector<2x8x8xf32>
    %322 = math.exp %321 : vector<2x8x8xf32>
    %cst_91 = arith.constant dense<0.000000e+00> : vector<2x8xf32>
    %323 = vector.multi_reduction <add>, %322, %cst_91 [2] : vector<2x8x8xf32> to vector<2x8xf32>
    %324 = vector.shape_cast %323 : vector<2x8xf32> to vector<2x8x1xf32>
    %325 = vector.broadcast %324 : vector<2x8x1xf32> to vector<2x8x8xf32>
    %326 = arith.divf %322, %325 : vector<2x8x8xf32>
    %327 = arith.truncf %326 : vector<2x8x8xf32> to vector<2x8x8xbf16>
    %328 = vector.extract_strided_slice %142 {offsets = [0, 0, 80], sizes = [2, 8, 8], strides = [1, 1, 1]} : vector<2x8x96xbf16> to vector<2x8x8xbf16>
    "tpu.trace_start"() <{level = 10 : i32, message = "bqk,bkc->bqc"}> : () -> ()
    %cst_92 = arith.constant dense<0.000000e+00> : vector<2x8x8xf32>
    %329 = tpu.matmul %327, %328, %cst_92 {dimension_numbers = #tpu.dot_dimension_numbers<[2], [1], [1], [2], [0, 0, 0, 1, 1, 2], [0], [0]>} : vector<2x8x8xbf16>, vector<2x8x8xbf16>, vector<2x8x8xf32> -> vector<2x8x8xf32>
    "tpu.trace_stop"() : () -> ()
    %330 = vector.extract_strided_slice %136 {offsets = [0, 0, 88], sizes = [2, 8, 8], strides = [1, 1, 1]} : vector<2x8x96xbf16> to vector<2x8x8xbf16>
    %331 = vector.extract_strided_slice %139 {offsets = [0, 0, 88], sizes = [2, 8, 8], strides = [1, 1, 1]} : vector<2x8x96xbf16> to vector<2x8x8xbf16>
    "tpu.trace_start"() <{level = 10 : i32, message = "bqc,bkc->bqk"}> : () -> ()
    %cst_93 = arith.constant dense<0.000000e+00> : vector<2x8x8xf32>
    %332 = tpu.matmul %330, %331, %cst_93 {dimension_numbers = #tpu.dot_dimension_numbers<[2], [2], [1], [1], [0, 0, 0, 1, 1, 1], [0], [0]>} : vector<2x8x8xbf16>, vector<2x8x8xbf16>, vector<2x8x8xf32> -> vector<2x8x8xf32>
    "tpu.trace_stop"() : () -> ()
    %cst_94 = arith.constant 0.353553385 : f32
    %333 = vector.broadcast %cst_94 : f32 to vector<2x8x8xf32>
    %334 = arith.mulf %332, %333 : vector<2x8x8xf32>
    %cst_95 = arith.constant dense<0xFF800000> : vector<2x8xf32>
    %335 = vector.multi_reduction <maximumf>, %334, %cst_95 [2] : vector<2x8x8xf32> to vector<2x8xf32>
    %336 = vector.shape_cast %335 : vector<2x8xf32> to vector<2x8x1xf32>
    %337 = vector.broadcast %336 : vector<2x8x1xf32> to vector<2x8x8xf32>
    %338 = arith.subf %334, %337 : vector<2x8x8xf32>
    %339 = math.exp %338 : vector<2x8x8xf32>
    %cst_96 = arith.constant dense<0.000000e+00> : vector<2x8xf32>
    %340 = vector.multi_reduction <add>, %339, %cst_96 [2] : vector<2x8x8xf32> to vector<2x8xf32>
    %341 = vector.shape_cast %340 : vector<2x8xf32> to vector<2x8x1xf32>
    %342 = vector.broadcast %341 : vector<2x8x1xf32> to vector<2x8x8xf32>
    %343 = arith.divf %339, %342 : vector<2x8x8xf32>
    %344 = arith.truncf %343 : vector<2x8x8xf32> to vector<2x8x8xbf16>
    %345 = vector.extract_strided_slice %142 {offsets = [0, 0, 88], sizes = [2, 8, 8], strides = [1, 1, 1]} : vector<2x8x96xbf16> to vector<2x8x8xbf16>
    "tpu.trace_start"() <{level = 10 : i32, message = "bqk,bkc->bqc"}> : () -> ()
    %cst_97 = arith.constant dense<0.000000e+00> : vector<2x8x8xf32>
    %346 = tpu.matmul %344, %345, %cst_97 {dimension_numbers = #tpu.dot_dimension_numbers<[2], [1], [1], [2], [0, 0, 0, 1, 1, 2], [0], [0]>} : vector<2x8x8xbf16>, vector<2x8x8xbf16>, vector<2x8x8xf32> -> vector<2x8x8xf32>
    "tpu.trace_stop"() : () -> ()
    %347 = tpu.concatenate %159, %176, %193, %210, %227, %244, %261, %278, %295, %312, %329, %346 in 2 : vector<2x8x8xf32>, vector<2x8x8xf32>, vector<2x8x8xf32>, vector<2x8x8xf32>, vector<2x8x8xf32>, vector<2x8x8xf32>, vector<2x8x8xf32>, vector<2x8x8xf32>, vector<2x8x8xf32>, vector<2x8x8xf32>, vector<2x8x8xf32>, vector<2x8x8xf32> -> vector<2x8x96xf32>
    %348 = vector.shape_cast %347 : vector<2x8x96xf32> to vector<16x96xf32>
    %349 = arith.truncf %348 : vector<16x96xf32> to vector<16x96xbf16>
    %cst_98 = arith.constant dense<0.000000e+00> : vector<16x96xf32>
    %350 = tpu.matmul %349, %11, %cst_98 {dimension_numbers = #tpu.dot_dimension_numbers<[1], [0], [0], [1], [0, 0, 1, 1], [], []>} : vector<16x96xbf16>, vector<96x96xbf16>, vector<16x96xf32> -> vector<16x96xf32>
    %351 = arith.addf %9, %350 : vector<16x96xf32>
    %352 = vector.broadcast %17 : vector<1x96xf32> to vector<16x96xf32>
    %353 = arith.addf %351, %352 : vector<16x96xf32>
    %354 = tpu.iota {dimensions = array<i32: 1>} : vector<1x96xi32>
    %cst_99 = arith.constant 0.000000e+00 : f32
    %355 = vector.broadcast %cst_99 : f32 to vector<16x96xf32>
    %cst_100 = arith.constant 0.000000e+00 : f32
    %356 = vector.broadcast %cst_100 : f32 to vector<16x96xf32>
    %c0_i32_101 = arith.constant 0 : i32
    %357 = vector.broadcast %c0_i32_101 : i32 to vector<1x96xi32>
    %358 = arith.cmpi sge, %354, %357 : vector<1x96xi32>
    %c32_i32_102 = arith.constant 32 : i32
    %359 = vector.broadcast %c32_i32_102 : i32 to vector<1x96xi32>
    %360 = arith.cmpi slt, %354, %359 : vector<1x96xi32>
    %361 = arith.andi %358, %360 : vector<1x96xi1>
    %362 = arith.extui %361 : vector<1x96xi1> to vector<1x96xi32>
    %363 = arith.sitofp %362 : vector<1x96xi32> to vector<1x96xf32>
    %364 = vector.broadcast %363 : vector<1x96xf32> to vector<16x96xf32>
    %365 = arith.mulf %353, %364 : vector<16x96xf32>
    %cst_103 = arith.constant dense<0.000000e+00> : vector<16xf32>
    %366 = vector.multi_reduction <add>, %365, %cst_103 [1] : vector<16x96xf32> to vector<16xf32>
    %367 = vector.shape_cast %366 : vector<16xf32> to vector<16x1xf32>
    %cst_104 = arith.constant 3.125000e-02 : f32
    %368 = vector.broadcast %cst_104 : f32 to vector<16x1xf32>
    %369 = arith.mulf %367, %368 : vector<16x1xf32>
    %370 = vector.broadcast %369 : vector<16x1xf32> to vector<16x96xf32>
    %371 = arith.subf %353, %370 : vector<16x96xf32>
    %372 = arith.mulf %371, %371 : vector<16x96xf32>
    %373 = vector.broadcast %363 : vector<1x96xf32> to vector<16x96xf32>
    %374 = arith.mulf %372, %373 : vector<16x96xf32>
    %cst_105 = arith.constant dense<0.000000e+00> : vector<16xf32>
    %375 = vector.multi_reduction <add>, %374, %cst_105 [1] : vector<16x96xf32> to vector<16xf32>
    %376 = vector.shape_cast %375 : vector<16xf32> to vector<16x1xf32>
    %cst_106 = arith.constant 3.125000e-02 : f32
    %377 = vector.broadcast %cst_106 : f32 to vector<16x1xf32>
    %378 = arith.mulf %376, %377 : vector<16x1xf32>
    %379 = vector.broadcast %369 : vector<16x1xf32> to vector<16x96xf32>
    %380 = vector.broadcast %363 : vector<1x96xf32> to vector<16x96xf32>
    %381 = arith.mulf %379, %380 : vector<16x96xf32>
    %382 = arith.addf %355, %381 : vector<16x96xf32>
    %cst_107 = arith.constant 9.99999974E-6 : f32
    %383 = vector.broadcast %cst_107 : f32 to vector<16x1xf32>
    %384 = arith.addf %378, %383 : vector<16x1xf32>
    %385 = math.rsqrt %384 : vector<16x1xf32>
    %386 = vector.broadcast %385 : vector<16x1xf32> to vector<16x96xf32>
    %387 = vector.broadcast %363 : vector<1x96xf32> to vector<16x96xf32>
    %388 = arith.mulf %386, %387 : vector<16x96xf32>
    %389 = arith.addf %356, %388 : vector<16x96xf32>
    %c32_i32_108 = arith.constant 32 : i32
    %390 = vector.broadcast %c32_i32_108 : i32 to vector<1x96xi32>
    %391 = arith.cmpi sge, %354, %390 : vector<1x96xi32>
    %c64_i32_109 = arith.constant 64 : i32
    %392 = vector.broadcast %c64_i32_109 : i32 to vector<1x96xi32>
    %393 = arith.cmpi slt, %354, %392 : vector<1x96xi32>
    %394 = arith.andi %391, %393 : vector<1x96xi1>
    %395 = arith.extui %394 : vector<1x96xi1> to vector<1x96xi32>
    %396 = arith.sitofp %395 : vector<1x96xi32> to vector<1x96xf32>
    %397 = vector.broadcast %396 : vector<1x96xf32> to vector<16x96xf32>
    %398 = arith.mulf %353, %397 : vector<16x96xf32>
    %cst_110 = arith.constant dense<0.000000e+00> : vector<16xf32>
    %399 = vector.multi_reduction <add>, %398, %cst_110 [1] : vector<16x96xf32> to vector<16xf32>
    %400 = vector.shape_cast %399 : vector<16xf32> to vector<16x1xf32>
    %cst_111 = arith.constant 3.125000e-02 : f32
    %401 = vector.broadcast %cst_111 : f32 to vector<16x1xf32>
    %402 = arith.mulf %400, %401 : vector<16x1xf32>
    %403 = vector.broadcast %402 : vector<16x1xf32> to vector<16x96xf32>
    %404 = arith.subf %353, %403 : vector<16x96xf32>
    %405 = arith.mulf %404, %404 : vector<16x96xf32>
    %406 = vector.broadcast %396 : vector<1x96xf32> to vector<16x96xf32>
    %407 = arith.mulf %405, %406 : vector<16x96xf32>
    %cst_112 = arith.constant dense<0.000000e+00> : vector<16xf32>
    %408 = vector.multi_reduction <add>, %407, %cst_112 [1] : vector<16x96xf32> to vector<16xf32>
    %409 = vector.shape_cast %408 : vector<16xf32> to vector<16x1xf32>
    %cst_113 = arith.constant 3.125000e-02 : f32
    %410 = vector.broadcast %cst_113 : f32 to vector<16x1xf32>
    %411 = arith.mulf %409, %410 : vector<16x1xf32>
    %412 = vector.broadcast %402 : vector<16x1xf32> to vector<16x96xf32>
    %413 = vector.broadcast %396 : vector<1x96xf32> to vector<16x96xf32>
    %414 = arith.mulf %412, %413 : vector<16x96xf32>
    %415 = arith.addf %382, %414 : vector<16x96xf32>
    %cst_114 = arith.constant 9.99999974E-6 : f32
    %416 = vector.broadcast %cst_114 : f32 to vector<16x1xf32>
    %417 = arith.addf %411, %416 : vector<16x1xf32>
    %418 = math.rsqrt %417 : vector<16x1xf32>
    %419 = vector.broadcast %418 : vector<16x1xf32> to vector<16x96xf32>
    %420 = vector.broadcast %396 : vector<1x96xf32> to vector<16x96xf32>
    %421 = arith.mulf %419, %420 : vector<16x96xf32>
    %422 = arith.addf %389, %421 : vector<16x96xf32>
    %c64_i32_115 = arith.constant 64 : i32
    %423 = vector.broadcast %c64_i32_115 : i32 to vector<1x96xi32>
    %424 = arith.cmpi sge, %354, %423 : vector<1x96xi32>
    %c96_i32_116 = arith.constant 96 : i32
    %425 = vector.broadcast %c96_i32_116 : i32 to vector<1x96xi32>
    %426 = arith.cmpi slt, %354, %425 : vector<1x96xi32>
    %427 = arith.andi %424, %426 : vector<1x96xi1>
    %428 = arith.extui %427 : vector<1x96xi1> to vector<1x96xi32>
    %429 = arith.sitofp %428 : vector<1x96xi32> to vector<1x96xf32>
    %430 = vector.broadcast %429 : vector<1x96xf32> to vector<16x96xf32>
    %431 = arith.mulf %353, %430 : vector<16x96xf32>
    %cst_117 = arith.constant dense<0.000000e+00> : vector<16xf32>
    %432 = vector.multi_reduction <add>, %431, %cst_117 [1] : vector<16x96xf32> to vector<16xf32>
    %433 = vector.shape_cast %432 : vector<16xf32> to vector<16x1xf32>
    %cst_118 = arith.constant 3.125000e-02 : f32
    %434 = vector.broadcast %cst_118 : f32 to vector<16x1xf32>
    %435 = arith.mulf %433, %434 : vector<16x1xf32>
    %436 = vector.broadcast %435 : vector<16x1xf32> to vector<16x96xf32>
    %437 = arith.subf %353, %436 : vector<16x96xf32>
    %438 = arith.mulf %437, %437 : vector<16x96xf32>
    %439 = vector.broadcast %429 : vector<1x96xf32> to vector<16x96xf32>
    %440 = arith.mulf %438, %439 : vector<16x96xf32>
    %cst_119 = arith.constant dense<0.000000e+00> : vector<16xf32>
    %441 = vector.multi_reduction <add>, %440, %cst_119 [1] : vector<16x96xf32> to vector<16xf32>
    %442 = vector.shape_cast %441 : vector<16xf32> to vector<16x1xf32>
    %cst_120 = arith.constant 3.125000e-02 : f32
    %443 = vector.broadcast %cst_120 : f32 to vector<16x1xf32>
    %444 = arith.mulf %442, %443 : vector<16x1xf32>
    %445 = vector.broadcast %435 : vector<16x1xf32> to vector<16x96xf32>
    %446 = vector.broadcast %429 : vector<1x96xf32> to vector<16x96xf32>
    %447 = arith.mulf %445, %446 : vector<16x96xf32>
    %448 = arith.addf %415, %447 : vector<16x96xf32>
    %cst_121 = arith.constant 9.99999974E-6 : f32
    %449 = vector.broadcast %cst_121 : f32 to vector<16x1xf32>
    %450 = arith.addf %444, %449 : vector<16x1xf32>
    %451 = math.rsqrt %450 : vector<16x1xf32>
    %452 = vector.broadcast %451 : vector<16x1xf32> to vector<16x96xf32>
    %453 = vector.broadcast %429 : vector<1x96xf32> to vector<16x96xf32>
    %454 = arith.mulf %452, %453 : vector<16x96xf32>
    %455 = arith.addf %422, %454 : vector<16x96xf32>
    %456 = arith.subf %353, %448 : vector<16x96xf32>
    %457 = arith.mulf %456, %455 : vector<16x96xf32>
    %458 = vector.broadcast %18 : vector<1x96xf32> to vector<16x96xf32>
    %459 = arith.mulf %457, %458 : vector<16x96xf32>
    %460 = vector.broadcast %19 : vector<1x96xf32> to vector<16x96xf32>
    %461 = arith.addf %459, %460 : vector<16x96xf32>
    %462 = arith.truncf %461 : vector<16x96xf32> to vector<16x96xbf16>
    %cst_122 = arith.constant dense<0.000000e+00> : vector<16x192xf32>
    %463 = tpu.matmul %462, %12, %cst_122 {dimension_numbers = #tpu.dot_dimension_numbers<[1], [0], [0], [1], [0, 0, 1, 1], [], []>} : vector<16x96xbf16>, vector<96x192xbf16>, vector<16x192xf32> -> vector<16x192xf32>
    %464 = vector.broadcast %20 : vector<1x192xf32> to vector<16x192xf32>
    %465 = arith.addf %463, %464 : vector<16x192xf32>
    %466 = arith.mulf %465, %465 : vector<16x192xf32>
    %467 = arith.mulf %465, %466 : vector<16x192xf32>
    %cst_123 = arith.constant 4.471500e-02 : f32
    %468 = vector.broadcast %cst_123 : f32 to vector<16x192xf32>
    %469 = arith.mulf %468, %467 : vector<16x192xf32>
    %470 = arith.addf %465, %469 : vector<16x192xf32>
    %cst_124 = arith.constant 0.797884583 : f32
    %471 = vector.broadcast %cst_124 : f32 to vector<16x192xf32>
    %472 = arith.mulf %471, %470 : vector<16x192xf32>
    %473 = math.tanh %472 : vector<16x192xf32>
    %cst_125 = arith.constant 1.000000e+00 : f32
    %474 = vector.broadcast %cst_125 : f32 to vector<16x192xf32>
    %475 = arith.addf %474, %473 : vector<16x192xf32>
    %cst_126 = arith.constant 5.000000e-01 : f32
    %476 = vector.broadcast %cst_126 : f32 to vector<16x192xf32>
    %477 = arith.mulf %476, %475 : vector<16x192xf32>
    %478 = arith.mulf %465, %477 : vector<16x192xf32>
    %479 = arith.truncf %478 : vector<16x192xf32> to vector<16x192xbf16>
    %cst_127 = arith.constant dense<0.000000e+00> : vector<16x96xf32>
    %480 = tpu.matmul %479, %13, %cst_127 {dimension_numbers = #tpu.dot_dimension_numbers<[1], [0], [0], [1], [0, 0, 1, 1], [], []>} : vector<16x192xbf16>, vector<192x96xbf16>, vector<16x96xf32> -> vector<16x96xf32>
    %481 = arith.addf %353, %480 : vector<16x96xf32>
    %482 = vector.broadcast %21 : vector<1x96xf32> to vector<16x96xf32>
    %483 = arith.addf %481, %482 : vector<16x96xf32>
    %cst_128 = arith.constant dense<0.000000e+00> : vector<16xf32>
    %484 = vector.multi_reduction <add>, %483, %cst_128 [1] : vector<16x96xf32> to vector<16xf32>
    %485 = vector.shape_cast %484 : vector<16xf32> to vector<16x1xf32>
    %cst_129 = arith.constant 9.600000e+01 : f32
    %486 = vector.broadcast %cst_129 : f32 to vector<16x1xf32>
    %487 = arith.divf %485, %486 : vector<16x1xf32>
    %488 = vector.broadcast %487 : vector<16x1xf32> to vector<16x96xf32>
    %489 = arith.subf %483, %488 : vector<16x96xf32>
    %490 = arith.mulf %489, %489 : vector<16x96xf32>
    %cst_130 = arith.constant dense<0.000000e+00> : vector<16xf32>
    %491 = vector.multi_reduction <add>, %490, %cst_130 [1] : vector<16x96xf32> to vector<16xf32>
    %492 = vector.shape_cast %491 : vector<16xf32> to vector<16x1xf32>
    %cst_131 = arith.constant 9.600000e+01 : f32
    %493 = vector.broadcast %cst_131 : f32 to vector<16x1xf32>
    %494 = arith.divf %492, %493 : vector<16x1xf32>
    %495 = vector.broadcast %487 : vector<16x1xf32> to vector<16x96xf32>
    %496 = arith.subf %483, %495 : vector<16x96xf32>
    %cst_132 = arith.constant 9.99999974E-6 : f32
    %497 = vector.broadcast %cst_132 : f32 to vector<16x1xf32>
    %498 = arith.addf %494, %497 : vector<16x1xf32>
    %499 = math.rsqrt %498 : vector<16x1xf32>
    %500 = vector.broadcast %499 : vector<16x1xf32> to vector<16x96xf32>
    %501 = arith.mulf %496, %500 : vector<16x96xf32>
    %502 = vector.broadcast %3 : vector<1x96xf32> to vector<16x96xf32>
    %503 = arith.mulf %501, %502 : vector<16x96xf32>
    %504 = vector.broadcast %4 : vector<1x96xf32> to vector<16x96xf32>
    %505 = arith.addf %503, %504 : vector<16x96xf32>
    %506 = vector.shape_cast %505 : vector<16x96xf32> to vector<2x8x96xf32>
    %507 = vector.shape_cast %2 : vector<8x96xf32> to vector<1x8x96xf32>
    %508 = vector.broadcast %507 : vector<1x8x96xf32> to vector<2x8x96xf32>
    %509 = arith.addf %506, %508 : vector<2x8x96xf32>
    %510 = vector.shape_cast %509 : vector<2x8x96xf32> to vector<16x96xf32>
    %c480 = arith.constant 480 : index
    %c0_133 = arith.constant 0 : index
    %511 = vector.load %arg1[%c480, %c0_133] : memref<1088x288xbf16, #tpu.memory_space<vmem>>, vector<96x288xbf16>
    %c576 = arith.constant 576 : index
    %c0_134 = arith.constant 0 : index
    %512 = vector.load %arg1[%c576, %c0_134] : memref<1088x288xbf16, #tpu.memory_space<vmem>>, vector<96x96xbf16>
    %c672 = arith.constant 672 : index
    %c0_135 = arith.constant 0 : index
    %513 = vector.load %arg1[%c672, %c0_135] : memref<1088x288xbf16, #tpu.memory_space<vmem>>, vector<96x192xbf16>
    %c768 = arith.constant 768 : index
    %c0_136 = arith.constant 0 : index
    %514 = vector.load %arg1[%c768, %c0_136] : memref<1088x288xbf16, #tpu.memory_space<vmem>>, vector<192x96xbf16>
    %c26 = arith.constant 26 : index
    %c0_137 = arith.constant 0 : index
    %515 = vector.load %arg2[%c26, %c0_137] : memref<36x288xf32, #tpu.memory_space<vmem>>, vector<1x96xf32>
    %c27 = arith.constant 27 : index
    %c0_138 = arith.constant 0 : index
    %516 = vector.load %arg2[%c27, %c0_138] : memref<36x288xf32, #tpu.memory_space<vmem>>, vector<1x96xf32>
    %c28 = arith.constant 28 : index
    %c0_139 = arith.constant 0 : index
    %517 = vector.load %arg2[%c28, %c0_139] : memref<36x288xf32, #tpu.memory_space<vmem>>, vector<1x288xf32>
    %c29 = arith.constant 29 : index
    %c0_140 = arith.constant 0 : index
    %518 = vector.load %arg2[%c29, %c0_140] : memref<36x288xf32, #tpu.memory_space<vmem>>, vector<1x96xf32>
    %c30 = arith.constant 30 : index
    %c0_141 = arith.constant 0 : index
    %519 = vector.load %arg2[%c30, %c0_141] : memref<36x288xf32, #tpu.memory_space<vmem>>, vector<1x96xf32>
    %c31 = arith.constant 31 : index
    %c0_142 = arith.constant 0 : index
    %520 = vector.load %arg2[%c31, %c0_142] : memref<36x288xf32, #tpu.memory_space<vmem>>, vector<1x96xf32>
    %c32 = arith.constant 32 : index
    %c0_143 = arith.constant 0 : index
    %521 = vector.load %arg2[%c32, %c0_143] : memref<36x288xf32, #tpu.memory_space<vmem>>, vector<1x192xf32>
    %c33 = arith.constant 33 : index
    %c0_144 = arith.constant 0 : index
    %522 = vector.load %arg2[%c33, %c0_144] : memref<36x288xf32, #tpu.memory_space<vmem>>, vector<1x96xf32>
    %cst_145 = arith.constant dense<0.000000e+00> : vector<16xf32>
    %523 = vector.multi_reduction <add>, %510, %cst_145 [1] : vector<16x96xf32> to vector<16xf32>
    %524 = vector.shape_cast %523 : vector<16xf32> to vector<16x1xf32>
    %cst_146 = arith.constant 9.600000e+01 : f32
    %525 = vector.broadcast %cst_146 : f32 to vector<16x1xf32>
    %526 = arith.divf %524, %525 : vector<16x1xf32>
    %527 = vector.broadcast %526 : vector<16x1xf32> to vector<16x96xf32>
    %528 = arith.subf %510, %527 : vector<16x96xf32>
    %529 = arith.mulf %528, %528 : vector<16x96xf32>
    %cst_147 = arith.constant dense<0.000000e+00> : vector<16xf32>
    %530 = vector.multi_reduction <add>, %529, %cst_147 [1] : vector<16x96xf32> to vector<16xf32>
    %531 = vector.shape_cast %530 : vector<16xf32> to vector<16x1xf32>
    %cst_148 = arith.constant 9.600000e+01 : f32
    %532 = vector.broadcast %cst_148 : f32 to vector<16x1xf32>
    %533 = arith.divf %531, %532 : vector<16x1xf32>
    %534 = vector.broadcast %526 : vector<16x1xf32> to vector<16x96xf32>
    %535 = arith.subf %510, %534 : vector<16x96xf32>
    %cst_149 = arith.constant 9.99999974E-6 : f32
    %536 = vector.broadcast %cst_149 : f32 to vector<16x1xf32>
    %537 = arith.addf %533, %536 : vector<16x1xf32>
    %538 = math.rsqrt %537 : vector<16x1xf32>
    %539 = vector.broadcast %538 : vector<16x1xf32> to vector<16x96xf32>
    %540 = arith.mulf %535, %539 : vector<16x96xf32>
    %541 = vector.broadcast %515 : vector<1x96xf32> to vector<16x96xf32>
    %542 = arith.mulf %540, %541 : vector<16x96xf32>
    %543 = vector.broadcast %516 : vector<1x96xf32> to vector<16x96xf32>
    %544 = arith.addf %542, %543 : vector<16x96xf32>
    %545 = arith.truncf %544 : vector<16x96xf32> to vector<16x96xbf16>
    %cst_150 = arith.constant dense<0.000000e+00> : vector<16x288xf32>
    %546 = tpu.matmul %545, %511, %cst_150 {dimension_numbers = #tpu.dot_dimension_numbers<[1], [0], [0], [1], [0, 0, 1, 1], [], []>} : vector<16x96xbf16>, vector<96x288xbf16>, vector<16x288xf32> -> vector<16x288xf32>
    %547 = vector.broadcast %517 : vector<1x288xf32> to vector<16x288xf32>
    %548 = arith.addf %546, %547 : vector<16x288xf32>
    %549 = vector.extract_strided_slice %548 {offsets = [0, 0], sizes = [16, 96], strides = [1, 1]} : vector<16x288xf32> to vector<16x96xf32>
    %550 = vector.shape_cast %549 : vector<16x96xf32> to vector<2x8x96xf32>
    %551 = arith.truncf %550 : vector<2x8x96xf32> to vector<2x8x96xbf16>
    %552 = vector.extract_strided_slice %548 {offsets = [0, 96], sizes = [16, 96], strides = [1, 1]} : vector<16x288xf32> to vector<16x96xf32>
    %553 = vector.shape_cast %552 : vector<16x96xf32> to vector<2x8x96xf32>
    %554 = arith.truncf %553 : vector<2x8x96xf32> to vector<2x8x96xbf16>
    %555 = vector.extract_strided_slice %548 {offsets = [0, 192], sizes = [16, 96], strides = [1, 1]} : vector<16x288xf32> to vector<16x96xf32>
    %556 = vector.shape_cast %555 : vector<16x96xf32> to vector<2x8x96xf32>
    %557 = arith.truncf %556 : vector<2x8x96xf32> to vector<2x8x96xbf16>
    %558 = vector.extract_strided_slice %551 {offsets = [0, 0, 0], sizes = [2, 8, 24], strides = [1, 1, 1]} : vector<2x8x96xbf16> to vector<2x8x24xbf16>
    %559 = vector.extract_strided_slice %554 {offsets = [0, 0, 0], sizes = [2, 8, 24], strides = [1, 1, 1]} : vector<2x8x96xbf16> to vector<2x8x24xbf16>
    "tpu.trace_start"() <{level = 10 : i32, message = "bqc,bkc->bqk"}> : () -> ()
    %cst_151 = arith.constant dense<0.000000e+00> : vector<2x8x8xf32>
    %560 = tpu.matmul %558, %559, %cst_151 {dimension_numbers = #tpu.dot_dimension_numbers<[2], [2], [1], [1], [0, 0, 0, 1, 1, 1], [0], [0]>} : vector<2x8x24xbf16>, vector<2x8x24xbf16>, vector<2x8x8xf32> -> vector<2x8x8xf32>
    "tpu.trace_stop"() : () -> ()
    %cst_152 = arith.constant 0.204124153 : f32
    %561 = vector.broadcast %cst_152 : f32 to vector<2x8x8xf32>
    %562 = arith.mulf %560, %561 : vector<2x8x8xf32>
    %cst_153 = arith.constant dense<0xFF800000> : vector<2x8xf32>
    %563 = vector.multi_reduction <maximumf>, %562, %cst_153 [2] : vector<2x8x8xf32> to vector<2x8xf32>
    %564 = vector.shape_cast %563 : vector<2x8xf32> to vector<2x8x1xf32>
    %565 = vector.broadcast %564 : vector<2x8x1xf32> to vector<2x8x8xf32>
    %566 = arith.subf %562, %565 : vector<2x8x8xf32>
    %567 = math.exp %566 : vector<2x8x8xf32>
    %cst_154 = arith.constant dense<0.000000e+00> : vector<2x8xf32>
    %568 = vector.multi_reduction <add>, %567, %cst_154 [2] : vector<2x8x8xf32> to vector<2x8xf32>
    %569 = vector.shape_cast %568 : vector<2x8xf32> to vector<2x8x1xf32>
    %570 = vector.broadcast %569 : vector<2x8x1xf32> to vector<2x8x8xf32>
    %571 = arith.divf %567, %570 : vector<2x8x8xf32>
    %572 = arith.truncf %571 : vector<2x8x8xf32> to vector<2x8x8xbf16>
    %573 = vector.extract_strided_slice %557 {offsets = [0, 0, 0], sizes = [2, 8, 24], strides = [1, 1, 1]} : vector<2x8x96xbf16> to vector<2x8x24xbf16>
    "tpu.trace_start"() <{level = 10 : i32, message = "bqk,bkc->bqc"}> : () -> ()
    %cst_155 = arith.constant dense<0.000000e+00> : vector<2x8x24xf32>
    %574 = tpu.matmul %572, %573, %cst_155 {dimension_numbers = #tpu.dot_dimension_numbers<[2], [1], [1], [2], [0, 0, 0, 1, 1, 2], [0], [0]>} : vector<2x8x8xbf16>, vector<2x8x24xbf16>, vector<2x8x24xf32> -> vector<2x8x24xf32>
    "tpu.trace_stop"() : () -> ()
    %575 = vector.extract_strided_slice %551 {offsets = [0, 0, 24], sizes = [2, 8, 24], strides = [1, 1, 1]} : vector<2x8x96xbf16> to vector<2x8x24xbf16>
    %576 = vector.extract_strided_slice %554 {offsets = [0, 0, 24], sizes = [2, 8, 24], strides = [1, 1, 1]} : vector<2x8x96xbf16> to vector<2x8x24xbf16>
    "tpu.trace_start"() <{level = 10 : i32, message = "bqc,bkc->bqk"}> : () -> ()
    %cst_156 = arith.constant dense<0.000000e+00> : vector<2x8x8xf32>
    %577 = tpu.matmul %575, %576, %cst_156 {dimension_numbers = #tpu.dot_dimension_numbers<[2], [2], [1], [1], [0, 0, 0, 1, 1, 1], [0], [0]>} : vector<2x8x24xbf16>, vector<2x8x24xbf16>, vector<2x8x8xf32> -> vector<2x8x8xf32>
    "tpu.trace_stop"() : () -> ()
    %cst_157 = arith.constant 0.204124153 : f32
    %578 = vector.broadcast %cst_157 : f32 to vector<2x8x8xf32>
    %579 = arith.mulf %577, %578 : vector<2x8x8xf32>
    %cst_158 = arith.constant dense<0xFF800000> : vector<2x8xf32>
    %580 = vector.multi_reduction <maximumf>, %579, %cst_158 [2] : vector<2x8x8xf32> to vector<2x8xf32>
    %581 = vector.shape_cast %580 : vector<2x8xf32> to vector<2x8x1xf32>
    %582 = vector.broadcast %581 : vector<2x8x1xf32> to vector<2x8x8xf32>
    %583 = arith.subf %579, %582 : vector<2x8x8xf32>
    %584 = math.exp %583 : vector<2x8x8xf32>
    %cst_159 = arith.constant dense<0.000000e+00> : vector<2x8xf32>
    %585 = vector.multi_reduction <add>, %584, %cst_159 [2] : vector<2x8x8xf32> to vector<2x8xf32>
    %586 = vector.shape_cast %585 : vector<2x8xf32> to vector<2x8x1xf32>
    %587 = vector.broadcast %586 : vector<2x8x1xf32> to vector<2x8x8xf32>
    %588 = arith.divf %584, %587 : vector<2x8x8xf32>
    %589 = arith.truncf %588 : vector<2x8x8xf32> to vector<2x8x8xbf16>
    %590 = vector.extract_strided_slice %557 {offsets = [0, 0, 24], sizes = [2, 8, 24], strides = [1, 1, 1]} : vector<2x8x96xbf16> to vector<2x8x24xbf16>
    "tpu.trace_start"() <{level = 10 : i32, message = "bqk,bkc->bqc"}> : () -> ()
    %cst_160 = arith.constant dense<0.000000e+00> : vector<2x8x24xf32>
    %591 = tpu.matmul %589, %590, %cst_160 {dimension_numbers = #tpu.dot_dimension_numbers<[2], [1], [1], [2], [0, 0, 0, 1, 1, 2], [0], [0]>} : vector<2x8x8xbf16>, vector<2x8x24xbf16>, vector<2x8x24xf32> -> vector<2x8x24xf32>
    "tpu.trace_stop"() : () -> ()
    %592 = vector.extract_strided_slice %551 {offsets = [0, 0, 48], sizes = [2, 8, 24], strides = [1, 1, 1]} : vector<2x8x96xbf16> to vector<2x8x24xbf16>
    %593 = vector.extract_strided_slice %554 {offsets = [0, 0, 48], sizes = [2, 8, 24], strides = [1, 1, 1]} : vector<2x8x96xbf16> to vector<2x8x24xbf16>
    "tpu.trace_start"() <{level = 10 : i32, message = "bqc,bkc->bqk"}> : () -> ()
    %cst_161 = arith.constant dense<0.000000e+00> : vector<2x8x8xf32>
    %594 = tpu.matmul %592, %593, %cst_161 {dimension_numbers = #tpu.dot_dimension_numbers<[2], [2], [1], [1], [0, 0, 0, 1, 1, 1], [0], [0]>} : vector<2x8x24xbf16>, vector<2x8x24xbf16>, vector<2x8x8xf32> -> vector<2x8x8xf32>
    "tpu.trace_stop"() : () -> ()
    %cst_162 = arith.constant 0.204124153 : f32
    %595 = vector.broadcast %cst_162 : f32 to vector<2x8x8xf32>
    %596 = arith.mulf %594, %595 : vector<2x8x8xf32>
    %cst_163 = arith.constant dense<0xFF800000> : vector<2x8xf32>
    %597 = vector.multi_reduction <maximumf>, %596, %cst_163 [2] : vector<2x8x8xf32> to vector<2x8xf32>
    %598 = vector.shape_cast %597 : vector<2x8xf32> to vector<2x8x1xf32>
    %599 = vector.broadcast %598 : vector<2x8x1xf32> to vector<2x8x8xf32>
    %600 = arith.subf %596, %599 : vector<2x8x8xf32>
    %601 = math.exp %600 : vector<2x8x8xf32>
    %cst_164 = arith.constant dense<0.000000e+00> : vector<2x8xf32>
    %602 = vector.multi_reduction <add>, %601, %cst_164 [2] : vector<2x8x8xf32> to vector<2x8xf32>
    %603 = vector.shape_cast %602 : vector<2x8xf32> to vector<2x8x1xf32>
    %604 = vector.broadcast %603 : vector<2x8x1xf32> to vector<2x8x8xf32>
    %605 = arith.divf %601, %604 : vector<2x8x8xf32>
    %606 = arith.truncf %605 : vector<2x8x8xf32> to vector<2x8x8xbf16>
    %607 = vector.extract_strided_slice %557 {offsets = [0, 0, 48], sizes = [2, 8, 24], strides = [1, 1, 1]} : vector<2x8x96xbf16> to vector<2x8x24xbf16>
    "tpu.trace_start"() <{level = 10 : i32, message = "bqk,bkc->bqc"}> : () -> ()
    %cst_165 = arith.constant dense<0.000000e+00> : vector<2x8x24xf32>
    %608 = tpu.matmul %606, %607, %cst_165 {dimension_numbers = #tpu.dot_dimension_numbers<[2], [1], [1], [2], [0, 0, 0, 1, 1, 2], [0], [0]>} : vector<2x8x8xbf16>, vector<2x8x24xbf16>, vector<2x8x24xf32> -> vector<2x8x24xf32>
    "tpu.trace_stop"() : () -> ()
    %609 = vector.extract_strided_slice %551 {offsets = [0, 0, 72], sizes = [2, 8, 24], strides = [1, 1, 1]} : vector<2x8x96xbf16> to vector<2x8x24xbf16>
    %610 = vector.extract_strided_slice %554 {offsets = [0, 0, 72], sizes = [2, 8, 24], strides = [1, 1, 1]} : vector<2x8x96xbf16> to vector<2x8x24xbf16>
    "tpu.trace_start"() <{level = 10 : i32, message = "bqc,bkc->bqk"}> : () -> ()
    %cst_166 = arith.constant dense<0.000000e+00> : vector<2x8x8xf32>
    %611 = tpu.matmul %609, %610, %cst_166 {dimension_numbers = #tpu.dot_dimension_numbers<[2], [2], [1], [1], [0, 0, 0, 1, 1, 1], [0], [0]>} : vector<2x8x24xbf16>, vector<2x8x24xbf16>, vector<2x8x8xf32> -> vector<2x8x8xf32>
    "tpu.trace_stop"() : () -> ()
    %cst_167 = arith.constant 0.204124153 : f32
    %612 = vector.broadcast %cst_167 : f32 to vector<2x8x8xf32>
    %613 = arith.mulf %611, %612 : vector<2x8x8xf32>
    %cst_168 = arith.constant dense<0xFF800000> : vector<2x8xf32>
    %614 = vector.multi_reduction <maximumf>, %613, %cst_168 [2] : vector<2x8x8xf32> to vector<2x8xf32>
    %615 = vector.shape_cast %614 : vector<2x8xf32> to vector<2x8x1xf32>
    %616 = vector.broadcast %615 : vector<2x8x1xf32> to vector<2x8x8xf32>
    %617 = arith.subf %613, %616 : vector<2x8x8xf32>
    %618 = math.exp %617 : vector<2x8x8xf32>
    %cst_169 = arith.constant dense<0.000000e+00> : vector<2x8xf32>
    %619 = vector.multi_reduction <add>, %618, %cst_169 [2] : vector<2x8x8xf32> to vector<2x8xf32>
    %620 = vector.shape_cast %619 : vector<2x8xf32> to vector<2x8x1xf32>
    %621 = vector.broadcast %620 : vector<2x8x1xf32> to vector<2x8x8xf32>
    %622 = arith.divf %618, %621 : vector<2x8x8xf32>
    %623 = arith.truncf %622 : vector<2x8x8xf32> to vector<2x8x8xbf16>
    %624 = vector.extract_strided_slice %557 {offsets = [0, 0, 72], sizes = [2, 8, 24], strides = [1, 1, 1]} : vector<2x8x96xbf16> to vector<2x8x24xbf16>
    "tpu.trace_start"() <{level = 10 : i32, message = "bqk,bkc->bqc"}> : () -> ()
    %cst_170 = arith.constant dense<0.000000e+00> : vector<2x8x24xf32>
    %625 = tpu.matmul %623, %624, %cst_170 {dimension_numbers = #tpu.dot_dimension_numbers<[2], [1], [1], [2], [0, 0, 0, 1, 1, 2], [0], [0]>} : vector<2x8x8xbf16>, vector<2x8x24xbf16>, vector<2x8x24xf32> -> vector<2x8x24xf32>
    "tpu.trace_stop"() : () -> ()
    %626 = tpu.concatenate %574, %591, %608, %625 in 2 : vector<2x8x24xf32>, vector<2x8x24xf32>, vector<2x8x24xf32>, vector<2x8x24xf32> -> vector<2x8x96xf32>
    %627 = vector.shape_cast %626 : vector<2x8x96xf32> to vector<16x96xf32>
    %628 = arith.truncf %627 : vector<16x96xf32> to vector<16x96xbf16>
    %cst_171 = arith.constant dense<0.000000e+00> : vector<16x96xf32>
    %629 = tpu.matmul %628, %512, %cst_171 {dimension_numbers = #tpu.dot_dimension_numbers<[1], [0], [0], [1], [0, 0, 1, 1], [], []>} : vector<16x96xbf16>, vector<96x96xbf16>, vector<16x96xf32> -> vector<16x96xf32>
    %630 = arith.addf %510, %629 : vector<16x96xf32>
    %631 = vector.broadcast %518 : vector<1x96xf32> to vector<16x96xf32>
    %632 = arith.addf %630, %631 : vector<16x96xf32>
    %cst_172 = arith.constant dense<0.000000e+00> : vector<16xf32>
    %633 = vector.multi_reduction <add>, %632, %cst_172 [1] : vector<16x96xf32> to vector<16xf32>
    %634 = vector.shape_cast %633 : vector<16xf32> to vector<16x1xf32>
    %cst_173 = arith.constant 9.600000e+01 : f32
    %635 = vector.broadcast %cst_173 : f32 to vector<16x1xf32>
    %636 = arith.divf %634, %635 : vector<16x1xf32>
    %637 = vector.broadcast %636 : vector<16x1xf32> to vector<16x96xf32>
    %638 = arith.subf %632, %637 : vector<16x96xf32>
    %639 = arith.mulf %638, %638 : vector<16x96xf32>
    %cst_174 = arith.constant dense<0.000000e+00> : vector<16xf32>
    %640 = vector.multi_reduction <add>, %639, %cst_174 [1] : vector<16x96xf32> to vector<16xf32>
    %641 = vector.shape_cast %640 : vector<16xf32> to vector<16x1xf32>
    %cst_175 = arith.constant 9.600000e+01 : f32
    %642 = vector.broadcast %cst_175 : f32 to vector<16x1xf32>
    %643 = arith.divf %641, %642 : vector<16x1xf32>
    %644 = vector.broadcast %636 : vector<16x1xf32> to vector<16x96xf32>
    %645 = arith.subf %632, %644 : vector<16x96xf32>
    %cst_176 = arith.constant 9.99999974E-6 : f32
    %646 = vector.broadcast %cst_176 : f32 to vector<16x1xf32>
    %647 = arith.addf %643, %646 : vector<16x1xf32>
    %648 = math.rsqrt %647 : vector<16x1xf32>
    %649 = vector.broadcast %648 : vector<16x1xf32> to vector<16x96xf32>
    %650 = arith.mulf %645, %649 : vector<16x96xf32>
    %651 = vector.broadcast %519 : vector<1x96xf32> to vector<16x96xf32>
    %652 = arith.mulf %650, %651 : vector<16x96xf32>
    %653 = vector.broadcast %520 : vector<1x96xf32> to vector<16x96xf32>
    %654 = arith.addf %652, %653 : vector<16x96xf32>
    %655 = arith.truncf %654 : vector<16x96xf32> to vector<16x96xbf16>
    %cst_177 = arith.constant dense<0.000000e+00> : vector<16x192xf32>
    %656 = tpu.matmul %655, %513, %cst_177 {dimension_numbers = #tpu.dot_dimension_numbers<[1], [0], [0], [1], [0, 0, 1, 1], [], []>} : vector<16x96xbf16>, vector<96x192xbf16>, vector<16x192xf32> -> vector<16x192xf32>
    %657 = vector.broadcast %521 : vector<1x192xf32> to vector<16x192xf32>
    %658 = arith.addf %656, %657 : vector<16x192xf32>
    %659 = arith.mulf %658, %658 : vector<16x192xf32>
    %660 = arith.mulf %658, %659 : vector<16x192xf32>
    %cst_178 = arith.constant 4.471500e-02 : f32
    %661 = vector.broadcast %cst_178 : f32 to vector<16x192xf32>
    %662 = arith.mulf %661, %660 : vector<16x192xf32>
    %663 = arith.addf %658, %662 : vector<16x192xf32>
    %cst_179 = arith.constant 0.797884583 : f32
    %664 = vector.broadcast %cst_179 : f32 to vector<16x192xf32>
    %665 = arith.mulf %664, %663 : vector<16x192xf32>
    %666 = math.tanh %665 : vector<16x192xf32>
    %cst_180 = arith.constant 1.000000e+00 : f32
    %667 = vector.broadcast %cst_180 : f32 to vector<16x192xf32>
    %668 = arith.addf %667, %666 : vector<16x192xf32>
    %cst_181 = arith.constant 5.000000e-01 : f32
    %669 = vector.broadcast %cst_181 : f32 to vector<16x192xf32>
    %670 = arith.mulf %669, %668 : vector<16x192xf32>
    %671 = arith.mulf %658, %670 : vector<16x192xf32>
    %672 = arith.truncf %671 : vector<16x192xf32> to vector<16x192xbf16>
    %cst_182 = arith.constant dense<0.000000e+00> : vector<16x96xf32>
    %673 = tpu.matmul %672, %514, %cst_182 {dimension_numbers = #tpu.dot_dimension_numbers<[1], [0], [0], [1], [0, 0, 1, 1], [], []>} : vector<16x192xbf16>, vector<192x96xbf16>, vector<16x96xf32> -> vector<16x96xf32>
    %674 = arith.addf %632, %673 : vector<16x96xf32>
    %675 = vector.broadcast %522 : vector<1x96xf32> to vector<16x96xf32>
    %676 = arith.addf %674, %675 : vector<16x96xf32>
    %677 = arith.addf %676, %505 : vector<16x96xf32>
    %cst_183 = arith.constant dense<0.000000e+00> : vector<16xf32>
    %678 = vector.multi_reduction <add>, %677, %cst_183 [1] : vector<16x96xf32> to vector<16xf32>
    %679 = vector.shape_cast %678 : vector<16xf32> to vector<16x1xf32>
    %cst_184 = arith.constant 9.600000e+01 : f32
    %680 = vector.broadcast %cst_184 : f32 to vector<16x1xf32>
    %681 = arith.divf %679, %680 : vector<16x1xf32>
    %682 = vector.broadcast %681 : vector<16x1xf32> to vector<16x96xf32>
    %683 = arith.subf %677, %682 : vector<16x96xf32>
    %684 = arith.mulf %683, %683 : vector<16x96xf32>
    %cst_185 = arith.constant dense<0.000000e+00> : vector<16xf32>
    %685 = vector.multi_reduction <add>, %684, %cst_185 [1] : vector<16x96xf32> to vector<16xf32>
    %686 = vector.shape_cast %685 : vector<16xf32> to vector<16x1xf32>
    %cst_186 = arith.constant 9.600000e+01 : f32
    %687 = vector.broadcast %cst_186 : f32 to vector<16x1xf32>
    %688 = arith.divf %686, %687 : vector<16x1xf32>
    %689 = vector.broadcast %681 : vector<16x1xf32> to vector<16x96xf32>
    %690 = arith.subf %677, %689 : vector<16x96xf32>
    %cst_187 = arith.constant 9.99999974E-6 : f32
    %691 = vector.broadcast %cst_187 : f32 to vector<16x1xf32>
    %692 = arith.addf %688, %691 : vector<16x1xf32>
    %693 = math.rsqrt %692 : vector<16x1xf32>
    %694 = vector.broadcast %693 : vector<16x1xf32> to vector<16x96xf32>
    %695 = arith.mulf %690, %694 : vector<16x96xf32>
    %696 = vector.broadcast %3 : vector<1x96xf32> to vector<16x96xf32>
    %697 = arith.mulf %695, %696 : vector<16x96xf32>
    %698 = vector.broadcast %4 : vector<1x96xf32> to vector<16x96xf32>
    %699 = arith.addf %697, %698 : vector<16x96xf32>
    %c960 = arith.constant 960 : index
    %c0_188 = arith.constant 0 : index
    %700 = vector.load %arg1[%c960, %c0_188] : memref<1088x288xbf16, #tpu.memory_space<vmem>>, vector<96x256xbf16>
    %c1056 = arith.constant 1056 : index
    %c0_189 = arith.constant 0 : index
    %701 = vector.load %arg1[%c1056, %c0_189] : memref<1088x288xbf16, #tpu.memory_space<vmem>>, vector<32x4xbf16>
    %c34 = arith.constant 34 : index
    %c0_190 = arith.constant 0 : index
    %702 = vector.load %arg2[%c34, %c0_190] : memref<36x288xf32, #tpu.memory_space<vmem>>, vector<1x32xf32>
    %c35 = arith.constant 35 : index
    %c0_191 = arith.constant 0 : index
    %703 = vector.load %arg2[%c35, %c0_191] : memref<36x288xf32, #tpu.memory_space<vmem>>, vector<1x4xf32>
    %704 = arith.truncf %699 : vector<16x96xf32> to vector<16x96xbf16>
    %cst_192 = arith.constant dense<0.000000e+00> : vector<16x256xf32>
    %705 = tpu.matmul %704, %700, %cst_192 {dimension_numbers = #tpu.dot_dimension_numbers<[1], [0], [0], [1], [0, 0, 1, 1], [], []>} : vector<16x96xbf16>, vector<96x256xbf16>, vector<16x256xf32> -> vector<16x256xf32>
    %706 = vector.shape_cast %705 : vector<16x256xf32> to vector<2x8x256xf32>
    %707 = vector.extract_strided_slice %706 {offsets = [0, 0, 0], sizes = [2, 1, 32], strides = [1, 1, 1]} : vector<2x8x256xf32> to vector<2x1x32xf32>
    %708 = vector.shape_cast %707 : vector<2x1x32xf32> to vector<2x32xf32>
    %709 = vector.broadcast %702 : vector<1x32xf32> to vector<2x32xf32>
    %710 = arith.addf %709, %708 : vector<2x32xf32>
    %711 = vector.extract_strided_slice %706 {offsets = [0, 1, 32], sizes = [2, 1, 32], strides = [1, 1, 1]} : vector<2x8x256xf32> to vector<2x1x32xf32>
    %712 = vector.shape_cast %711 : vector<2x1x32xf32> to vector<2x32xf32>
    %713 = arith.addf %710, %712 : vector<2x32xf32>
    %714 = vector.extract_strided_slice %706 {offsets = [0, 2, 64], sizes = [2, 1, 32], strides = [1, 1, 1]} : vector<2x8x256xf32> to vector<2x1x32xf32>
    %715 = vector.shape_cast %714 : vector<2x1x32xf32> to vector<2x32xf32>
    %716 = arith.addf %713, %715 : vector<2x32xf32>
    %717 = vector.extract_strided_slice %706 {offsets = [0, 3, 96], sizes = [2, 1, 32], strides = [1, 1, 1]} : vector<2x8x256xf32> to vector<2x1x32xf32>
    %718 = vector.shape_cast %717 : vector<2x1x32xf32> to vector<2x32xf32>
    %719 = arith.addf %716, %718 : vector<2x32xf32>
    %720 = vector.extract_strided_slice %706 {offsets = [0, 4, 128], sizes = [2, 1, 32], strides = [1, 1, 1]} : vector<2x8x256xf32> to vector<2x1x32xf32>
    %721 = vector.shape_cast %720 : vector<2x1x32xf32> to vector<2x32xf32>
    %722 = arith.addf %719, %721 : vector<2x32xf32>
    %723 = vector.extract_strided_slice %706 {offsets = [0, 5, 160], sizes = [2, 1, 32], strides = [1, 1, 1]} : vector<2x8x256xf32> to vector<2x1x32xf32>
    %724 = vector.shape_cast %723 : vector<2x1x32xf32> to vector<2x32xf32>
    %725 = arith.addf %722, %724 : vector<2x32xf32>
    %726 = vector.extract_strided_slice %706 {offsets = [0, 6, 192], sizes = [2, 1, 32], strides = [1, 1, 1]} : vector<2x8x256xf32> to vector<2x1x32xf32>
    %727 = vector.shape_cast %726 : vector<2x1x32xf32> to vector<2x32xf32>
    %728 = arith.addf %725, %727 : vector<2x32xf32>
    %729 = vector.extract_strided_slice %706 {offsets = [0, 7, 224], sizes = [2, 1, 32], strides = [1, 1, 1]} : vector<2x8x256xf32> to vector<2x1x32xf32>
    %730 = vector.shape_cast %729 : vector<2x1x32xf32> to vector<2x32xf32>
    %731 = arith.addf %728, %730 : vector<2x32xf32>
    %cst_193 = arith.constant 0.000000e+00 : f32
    %732 = vector.broadcast %cst_193 : f32 to vector<2x32xf32>
    %733 = arith.maximumf %731, %732 : vector<2x32xf32>
    %734 = arith.truncf %733 : vector<2x32xf32> to vector<2x32xbf16>
    %cst_194 = arith.constant dense<0.000000e+00> : vector<2x4xf32>
    %735 = tpu.matmul %734, %701, %cst_194 {dimension_numbers = #tpu.dot_dimension_numbers<[1], [0], [0], [1], [0, 0, 1, 1], [], []>} : vector<2x32xbf16>, vector<32x4xbf16>, vector<2x4xf32> -> vector<2x4xf32>
    %736 = vector.broadcast %703 : vector<1x4xf32> to vector<2x4xf32>
    %737 = arith.addf %735, %736 : vector<2x4xf32>
    %c0_195 = arith.constant 0 : index
    %c0_196 = arith.constant 0 : index
    %738 = vector.load %arg3[%c0_195, %c0_196] : memref<2x4xf32, #tpu.memory_space<vmem>>, vector<2x4xf32>
    tpu.vector_store %arg3[%c0_195, %c0_196], %737 {strides = array<i32>} : memref<2x4xf32, #tpu.memory_space<vmem>>, vector<2x4xf32>,
    return
  }
}

</mosaic_0001>

<llo_original>
// kernel: transformer_forward.1
$region0: #{transformer_forward.1}
  #allocation0 [shape = 'u32[]', space=smem, size = 0x4, offset = 0x4, fixed_abs, tag = 'smem constant byte address 0x4 - core index']
  #allocation1 [shape = 'u32[72,128]{1,0:T(1,128)}', space=vmem, size = 0x9000, scoped, tag = 'internal scratch']
  %s0 = inlined_call_operand.vmem [shape: f32[16,96], index: 0, kind: input, shape index: {}]
  %s1 = inlined_call_operand.vmem [shape: bf16[1088,288], index: 1, kind: input, shape index: {}]
  %s2 = inlined_call_operand.vmem [shape: f32[36,288], index: 2, kind: input, shape index: {}]
  %s3 = inlined_call_operand.hbm [shape: f32[2,4], index: 3, kind: output, shape index: {}]
  %s4 = sld [smem:[#allocation0]]
  $region22: #{transformer_forward.1} parent=0
    _
  %s6 = ssub.s32 1, %s4
  %s7 = scalar_select 0, %s6, %s4
  $region1: #{transformer_forward.1} parent=0
    #allocation2 [shape = 'u8[1024]{0}', space=vmem, size = 0x400, scoped, tag = 'output window, operand 0, single buffered']
    #allocation3 [shape = 's32[1]{0}', space=sflag, size = 0x4, scoped, tag = 'scoped memory for transformer_forward.1']
    %8 = vsyncpa [#allocation3], 0
    // Predicated region
    $region2: #{transformer_forward.1} parent=1 // pred_check
      _
    $region3: #{transformer_forward.1} parent=1 // pred_check_branch
      %10 = sbr.rel (0) target = $region5
    $region4: #{transformer_forward.1} parent=1 // pred_region
      _
    $region5: #{transformer_forward.1} parent=1 // pred_fallthru
      _
    // Predicated region
    $region6: #{transformer_forward.1} parent=1 // pred_check
      _
    $region7: #{transformer_forward.1} parent=1 // pred_check_branch
      %12 = sbr.rel (0) target = $region9
    $region8: #{transformer_forward.1} parent=1 // pred_region
      _
    $region9: #{transformer_forward.1} parent=1 // pred_fallthru
      _
    // Predicated region
    $region10: #{transformer_forward.1} parent=1 // pred_check
      _
    $region11: #{transformer_forward.1} parent=1 // pred_check_branch
      %14 = sbr.rel (0) target = $region13
    $region12: #{transformer_forward.1} parent=1 // pred_region
      _
    $region13: #{transformer_forward.1} parent=1 // pred_fallthru
      _
    %v16 = vld [vmem:[%s0] sm:$0xff]
    %v17 = vld [vmem:[%s0 + $0x8] sm:$0xff]
    %v18 = vld [vmem:[%s2] sm:$0xff]
    %v19 = vld [vmem:[%s2 + $0x18] sm:$0xff]
    %v20 = vld [vmem:[%s2 + $0x30] ss:$0 sm:$0xff]
    %v21 = vld [vmem:[%s2 + $0x31] ss:$0 sm:$0xff]
    %v22 = vadd.f32 %v16, %v18
    %v23 = vadd.f32 %v17, %v18
    %v24 = vld [vmem:[%s1] sm:$0xff]
    %v25 = vld [vmem:[%s1 + $0x8] sm:$0xf]
    %v26 = vld [vmem:[%s1 + $0xc] sm:$0xff]
    %v27 = vld [vmem:[%s1 + $0x14] sm:$0xf]
    %v28 = vld [vmem:[%s1 + $0x18] sm:$0xff]
    %v29 = vld [vmem:[%s1 + $0x20] sm:$0xf]
    %v30 = vld [vmem:[%s1 + $0x24] sm:$0xff]
    %v31 = vld [vmem:[%s1 + $0x2c] sm:$0xf]
    %v32 = vld [vmem:[%s1 + $0x30] sm:$0xff]
    %v33 = vld [vmem:[%s1 + $0x38] sm:$0xf]
    %v34 = vld [vmem:[%s1 + $0x3c] sm:$0xff]
    %v35 = vld [vmem:[%s1 + $0x44] sm:$0xf]
    %v36 = vld [vmem:[%s1 + $0x48] sm:$0xff]
    %v37 = vld [vmem:[%s1 + $0x50] sm:$0xf]
    %v38 = vld [vmem:[%s1 + $0x54] sm:$0xff]
    %v39 = vld [vmem:[%s1 + $0x5c] sm:$0xf]
    %v40 = vld [vmem:[%s1 + $0x60] sm:$0xff]
    %v41 = vld [vmem:[%s1 + $0x68] sm:$0xf]
    %v42 = vld [vmem:[%s1 + $0x6c] sm:$0xff]
    %v43 = vld [vmem:[%s1 + $0x74] sm:$0xf]
    %v44 = vld [vmem:[%s1 + $0x78] sm:$0xff]
    %v45 = vld [vmem:[%s1 + $0x80] sm:$0xf]
    %v46 = vld [vmem:[%s1 + $0x84] sm:$0xff]
    %v47 = vld [vmem:[%s1 + $0x8c] sm:$0xf]
    %v48 = vld [vmem:[%s1 + $0x90] sm:$0xf]
    %v49 = vld [vmem:[%s1 + $0x9c] sm:$0xf]
    %v50 = vld [vmem:[%s1 + $0xa8] sm:$0xf]
    %v51 = vld [vmem:[%s1 + $0xb4] sm:$0xf]
    %v52 = vld [vmem:[%s1 + $0xc0] sm:$0xf]
    %v53 = vld [vmem:[%s1 + $0xcc] sm:$0xf]
    %v54 = vld [vmem:[%s1 + $0xd8] sm:$0xf]
    %v55 = vld [vmem:[%s1 + $0xe4] sm:$0xf]
    %v56 = vld [vmem:[%s1 + $0xf0] sm:$0xf]
    %v57 = vld [vmem:[%s1 + $0xfc] sm:$0xf]
    %v58 = vld [vmem:[%s1 + $0x108] sm:$0xf]
    %v59 = vld [vmem:[%s1 + $0x114] sm:$0xf]
    %v60 = vld [vmem:[%s1 + $0x120] sm:$0xff]
    %v61 = vld [vmem:[%s1 + $0x12c] sm:$0xff]
    %v62 = vld [vmem:[%s1 + $0x138] sm:$0xff]
    %v63 = vld [vmem:[%s1 + $0x144] sm:$0xff]
    %v64 = vld [vmem:[%s1 + $0x150] sm:$0xff]
    %v65 = vld [vmem:[%s1 + $0x15c] sm:$0xff]
    %v66 = vld [vmem:[%s1 + $0x168] sm:$0xff]
    %v67 = vld [vmem:[%s1 + $0x174] sm:$0xff]
    %v68 = vld [vmem:[%s1 + $0x180] sm:$0xff]
    %v69 = vld [vmem:[%s1 + $0x18c] sm:$0xff]
    %v70 = vld [vmem:[%s1 + $0x198] sm:$0xff]
    %v71 = vld [vmem:[%s1 + $0x1a4] sm:$0xff]
    %v72 = vld [vmem:[%s1 + $0x1b0] sm:$0xf]
    %v73 = vld [vmem:[%s1 + $0x1bc] sm:$0xf]
    %v74 = vld [vmem:[%s1 + $0x1c8] sm:$0xf]
    %v75 = vld [vmem:[%s1 + $0x1d4] sm:$0xf]
    %v76 = vld [vmem:[%s1 + $0x1e0] sm:$0xf]
    %v77 = vld [vmem:[%s1 + $0x1ec] sm:$0xf]
    %v78 = vld [vmem:[%s1 + $0x1f8] sm:$0xf]
    %v79 = vld [vmem:[%s1 + $0x204] sm:$0xf]
    %v80 = vld [vmem:[%s1 + $0x210] sm:$0xf]
    %v81 = vld [vmem:[%s1 + $0x21c] sm:$0xf]
    %v82 = vld [vmem:[%s1 + $0x228] sm:$0xf]
    %v83 = vld [vmem:[%s1 + $0x234] sm:$0xf]
    %v84 = vld [vmem:[%s1 + $0x240] sm:$0xf]
    %v85 = vld [vmem:[%s1 + $0x24c] sm:$0xf]
    %v86 = vld [vmem:[%s1 + $0x258] sm:$0xf]
    %v87 = vld [vmem:[%s1 + $0x264] sm:$0xf]
    %v88 = vld [vmem:[%s1 + $0x270] sm:$0xf]
    %v89 = vld [vmem:[%s1 + $0x27c] sm:$0xf]
    %v90 = vld [vmem:[%s1 + $0x288] sm:$0xf]
    %v91 = vld [vmem:[%s1 + $0x294] sm:$0xf]
    %v92 = vld [vmem:[%s1 + $0x2a0] sm:$0xf]
    %v93 = vld [vmem:[%s1 + $0x2ac] sm:$0xf]
    %v94 = vld [vmem:[%s1 + $0x2b8] sm:$0xf]
    %v95 = vld [vmem:[%s1 + $0x2c4] sm:$0xf]
    %v96 = vld [vmem:[%s2 + $0x32] ss:$0 sm:$0xff]
    %v97 = vld [vmem:[%s2 + $0x33] ss:$0 sm:$0xff]
    %s98 = scalar_lea.vmem %s2, 52
    %v99 = vld [vmem:[%s98] ss:$8 sm:$0x7]
    %v100 = vld [vmem:[%s2 + $0x35] ss:$0 sm:$0xff]
    %v101 = vld [vmem:[%s2 + $0x36] ss:$0 sm:$0xff]
    %v102 = vld [vmem:[%s2 + $0x37] ss:$0 sm:$0xff]
    %s103 = scalar_lea.vmem %s2, 72
    %v104 = vld [vmem:[%s103] ss:$8 sm:$0x3]
    %v105 = vld [vmem:[%s2 + $0x49] ss:$0 sm:$0xff]
    %v106 = vlaneseq
    %v107 = vand.u32 %v106, 127
    %vm108 = vcmp.ge.s32.totalorder %v107, 0
    %vm109 = vcmp.lt.s32.totalorder %v107, 32
    %vm110 = vmand %vm108, %vm109
    %v111 = vsel %vm110, 1, 0
    %v112 = vcvt.s32.f32 %v111
    %v113 = vmul.f32 %v22, %v112
    %v114 = vmul.f32 %v23, %v112
    %vm115 = vcmask 785408
    %v116 = vsel %vm115, %v113, 0.0
    %117 = vadd.xlane.f32.xlu0 %v116
    %v118 = vpop.xlane.xlu0 %117
    %v119 = vsel %vm115, %v114, 0.0
    %120 = vadd.xlane.f32.xlu0 %v119
    %v121 = vpop.xlane.xlu0 %120
    %v122 = vmul.f32 %v118, 0.03125
    %v123 = vmul.f32 %v121, 0.03125
    %v124 = vsub.f32 %v22, %v122
    %v125 = vsub.f32 %v23, %v123
    %v126 = vmul.f32 %v124, %v124
    %v127 = vmul.f32 %v125, %v125
    %v128 = vmul.f32 %v126, %v112
    %v129 = vmul.f32 %v127, %v112
    %v130 = vsel %vm115, %v128, 0.0
    %131 = vadd.xlane.f32.xlu0 %v130
    %v132 = vpop.xlane.xlu0 %131
    %v133 = vsel %vm115, %v129, 0.0
    %134 = vadd.xlane.f32.xlu0 %v133
    %v135 = vpop.xlane.xlu0 %134
    %v136 = vmul.f32 %v132, 0.03125
    %v137 = vmul.f32 %v135, 0.03125
    %v138 = vmul.f32 %v122, %v112
    %v139 = vmul.f32 %v123, %v112
    %v140 = vadd.f32 %v138, 0.0
    %v141 = vadd.f32 %v139, 0.0
    %v142 = vadd.f32 %v136, 1e-05
    %v143 = vadd.f32 %v137, 1e-05
    %v144 = vrsqrt.pop %v142
    %v145 = vmul.f32 %v144, %v142
    %v146 = vmul.f32 %v145, %v144
    %v147 = vmul.f32 0.5, %v146
    %v148 = vsub.f32 1.5, %v147
    %v149 = vmul.f32 %v144, %v148
    %vm150 = vweird.f32 %v142
    %vm151 = vweird.f32 %v144
    %vm152 = vmor %vm150, %vm151
    %v153 = vsel %vm152, %v144, %v149
    %v154 = vrsqrt.pop %v143
    %v155 = vmul.f32 %v154, %v143
    %v156 = vmul.f32 %v155, %v154
    %v157 = vmul.f32 0.5, %v156
    %v158 = vsub.f32 1.5, %v157
    %v159 = vmul.f32 %v154, %v158
    %vm160 = vweird.f32 %v143
    %vm161 = vweird.f32 %v154
    %vm162 = vmor %vm160, %vm161
    %v163 = vsel %vm162, %v154, %v159
    %v164 = vmul.f32 %v153, %v112
    %v165 = vmul.f32 %v163, %v112
    %v166 = vadd.f32 %v164, 0.0
    %v167 = vadd.f32 %v165, 0.0
    %vm168 = vcmp.ge.s32.totalorder %v107, 32
    %vm169 = vcmp.lt.s32.totalorder %v107, 64
    %vm170 = vmand %vm168, %vm169
    %v171 = vsel %vm170, 1, 0
    %v172 = vcvt.s32.f32 %v171
    %v173 = vmul.f32 %v22, %v172
    %v174 = vmul.f32 %v23, %v172
    %v175 = vsel %vm115, %v173, 0.0
    %176 = vadd.xlane.f32.xlu0 %v175
    %v177 = vpop.xlane.xlu0 %176
    %v178 = vsel %vm115, %v174, 0.0
    %179 = vadd.xlane.f32.xlu0 %v178
    %v180 = vpop.xlane.xlu0 %179
    %v181 = vmul.f32 %v177, 0.03125
    %v182 = vmul.f32 %v180, 0.03125
    %v183 = vsub.f32 %v22, %v181
    %v184 = vsub.f32 %v23, %v182
    %v185 = vmul.f32 %v183, %v183
    %v186 = vmul.f32 %v184, %v184
    %v187 = vmul.f32 %v185, %v172
    %v188 = vmul.f32 %v186, %v172
    %v189 = vsel %vm115, %v187, 0.0
    %190 = vadd.xlane.f32.xlu0 %v189
    %v191 = vpop.xlane.xlu0 %190
    %v192 = vsel %vm115, %v188, 0.0
    %193 = vadd.xlane.f32.xlu0 %v192
    %v194 = vpop.xlane.xlu0 %193
    %v195 = vmul.f32 %v191, 0.03125
    %v196 = vmul.f32 %v194, 0.03125
    %v197 = vmul.f32 %v181, %v172
    %v198 = vmul.f32 %v182, %v172
    %v199 = vadd.f32 %v140, %v197
    %v200 = vadd.f32 %v141, %v198
    %v201 = vadd.f32 %v195, 1e-05
    %v202 = vadd.f32 %v196, 1e-05
    %v203 = vrsqrt.pop %v201
    %v204 = vmul.f32 %v203, %v201
    %v205 = vmul.f32 %v204, %v203
    %v206 = vmul.f32 0.5, %v205
    %v207 = vsub.f32 1.5, %v206
    %v208 = vmul.f32 %v203, %v207
    %vm209 = vweird.f32 %v201
    %vm210 = vweird.f32 %v203
    %vm211 = vmor %vm209, %vm210
    %v212 = vsel %vm211, %v203, %v208
    %v213 = vrsqrt.pop %v202
    %v214 = vmul.f32 %v213, %v202
    %v215 = vmul.f32 %v214, %v213
    %v216 = vmul.f32 0.5, %v215
    %v217 = vsub.f32 1.5, %v216
    %v218 = vmul.f32 %v213, %v217
    %vm219 = vweird.f32 %v202
    %vm220 = vweird.f32 %v213
    %vm221 = vmor %vm219, %vm220
    %v222 = vsel %vm221, %v213, %v218
    %v223 = vmul.f32 %v212, %v172
    %v224 = vmul.f32 %v222, %v172
    %v225 = vadd.f32 %v166, %v223
    %v226 = vadd.f32 %v167, %v224
    %vm227 = vcmp.ge.s32.totalorder %v107, 64
    %vm228 = vcmp.lt.s32.totalorder %v107, 96
    %vm229 = vmand %vm227, %vm228
    %v230 = vsel %vm229, 1, 0
    %v231 = vcvt.s32.f32 %v230
    %v232 = vmul.f32 %v22, %v231
    %v233 = vmul.f32 %v23, %v231
    %v234 = vsel %vm115, %v232, 0.0
    %235 = vadd.xlane.f32.xlu0 %v234
    %v236 = vpop.xlane.xlu0 %235
    %v237 = vsel %vm115, %v233, 0.0
    %238 = vadd.xlane.f32.xlu0 %v237
    %v239 = vpop.xlane.xlu0 %238
    %v240 = vmul.f32 %v236, 0.03125
    %v241 = vmul.f32 %v239, 0.03125
    %v242 = vsub.f32 %v22, %v240
    %v243 = vsub.f32 %v23, %v241
    %v244 = vmul.f32 %v242, %v242
    %v245 = vmul.f32 %v243, %v243
    %v246 = vmul.f32 %v244, %v231
    %v247 = vmul.f32 %v245, %v231
    %v248 = vsel %vm115, %v246, 0.0
    %249 = vadd.xlane.f32.xlu0 %v248
    %v250 = vpop.xlane.xlu0 %249
    %v251 = vsel %vm115, %v247, 0.0
    %252 = vadd.xlane.f32.xlu0 %v251
    %v253 = vpop.xlane.xlu0 %252
    %v254 = vmul.f32 %v250, 0.03125
    %v255 = vmul.f32 %v253, 0.03125
    %v256 = vmul.f32 %v240, %v231
    %v257 = vmul.f32 %v241, %v231
    %v258 = vadd.f32 %v199, %v256
    %v259 = vadd.f32 %v200, %v257
    %v260 = vadd.f32 %v254, 1e-05
    %v261 = vadd.f32 %v255, 1e-05
    %v262 = vrsqrt.pop %v260
    %v263 = vmul.f32 %v262, %v260
    %v264 = vmul.f32 %v263, %v262
    %v265 = vmul.f32 0.5, %v264
    %v266 = vsub.f32 1.5, %v265
    %v267 = vmul.f32 %v262, %v266
    %vm268 = vweird.f32 %v260
    %vm269 = vweird.f32 %v262
    %vm270 = vmor %vm268, %vm269
    %v271 = vsel %vm270, %v262, %v267
    %v272 = vrsqrt.pop %v261
    %v273 = vmul.f32 %v272, %v261
    %v274 = vmul.f32 %v273, %v272
    %v275 = vmul.f32 0.5, %v274
    %v276 = vsub.f32 1.5, %v275
    %v277 = vmul.f32 %v272, %v276
    %vm278 = vweird.f32 %v261
    %vm279 = vweird.f32 %v272
    %vm280 = vmor %vm278, %vm279
    %v281 = vsel %vm280, %v272, %v277
    %v282 = vmul.f32 %v271, %v231
    %v283 = vmul.f32 %v281, %v231
    %v284 = vadd.f32 %v225, %v282
    %v285 = vadd.f32 %v226, %v283
    %v286 = vsub.f32 %v22, %v258
    %v287 = vsub.f32 %v23, %v259
    %v288 = vmul.f32 %v286, %v284
    %v289 = vmul.f32 %v287, %v285
    %v290 = vmul.f32 %v288, %v96
    %v291 = vmul.f32 %v289, %v96
    %v292 = vadd.f32 %v290, %v97
    %v293 = vadd.f32 %v291, %v97
    %v294 = vpack.c.bf16 %v293, %v292
    %v296 = vperm.slane %v99, 0
    %v297 = vperm.slane %v99, 1
    %v298 = vperm.slane %v99, 2
    %v326 = vunpack.c.l.b16 %v24
    %v327 = vunpack.c.h.b16 %v24
    %v328 = vunpack.c.l.b16 %v25
    %v329 = vunpack.c.l.b16 %v26
    %v330 = vunpack.c.h.b16 %v26
    %v331 = vunpack.c.l.b16 %v27
    %v332 = vunpack.c.l.b16 %v28
    %v333 = vunpack.c.h.b16 %v28
    %v334 = vunpack.c.l.b16 %v29
    %v335 = vunpack.c.l.b16 %v30
    %v336 = vunpack.c.h.b16 %v30
    %v337 = vunpack.c.l.b16 %v31
    %v338 = vunpack.c.l.b16 %v32
    %v339 = vunpack.c.h.b16 %v32
    %v340 = vunpack.c.l.b16 %v33
    %v341 = vunpack.c.l.b16 %v34
    %v342 = vunpack.c.h.b16 %v34
    %v343 = vunpack.c.l.b16 %v35
    %v344 = vunpack.c.l.b16 %v36
    %v345 = vunpack.c.h.b16 %v36
    %v346 = vunpack.c.l.b16 %v37
    %v347 = vunpack.c.l.b16 %v38
    %v348 = vunpack.c.h.b16 %v38
    %v349 = vunpack.c.l.b16 %v39
    %v350 = vunpack.c.l.b16 %v40
    %v351 = vunpack.c.h.b16 %v40
    %v352 = vunpack.c.l.b16 %v41
    %v353 = vunpack.c.l.b16 %v42
    %v354 = vunpack.c.h.b16 %v42
    %v355 = vunpack.c.l.b16 %v43
    %v356 = vunpack.c.l.b16 %v44
    %v357 = vunpack.c.h.b16 %v44
    %v358 = vunpack.c.l.b16 %v45
    %v359 = vunpack.c.l.b16 %v46
    %v360 = vunpack.c.h.b16 %v46
    %v361 = vunpack.c.l.b16 %v47
    %v362 = vpack.c.b16 %v329, %v326
    %v363 = vpack.c.b16 %v330, %v327
    %v364 = vpack.c.b16 %v331, %v328
    %v365 = vpack.c.b16 %v335, %v332
    %v366 = vpack.c.b16 %v336, %v333
    %v367 = vpack.c.b16 %v337, %v334
    %v368 = vpack.c.b16 %v341, %v338
    %v369 = vpack.c.b16 %v342, %v339
    %v370 = vpack.c.b16 %v343, %v340
    %v371 = vpack.c.b16 %v347, %v344
    %v372 = vpack.c.b16 %v348, %v345
    %v373 = vpack.c.b16 %v349, %v346
    %v374 = vpack.c.b16 %v353, %v350
    %v375 = vpack.c.b16 %v354, %v351
    %v376 = vpack.c.b16 %v355, %v352
    %v377 = vpack.c.b16 %v359, %v356
    %v378 = vpack.c.b16 %v360, %v357
    %v379 = vpack.c.b16 %v361, %v358
    %v399 = vsel %vm115, %v294, 0
    %401 = vmatpush.bf16.msra.mxu0 0
    %402 = vmatpush.bf16.msra.mxu0 0
    %403 = vmatpush.bf16.msra.mxu0 %v377
    %404 = vmatpush.bf16.msra.mxu0 %v374
    %405 = vmatpush.bf16.msra.mxu0 %v371
    %406 = vmatpush.bf16.msra.mxu0 %v368
    %407 = vmatpush.bf16.msra.mxu0 %v365
    %408 = vmatpush.bf16.msra.mxu0 %v362
    %409 = vmatmul.bf16.gmra.mxu0 %v399
    %v410 = vpop.f32.mrf.mxu0
    %v411 = vadd.f32 %v296, %v410
    %v412 = vpop.f32.mrf.mxu0
    %v413 = vadd.f32 %v296, %v412
    %414 = vdwg.mxu0
    %415 = vmatpush.bf16.msra.mxu0 0
    %416 = vmatpush.bf16.msra.mxu0 0
    %417 = vmatpush.bf16.msra.mxu0 %v378
    %418 = vmatpush.bf16.msra.mxu0 %v375
    %419 = vmatpush.bf16.msra.mxu0 %v372
    %420 = vmatpush.bf16.msra.mxu0 %v369
    %421 = vmatpush.bf16.msra.mxu0 %v366
    %422 = vmatpush.bf16.msra.mxu0 %v363
    %423 = vmatmul.bf16.gmra.mxu0 %v399
    %v424 = vpop.f32.mrf.mxu0
    %v425 = vadd.f32 %v297, %v424
    %v426 = vpop.f32.mrf.mxu0
    %v427 = vadd.f32 %v297, %v426
    %428 = vdwg.mxu0
    %429 = vmatpush.bf16.msra.mxu0 0
    %430 = vmatpush.bf16.msra.mxu0 0
    %431 = vmatpush.bf16.msra.mxu0 %v379
    %432 = vmatpush.bf16.msra.mxu0 %v376
    %433 = vmatpush.bf16.msra.mxu0 %v373
    %434 = vmatpush.bf16.msra.mxu0 %v370
    %435 = vmatpush.bf16.msra.mxu0 %v367
    %436 = vmatpush.bf16.msra.mxu0 %v364
    %437 = vmatmul.bf16.gmra.mxu0 %v399
    %v438 = vpop.f32.mrf.mxu0
    %v439 = vadd.f32 %v298, %v438
    %v440 = vpop.f32.mrf.mxu0
    %v441 = vadd.f32 %v298, %v440
    %442 = vdwg.mxu0
    %v443 = vpack.c.bf16 %v411, %v411
    %v444 = vpack.c.bf16 %v413, %v413
    %v445 = vpack.c.bf16 %v425, %v411
    %v446 = vpack.c.bf16 %v427, %v413
    %v447 = vpack.c.bf16 %v439, %v425
    %v448 = vpack.c.bf16 %v441, %v427
    %v450 = vunpack.c.l.b16 %v445
    %v451 = vpack.c.b16 %v450, %v450
    %452 = vrot.lane.b32.xlu0 %v451, 32
    %v453 = vpop.permute.xlu0 %452
    %vm454 = vcmask 64512
    %v456 = vsel %vm454, %v443, 0
    %v459 = vsel %vm454, %v453, 0
    %461 = vmatpush.bf16.xpose.msra.mxu0 0
    %462 = vmatpush.bf16.xpose.msra.mxu0 0
    %463 = vmatpush.bf16.xpose.msra.mxu0 0
    %464 = vmatpush.bf16.xpose.msra.mxu0 0
    %465 = vmatpush.bf16.xpose.msra.mxu0 0
    %466 = vmatpush.bf16.xpose.msra.mxu0 0
    %467 = vmatpush.bf16.xpose.msra.mxu0 0
    %468 = vmatpush.bf16.xpose.msra.mxu0 %v459
    %469 = vmatmul.bf16.gmra.mxu0 %v456
    %v470 = vpop.f32.mrf.mxu0
    %v471 = vadd.f32 0.0, %v470
    %v472 = vpop.f32.mrf.mxu0
    %473 = vdwg.mxu0
    %v475 = vunpack.c.l.b16 %v446
    %v476 = vpack.c.b16 %v475, %v475
    %477 = vrot.lane.b32.xlu0 %v476, 32
    %v478 = vpop.permute.xlu0 %477
    %v480 = vsel %vm454, %v444, 0
    %v483 = vsel %vm454, %v478, 0
    %485 = vmatpush.bf16.xpose.msra.mxu0 0
    %486 = vmatpush.bf16.xpose.msra.mxu0 0
    %487 = vmatpush.bf16.xpose.msra.mxu0 0
    %488 = vmatpush.bf16.xpose.msra.mxu0 0
    %489 = vmatpush.bf16.xpose.msra.mxu0 0
    %490 = vmatpush.bf16.xpose.msra.mxu0 0
    %491 = vmatpush.bf16.xpose.msra.mxu0 0
    %492 = vmatpush.bf16.xpose.msra.mxu0 %v483
    %493 = vmatmul.bf16.gmra.mxu0 %v480
    %v494 = vpop.f32.mrf.mxu0
    %v495 = vadd.f32 0.0, %v494
    %v496 = vpop.f32.mrf.mxu0
    %497 = vdwg.mxu0
    %v498 = vmul.f32 %v471, 0.35355338
    %v499 = vmul.f32 %v495, 0.35355338
    %v500 = vsel %vm454, %v498, -inf
    %501 = vmax.xlane.f32.xlu0 %v500
    %v502 = vpop.xlane.xlu0 %501
    %v503 = vsel %vm454, %v499, -inf
    %504 = vmax.xlane.f32.xlu0 %v503
    %v505 = vpop.xlane.xlu0 %504
    %v506 = vsub.f32 %v498, %v502
    %v507 = vsub.f32 %v499, %v505
    %v508 = vmul.f32 %v506, 1.442695
    %v509 = vpow.pop %v508
    %v510 = vmul.f32 %v507, 1.442695
    %v511 = vpow.pop %v510
    %v512 = vsel %vm454, %v509, 0.0
    %513 = vadd.xlane.f32.xlu0 %v512
    %v514 = vpop.xlane.xlu0 %513
    %v515 = vsel %vm454, %v511, 0.0
    %516 = vadd.xlane.f32.xlu0 %v515
    %v517 = vpop.xlane.xlu0 %516
    %v518 = vrcp.pop %v514
    %v519 = vmul.f32 %v514, %v518
    %v520 = vsub.f32 1.0, %v519
    %v521 = vmul.f32 %v518, %v520
    %v522 = vadd.f32 %v518, %v521
    %vm523 = vweird.f32 %v514
    %vm524 = vweird.f32 %v518
    %vm525 = vmor %vm523, %vm524
    %v526 = vsel %vm525, %v518, %v522
    %v527 = vand.u32 2147483647, %v514
    %vm528 = vcmp.eq.f32.partialorder %v527, 8.507059e+37
    %v529 = vand.u32 %v514, 2147483648
    %v530 = vor.u32 1.1754944e-38, %v529
    %v531 = vsel %vm528, %v530, %v526
    %v532 = vmul.f32 %v509, %v531
    %v533 = vrcp.pop %v517
    %v534 = vmul.f32 %v517, %v533
    %v535 = vsub.f32 1.0, %v534
    %v536 = vmul.f32 %v533, %v535
    %v537 = vadd.f32 %v533, %v536
    %vm538 = vweird.f32 %v517
    %vm539 = vweird.f32 %v533
    %vm540 = vmor %vm538, %vm539
    %v541 = vsel %vm540, %v533, %v537
    %v542 = vand.u32 2147483647, %v517
    %vm543 = vcmp.eq.f32.partialorder %v542, 8.507059e+37
    %v544 = vand.u32 %v517, 2147483648
    %v545 = vor.u32 1.1754944e-38, %v544
    %v546 = vsel %vm543, %v545, %v541
    %v547 = vmul.f32 %v511, %v546
    %v548 = vpack.c.bf16 %v532, %v532
    %v549 = vpack.c.bf16 %v547, %v547
    %v551 = vunpack.c.l.b16 %v447
    %v552 = vpack.c.b16 %v551, %v551
    %553 = vrot.lane.b32.xlu0 %v552, 64
    %v554 = vpop.permute.xlu0 %553
    %v556 = vsel %vm454, %v548, 0
    %vm558 = vcmask 1043456
    %v560 = vsel %vm558, %v554, 0
    %562 = vmatpush.bf16.msra.mxu0 0
    %563 = vmatpush.bf16.msra.mxu0 0
    %564 = vmatpush.bf16.msra.mxu0 0
    %565 = vmatpush.bf16.msra.mxu0 0
    %566 = vmatpush.bf16.msra.mxu0 0
    %567 = vmatpush.bf16.msra.mxu0 0
    %568 = vmatpush.bf16.msra.mxu0 0
    %569 = vmatpush.bf16.msra.mxu0 %v560
    %570 = vmatmul.bf16.gmra.mxu0 %v556
    %v571 = vpop.f32.mrf.mxu0
    %v572 = vadd.f32 0.0, %v571
    %v573 = vpop.f32.mrf.mxu0
    %574 = vdwg.mxu0
    %v576 = vunpack.c.l.b16 %v448
    %v577 = vpack.c.b16 %v576, %v576
    %578 = vrot.lane.b32.xlu0 %v577, 64
    %v579 = vpop.permute.xlu0 %578
    %v581 = vsel %vm454, %v549, 0
    %v584 = vsel %vm558, %v579, 0
    %586 = vmatpush.bf16.msra.mxu0 0
    %587 = vmatpush.bf16.msra.mxu0 0
    %588 = vmatpush.bf16.msra.mxu0 0
    %589 = vmatpush.bf16.msra.mxu0 0
    %590 = vmatpush.bf16.msra.mxu0 0
    %591 = vmatpush.bf16.msra.mxu0 0
    %592 = vmatpush.bf16.msra.mxu0 0
    %593 = vmatpush.bf16.msra.mxu0 %v584
    %594 = vmatmul.bf16.gmra.mxu0 %v581
    %v595 = vpop.f32.mrf.mxu0
    %v596 = vadd.f32 0.0, %v595
    %v597 = vpop.f32.mrf.mxu0
    %598 = vdwg.mxu0
    %v600 = vunpack.c.l.b16 %v443
    %v601 = vpack.c.b16 %v600, %v600
    %602 = vrot.lane.b32.xlu0 %v601, 120
    %v603 = vpop.permute.xlu0 %602
    %604 = vrot.lane.b32.xlu0 %v451, 24
    %v605 = vpop.permute.xlu0 %604
    %v607 = vsel %vm454, %v603, 0
    %v610 = vsel %vm454, %v605, 0
    %612 = vmatpush.bf16.xpose.msra.mxu0 0
    %613 = vmatpush.bf16.xpose.msra.mxu0 0
    %614 = vmatpush.bf16.xpose.msra.mxu0 0
    %615 = vmatpush.bf16.xpose.msra.mxu0 0
    %616 = vmatpush.bf16.xpose.msra.mxu0 0
    %617 = vmatpush.bf16.xpose.msra.mxu0 0
    %618 = vmatpush.bf16.xpose.msra.mxu0 0
    %619 = vmatpush.bf16.xpose.msra.mxu0 %v610
    %620 = vmatmul.bf16.gmra.mxu0 %v607
    %v621 = vpop.f32.mrf.mxu0
    %v622 = vadd.f32 0.0, %v621
    %v623 = vpop.f32.mrf.mxu0
    %624 = vdwg.mxu0
    %v626 = vunpack.c.l.b16 %v444
    %v627 = vpack.c.b16 %v626, %v626
    %628 = vrot.lane.b32.xlu0 %v627, 120
    %v629 = vpop.permute.xlu0 %628
    %630 = vrot.lane.b32.xlu0 %v476, 24
    %v631 = vpop.permute.xlu0 %630
    %v633 = vsel %vm454, %v629, 0
    %v636 = vsel %vm454, %v631, 0
    %638 = vmatpush.bf16.xpose.msra.mxu0 0
    %639 = vmatpush.bf16.xpose.msra.mxu0 0
    %640 = vmatpush.bf16.xpose.msra.mxu0 0
    %641 = vmatpush.bf16.xpose.msra.mxu0 0
    %642 = vmatpush.bf16.xpose.msra.mxu0 0
    %643 = vmatpush.bf16.xpose.msra.mxu0 0
    %644 = vmatpush.bf16.xpose.msra.mxu0 0
    %645 = vmatpush.bf16.xpose.msra.mxu0 %v636
    %646 = vmatmul.bf16.gmra.mxu0 %v633
    %v647 = vpop.f32.mrf.mxu0
    %v648 = vadd.f32 0.0, %v647
    %v649 = vpop.f32.mrf.mxu0
    %650 = vdwg.mxu0
    %v651 = vmul.f32 %v622, 0.35355338
    %v652 = vmul.f32 %v648, 0.35355338
    %v653 = vsel %vm454, %v651, -inf
    %654 = vmax.xlane.f32.xlu0 %v653
    %v655 = vpop.xlane.xlu0 %654
    %v656 = vsel %vm454, %v652, -inf
    %657 = vmax.xlane.f32.xlu0 %v656
    %v658 = vpop.xlane.xlu0 %657
    %v659 = vsub.f32 %v651, %v655
    %v660 = vsub.f32 %v652, %v658
    %v661 = vmul.f32 %v659, 1.442695
    %v662 = vpow.pop %v661
    %v663 = vmul.f32 %v660, 1.442695
    %v664 = vpow.pop %v663
    %v665 = vsel %vm454, %v662, 0.0
    %666 = vadd.xlane.f32.xlu0 %v665
    %v667 = vpop.xlane.xlu0 %666
    %v668 = vsel %vm454, %v664, 0.0
    %669 = vadd.xlane.f32.xlu0 %v668
    %v670 = vpop.xlane.xlu0 %669
    %v671 = vrcp.pop %v667
    %v672 = vmul.f32 %v667, %v671
    %v673 = vsub.f32 1.0, %v672
    %v674 = vmul.f32 %v671, %v673
    %v675 = vadd.f32 %v671, %v674
    %vm676 = vweird.f32 %v667
    %vm677 = vweird.f32 %v671
    %vm678 = vmor %vm676, %vm677
    %v679 = vsel %vm678, %v671, %v675
    %v680 = vand.u32 2147483647, %v667
    %vm681 = vcmp.eq.f32.partialorder %v680, 8.507059e+37
    %v682 = vand.u32 %v667, 2147483648
    %v683 = vor.u32 1.1754944e-38, %v682
    %v684 = vsel %vm681, %v683, %v679
    %v685 = vmul.f32 %v662, %v684
    %v686 = vrcp.pop %v670
    %v687 = vmul.f32 %v670, %v686
    %v688 = vsub.f32 1.0, %v687
    %v689 = vmul.f32 %v686, %v688
    %v690 = vadd.f32 %v686, %v689
    %vm691 = vweird.f32 %v670
    %vm692 = vweird.f32 %v686
    %vm693 = vmor %vm691, %vm692
    %v694 = vsel %vm693, %v686, %v690
    %v695 = vand.u32 2147483647, %v670
    %vm696 = vcmp.eq.f32.partialorder %v695, 8.507059e+37
    %v697 = vand.u32 %v670, 2147483648
    %v698 = vor.u32 1.1754944e-38, %v697
    %v699 = vsel %vm696, %v698, %v694
    %v700 = vmul.f32 %v664, %v699
    %v701 = vpack.c.bf16 %v685, %v685
    %v702 = vpack.c.bf16 %v700, %v700
    %703 = vrot.lane.b32.xlu0 %v552, 56
    %v704 = vpop.permute.xlu0 %703
    %v706 = vsel %vm454, %v701, 0
    %v709 = vsel %vm558, %v704, 0
    %711 = vmatpush.bf16.msra.mxu0 0
    %712 = vmatpush.bf16.msra.mxu0 0
    %713 = vmatpush.bf16.msra.mxu0 0
    %714 = vmatpush.bf16.msra.mxu0 0
    %715 = vmatpush.bf16.msra.mxu0 0
    %716 = vmatpush.bf16.msra.mxu0 0
    %717 = vmatpush.bf16.msra.mxu0 0
    %718 = vmatpush.bf16.msra.mxu0 %v709
    %719 = vmatmul.bf16.gmra.mxu0 %v706
    %v720 = vpop.f32.mrf.mxu0
    %v721 = vadd.f32 0.0, %v720
    %v722 = vpop.f32.mrf.mxu0
    %723 = vdwg.mxu0
    %724 = vrot.lane.b32.xlu0 %v577, 56
    %v725 = vpop.permute.xlu0 %724
    %v727 = vsel %vm454, %v702, 0
    %v730 = vsel %vm558, %v725, 0
    %732 = vmatpush.bf16.msra.mxu0 0
    %733 = vmatpush.bf16.msra.mxu0 0
    %734 = vmatpush.bf16.msra.mxu0 0
    %735 = vmatpush.bf16.msra.mxu0 0
    %736 = vmatpush.bf16.msra.mxu0 0
    %737 = vmatpush.bf16.msra.mxu0 0
    %738 = vmatpush.bf16.msra.mxu0 0
    %739 = vmatpush.bf16.msra.mxu0 %v730
    %740 = vmatmul.bf16.gmra.mxu0 %v727
    %v741 = vpop.f32.mrf.mxu0
    %v742 = vadd.f32 0.0, %v741
    %v743 = vpop.f32.mrf.mxu0
    %744 = vdwg.mxu0
    %745 = vrot.lane.b32.xlu0 %v601, 112
    %v746 = vpop.permute.xlu0 %745
    %747 = vrot.lane.b32.xlu0 %v451, 16
    %v748 = vpop.permute.xlu0 %747
    %v750 = vsel %vm454, %v746, 0
    %v753 = vsel %vm454, %v748, 0
    %755 = vmatpush.bf16.xpose.msra.mxu0 0
    %756 = vmatpush.bf16.xpose.msra.mxu0 0
    %757 = vmatpush.bf16.xpose.msra.mxu0 0
    %758 = vmatpush.bf16.xpose.msra.mxu0 0
    %759 = vmatpush.bf16.xpose.msra.mxu0 0
    %760 = vmatpush.bf16.xpose.msra.mxu0 0
    %761 = vmatpush.bf16.xpose.msra.mxu0 0
    %762 = vmatpush.bf16.xpose.msra.mxu0 %v753
    %763 = vmatmul.bf16.gmra.mxu0 %v750
    %v764 = vpop.f32.mrf.mxu0
    %v765 = vadd.f32 0.0, %v764
    %v766 = vpop.f32.mrf.mxu0
    %767 = vdwg.mxu0
    %768 = vrot.lane.b32.xlu0 %v627, 112
    %v769 = vpop.permute.xlu0 %768
    %770 = vrot.lane.b32.xlu0 %v476, 16
    %v771 = vpop.permute.xlu0 %770
    %v773 = vsel %vm454, %v769, 0
    %v776 = vsel %vm454, %v771, 0
    %778 = vmatpush.bf16.xpose.msra.mxu0 0
    %779 = vmatpush.bf16.xpose.msra.mxu0 0
    %780 = vmatpush.bf16.xpose.msra.mxu0 0
    %781 = vmatpush.bf16.xpose.msra.mxu0 0
    %782 = vmatpush.bf16.xpose.msra.mxu0 0
    %783 = vmatpush.bf16.xpose.msra.mxu0 0
    %784 = vmatpush.bf16.xpose.msra.mxu0 0
    %785 = vmatpush.bf16.xpose.msra.mxu0 %v776
    %786 = vmatmul.bf16.gmra.mxu0 %v773
    %v787 = vpop.f32.mrf.mxu0
    %v788 = vadd.f32 0.0, %v787
    %v789 = vpop.f32.mrf.mxu0
    %790 = vdwg.mxu0
    %v791 = vmul.f32 %v765, 0.35355338
    %v792 = vmul.f32 %v788, 0.35355338
    %v793 = vsel %vm454, %v791, -inf
    %794 = vmax.xlane.f32.xlu0 %v793
    %v795 = vpop.xlane.xlu0 %794
    %v796 = vsel %vm454, %v792, -inf
    %797 = vmax.xlane.f32.xlu0 %v796
    %v798 = vpop.xlane.xlu0 %797
    %v799 = vsub.f32 %v791, %v795
    %v800 = vsub.f32 %v792, %v798
    %v801 = vmul.f32 %v799, 1.442695
    %v802 = vpow.pop %v801
    %v803 = vmul.f32 %v800, 1.442695
    %v804 = vpow.pop %v803
    %v805 = vsel %vm454, %v802, 0.0
    %806 = vadd.xlane.f32.xlu0 %v805
    %v807 = vpop.xlane.xlu0 %806
    %v808 = vsel %vm454, %v804, 0.0
    %809 = vadd.xlane.f32.xlu0 %v808
    %v810 = vpop.xlane.xlu0 %809
    %v811 = vrcp.pop %v807
    %v812 = vmul.f32 %v807, %v811
    %v813 = vsub.f32 1.0, %v812
    %v814 = vmul.f32 %v811, %v813
    %v815 = vadd.f32 %v811, %v814
    %vm816 = vweird.f32 %v807
    %vm817 = vweird.f32 %v811
    %vm818 = vmor %vm816, %vm817
    %v819 = vsel %vm818, %v811, %v815
    %v820 = vand.u32 2147483647, %v807
    %vm821 = vcmp.eq.f32.partialorder %v820, 8.507059e+37
    %v822 = vand.u32 %v807, 2147483648
    %v823 = vor.u32 1.1754944e-38, %v822
    %v824 = vsel %vm821, %v823, %v819
    %v825 = vmul.f32 %v802, %v824
    %v826 = vrcp.pop %v810
    %v827 = vmul.f32 %v810, %v826
    %v828 = vsub.f32 1.0, %v827
    %v829 = vmul.f32 %v826, %v828
    %v830 = vadd.f32 %v826, %v829
    %vm831 = vweird.f32 %v810
    %vm832 = vweird.f32 %v826
    %vm833 = vmor %vm831, %vm832
    %v834 = vsel %vm833, %v826, %v830
    %v835 = vand.u32 2147483647, %v810
    %vm836 = vcmp.eq.f32.partialorder %v835, 8.507059e+37
    %v837 = vand.u32 %v810, 2147483648
    %v838 = vor.u32 1.1754944e-38, %v837
    %v839 = vsel %vm836, %v838, %v834
    %v840 = vmul.f32 %v804, %v839
    %v841 = vpack.c.bf16 %v825, %v825
    %v842 = vpack.c.bf16 %v840, %v840
    %843 = vrot.lane.b32.xlu0 %v552, 48
    %v844 = vpop.permute.xlu0 %843
    %v846 = vsel %vm454, %v841, 0
    %v849 = vsel %vm558, %v844, 0
    %851 = vmatpush.bf16.msra.mxu0 0
    %852 = vmatpush.bf16.msra.mxu0 0
    %853 = vmatpush.bf16.msra.mxu0 0
    %854 = vmatpush.bf16.msra.mxu0 0
    %855 = vmatpush.bf16.msra.mxu0 0
    %856 = vmatpush.bf16.msra.mxu0 0
    %857 = vmatpush.bf16.msra.mxu0 0
    %858 = vmatpush.bf16.msra.mxu0 %v849
    %859 = vmatmul.bf16.gmra.mxu0 %v846
    %v860 = vpop.f32.mrf.mxu0
    %v861 = vadd.f32 0.0, %v860
    %v862 = vpop.f32.mrf.mxu0
    %863 = vdwg.mxu0
    %864 = vrot.lane.b32.xlu0 %v577, 48
    %v865 = vpop.permute.xlu0 %864
    %v867 = vsel %vm454, %v842, 0
    %v870 = vsel %vm558, %v865, 0
    %872 = vmatpush.bf16.msra.mxu0 0
    %873 = vmatpush.bf16.msra.mxu0 0
    %874 = vmatpush.bf16.msra.mxu0 0
    %875 = vmatpush.bf16.msra.mxu0 0
    %876 = vmatpush.bf16.msra.mxu0 0
    %877 = vmatpush.bf16.msra.mxu0 0
    %878 = vmatpush.bf16.msra.mxu0 0
    %879 = vmatpush.bf16.msra.mxu0 %v870
    %880 = vmatmul.bf16.gmra.mxu0 %v867
    %v881 = vpop.f32.mrf.mxu0
    %v882 = vadd.f32 0.0, %v881
    %v883 = vpop.f32.mrf.mxu0
    %884 = vdwg.mxu0
    %885 = vrot.lane.b32.xlu0 %v601, 104
    %v886 = vpop.permute.xlu0 %885
    %887 = vrot.lane.b32.xlu0 %v451, 8
    %v888 = vpop.permute.xlu0 %887
    %v890 = vsel %vm454, %v886, 0
    %v893 = vsel %vm454, %v888, 0
    %895 = vmatpush.bf16.xpose.msra.mxu0 0
    %896 = vmatpush.bf16.xpose.msra.mxu0 0
    %897 = vmatpush.bf16.xpose.msra.mxu0 0
    %898 = vmatpush.bf16.xpose.msra.mxu0 0
    %899 = vmatpush.bf16.xpose.msra.mxu0 0
    %900 = vmatpush.bf16.xpose.msra.mxu0 0
    %901 = vmatpush.bf16.xpose.msra.mxu0 0
    %902 = vmatpush.bf16.xpose.msra.mxu0 %v893
    %903 = vmatmul.bf16.gmra.mxu0 %v890
    %v904 = vpop.f32.mrf.mxu0
    %v905 = vadd.f32 0.0, %v904
    %v906 = vpop.f32.mrf.mxu0
    %907 = vdwg.mxu0
    %908 = vrot.lane.b32.xlu0 %v627, 104
    %v909 = vpop.permute.xlu0 %908
    %910 = vrot.lane.b32.xlu0 %v476, 8
    %v911 = vpop.permute.xlu0 %910
    %v913 = vsel %vm454, %v909, 0
    %v916 = vsel %vm454, %v911, 0
    %918 = vmatpush.bf16.xpose.msra.mxu0 0
    %919 = vmatpush.bf16.xpose.msra.mxu0 0
    %920 = vmatpush.bf16.xpose.msra.mxu0 0
    %921 = vmatpush.bf16.xpose.msra.mxu0 0
    %922 = vmatpush.bf16.xpose.msra.mxu0 0
    %923 = vmatpush.bf16.xpose.msra.mxu0 0
    %924 = vmatpush.bf16.xpose.msra.mxu0 0
    %925 = vmatpush.bf16.xpose.msra.mxu0 %v916
    %926 = vmatmul.bf16.gmra.mxu0 %v913
    %v927 = vpop.f32.mrf.mxu0
    %v928 = vadd.f32 0.0, %v927
    %v929 = vpop.f32.mrf.mxu0
    %930 = vdwg.mxu0
    %v931 = vmul.f32 %v905, 0.35355338
    %v932 = vmul.f32 %v928, 0.35355338
    %v933 = vsel %vm454, %v931, -inf
    %934 = vmax.xlane.f32.xlu0 %v933
    %v935 = vpop.xlane.xlu0 %934
    %v936 = vsel %vm454, %v932, -inf
    %937 = vmax.xlane.f32.xlu0 %v936
    %v938 = vpop.xlane.xlu0 %937
    %v939 = vsub.f32 %v931, %v935
    %v940 = vsub.f32 %v932, %v938
    %v941 = vmul.f32 %v939, 1.442695
    %v942 = vpow.pop %v941
    %v943 = vmul.f32 %v940, 1.442695
    %v944 = vpow.pop %v943
    %v945 = vsel %vm454, %v942, 0.0
    %946 = vadd.xlane.f32.xlu0 %v945
    %v947 = vpop.xlane.xlu0 %946
    %v948 = vsel %vm454, %v944, 0.0
    %949 = vadd.xlane.f32.xlu0 %v948
    %v950 = vpop.xlane.xlu0 %949
    %v951 = vrcp.pop %v947
    %v952 = vmul.f32 %v947, %v951
    %v953 = vsub.f32 1.0, %v952
    %v954 = vmul.f32 %v951, %v953
    %v955 = vadd.f32 %v951, %v954
    %vm956 = vweird.f32 %v947
    %vm957 = vweird.f32 %v951
    %vm958 = vmor %vm956, %vm957
    %v959 = vsel %vm958, %v951, %v955
    %v960 = vand.u32 2147483647, %v947
    %vm961 = vcmp.eq.f32.partialorder %v960, 8.507059e+37
    %v962 = vand.u32 %v947, 2147483648
    %v963 = vor.u32 1.1754944e-38, %v962
    %v964 = vsel %vm961, %v963, %v959
    %v965 = vmul.f32 %v942, %v964
    %v966 = vrcp.pop %v950
    %v967 = vmul.f32 %v950, %v966
    %v968 = vsub.f32 1.0, %v967
    %v969 = vmul.f32 %v966, %v968
    %v970 = vadd.f32 %v966, %v969
    %vm971 = vweird.f32 %v950
    %vm972 = vweird.f32 %v966
    %vm973 = vmor %vm971, %vm972
    %v974 = vsel %vm973, %v966, %v970
    %v975 = vand.u32 2147483647, %v950
    %vm976 = vcmp.eq.f32.partialorder %v975, 8.507059e+37
    %v977 = vand.u32 %v950, 2147483648
    %v978 = vor.u32 1.1754944e-38, %v977
    %v979 = vsel %vm976, %v978, %v974
    %v980 = vmul.f32 %v944, %v979
    %v981 = vpack.c.bf16 %v965, %v965
    %v982 = vpack.c.bf16 %v980, %v980
    %983 = vrot.lane.b32.xlu0 %v552, 40
    %v984 = vpop.permute.xlu0 %983
    %v986 = vsel %vm454, %v981, 0
    %v989 = vsel %vm558, %v984, 0
    %991 = vmatpush.bf16.msra.mxu0 0
    %992 = vmatpush.bf16.msra.mxu0 0
    %993 = vmatpush.bf16.msra.mxu0 0
    %994 = vmatpush.bf16.msra.mxu0 0
    %995 = vmatpush.bf16.msra.mxu0 0
    %996 = vmatpush.bf16.msra.mxu0 0
    %997 = vmatpush.bf16.msra.mxu0 0
    %998 = vmatpush.bf16.msra.mxu0 %v989
    %999 = vmatmul.bf16.gmra.mxu0 %v986
    %v1000 = vpop.f32.mrf.mxu0
    %v1001 = vadd.f32 0.0, %v1000
    %v1002 = vpop.f32.mrf.mxu0
    %1003 = vdwg.mxu0
    %1004 = vrot.lane.b32.xlu0 %v577, 40
    %v1005 = vpop.permute.xlu0 %1004
    %v1007 = vsel %vm454, %v982, 0
    %v1010 = vsel %vm558, %v1005, 0
    %1012 = vmatpush.bf16.msra.mxu0 0
    %1013 = vmatpush.bf16.msra.mxu0 0
    %1014 = vmatpush.bf16.msra.mxu0 0
    %1015 = vmatpush.bf16.msra.mxu0 0
    %1016 = vmatpush.bf16.msra.mxu0 0
    %1017 = vmatpush.bf16.msra.mxu0 0
    %1018 = vmatpush.bf16.msra.mxu0 0
    %1019 = vmatpush.bf16.msra.mxu0 %v1010
    %1020 = vmatmul.bf16.gmra.mxu0 %v1007
    %v1021 = vpop.f32.mrf.mxu0
    %v1022 = vadd.f32 0.0, %v1021
    %v1023 = vpop.f32.mrf.mxu0
    %1024 = vdwg.mxu0
    %v1025 = vrot.slane %v445, 4
    %1026 = vrot.lane.b32.xlu0 %v601, 96
    %v1027 = vpop.permute.xlu0 %1026
    %v1029 = vsel %vm454, %v1027, 0
    %v1032 = vsel %vm454, %v1025, 0
    %1034 = vmatpush.bf16.xpose.msra.mxu0 0
    %1035 = vmatpush.bf16.xpose.msra.mxu0 0
    %1036 = vmatpush.bf16.xpose.msra.mxu0 0
    %1037 = vmatpush.bf16.xpose.msra.mxu0 0
    %1038 = vmatpush.bf16.xpose.msra.mxu0 0
    %1039 = vmatpush.bf16.xpose.msra.mxu0 0
    %1040 = vmatpush.bf16.xpose.msra.mxu0 0
    %1041 = vmatpush.bf16.xpose.msra.mxu0 %v1032
    %1042 = vmatmul.bf16.gmra.mxu0 %v1029
    %v1043 = vpop.f32.mrf.mxu0
    %v1044 = vadd.f32 0.0, %v1043
    %v1045 = vpop.f32.mrf.mxu0
    %1046 = vdwg.mxu0
    %v1047 = vrot.slane %v446, 4
    %1048 = vrot.lane.b32.xlu0 %v627, 96
    %v1049 = vpop.permute.xlu0 %1048
    %v1051 = vsel %vm454, %v1049, 0
    %v1054 = vsel %vm454, %v1047, 0
    %1056 = vmatpush.bf16.xpose.msra.mxu0 0
    %1057 = vmatpush.bf16.xpose.msra.mxu0 0
    %1058 = vmatpush.bf16.xpose.msra.mxu0 0
    %1059 = vmatpush.bf16.xpose.msra.mxu0 0
    %1060 = vmatpush.bf16.xpose.msra.mxu0 0
    %1061 = vmatpush.bf16.xpose.msra.mxu0 0
    %1062 = vmatpush.bf16.xpose.msra.mxu0 0
    %1063 = vmatpush.bf16.xpose.msra.mxu0 %v1054
    %1064 = vmatmul.bf16.gmra.mxu0 %v1051
    %v1065 = vpop.f32.mrf.mxu0
    %v1066 = vadd.f32 0.0, %v1065
    %v1067 = vpop.f32.mrf.mxu0
    %1068 = vdwg.mxu0
    %v1069 = vmul.f32 %v1044, 0.35355338
    %v1070 = vmul.f32 %v1066, 0.35355338
    %v1071 = vsel %vm454, %v1069, -inf
    %1072 = vmax.xlane.f32.xlu0 %v1071
    %v1073 = vpop.xlane.xlu0 %1072
    %v1074 = vsel %vm454, %v1070, -inf
    %1075 = vmax.xlane.f32.xlu0 %v1074
    %v1076 = vpop.xlane.xlu0 %1075
    %v1077 = vsub.f32 %v1069, %v1073
    %v1078 = vsub.f32 %v1070, %v1076
    %v1079 = vmul.f32 %v1077, 1.442695
    %v1080 = vpow.pop %v1079
    %v1081 = vmul.f32 %v1078, 1.442695
    %v1082 = vpow.pop %v1081
    %v1083 = vsel %vm454, %v1080, 0.0
    %1084 = vadd.xlane.f32.xlu0 %v1083
    %v1085 = vpop.xlane.xlu0 %1084
    %v1086 = vsel %vm454, %v1082, 0.0
    %1087 = vadd.xlane.f32.xlu0 %v1086
    %v1088 = vpop.xlane.xlu0 %1087
    %v1089 = vrcp.pop %v1085
    %v1090 = vmul.f32 %v1085, %v1089
    %v1091 = vsub.f32 1.0, %v1090
    %v1092 = vmul.f32 %v1089, %v1091
    %v1093 = vadd.f32 %v1089, %v1092
    %vm1094 = vweird.f32 %v1085
    %vm1095 = vweird.f32 %v1089
    %vm1096 = vmor %vm1094, %vm1095
    %v1097 = vsel %vm1096, %v1089, %v1093
    %v1098 = vand.u32 2147483647, %v1085
    %vm1099 = vcmp.eq.f32.partialorder %v1098, 8.507059e+37
    %v1100 = vand.u32 %v1085, 2147483648
    %v1101 = vor.u32 1.1754944e-38, %v1100
    %v1102 = vsel %vm1099, %v1101, %v1097
    %v1103 = vmul.f32 %v1080, %v1102
    %v1104 = vrcp.pop %v1088
    %v1105 = vmul.f32 %v1088, %v1104
    %v1106 = vsub.f32 1.0, %v1105
    %v1107 = vmul.f32 %v1104, %v1106
    %v1108 = vadd.f32 %v1104, %v1107
    %vm1109 = vweird.f32 %v1088
    %vm1110 = vweird.f32 %v1104
    %vm1111 = vmor %vm1109, %vm1110
    %v1112 = vsel %vm1111, %v1104, %v1108
    %v1113 = vand.u32 2147483647, %v1088
    %vm1114 = vcmp.eq.f32.partialorder %v1113, 8.507059e+37
    %v1115 = vand.u32 %v1088, 2147483648
    %v1116 = vor.u32 1.1754944e-38, %v1115
    %v1117 = vsel %vm1114, %v1116, %v1112
    %v1118 = vmul.f32 %v1082, %v1117
    %v1119 = vpack.c.bf16 %v1103, %v1103
    %v1120 = vpack.c.bf16 %v1118, %v1118
    %1121 = vrot.lane.b32.xlu0 %v552, 32
    %v1122 = vpop.permute.xlu0 %1121
    %v1124 = vsel %vm454, %v1119, 0
    %v1127 = vsel %vm558, %v1122, 0
    %1129 = vmatpush.bf16.msra.mxu0 0
    %1130 = vmatpush.bf16.msra.mxu0 0
    %1131 = vmatpush.bf16.msra.mxu0 0
    %1132 = vmatpush.bf16.msra.mxu0 0
    %1133 = vmatpush.bf16.msra.mxu0 0
    %1134 = vmatpush.bf16.msra.mxu0 0
    %1135 = vmatpush.bf16.msra.mxu0 0
    %1136 = vmatpush.bf16.msra.mxu0 %v1127
    %1137 = vmatmul.bf16.gmra.mxu0 %v1124
    %v1138 = vpop.f32.mrf.mxu0
    %v1139 = vadd.f32 0.0, %v1138
    %v1140 = vpop.f32.mrf.mxu0
    %1141 = vdwg.mxu0
    %1142 = vrot.lane.b32.xlu0 %v577, 32
    %v1143 = vpop.permute.xlu0 %1142
    %v1145 = vsel %vm454, %v1120, 0
    %v1148 = vsel %vm558, %v1143, 0
    %1150 = vmatpush.bf16.msra.mxu0 0
    %1151 = vmatpush.bf16.msra.mxu0 0
    %1152 = vmatpush.bf16.msra.mxu0 0
    %1153 = vmatpush.bf16.msra.mxu0 0
    %1154 = vmatpush.bf16.msra.mxu0 0
    %1155 = vmatpush.bf16.msra.mxu0 0
    %1156 = vmatpush.bf16.msra.mxu0 0
    %1157 = vmatpush.bf16.msra.mxu0 %v1148
    %1158 = vmatmul.bf16.gmra.mxu0 %v1145
    %v1159 = vpop.f32.mrf.mxu0
    %v1160 = vadd.f32 0.0, %v1159
    %v1161 = vpop.f32.mrf.mxu0
    %1162 = vdwg.mxu0
    %1163 = vrot.lane.b32.xlu0 %v445, 120
    %v1164 = vpop.permute.xlu0 %1163
    %v1165 = vrot.slane %v1164, 4
    %1166 = vrot.lane.b32.xlu0 %v601, 88
    %v1167 = vpop.permute.xlu0 %1166
    %v1169 = vsel %vm454, %v1167, 0
    %v1172 = vsel %vm454, %v1165, 0
    %1174 = vmatpush.bf16.xpose.msra.mxu0 0
    %1175 = vmatpush.bf16.xpose.msra.mxu0 0
    %1176 = vmatpush.bf16.xpose.msra.mxu0 0
    %1177 = vmatpush.bf16.xpose.msra.mxu0 0
    %1178 = vmatpush.bf16.xpose.msra.mxu0 0
    %1179 = vmatpush.bf16.xpose.msra.mxu0 0
    %1180 = vmatpush.bf16.xpose.msra.mxu0 0
    %1181 = vmatpush.bf16.xpose.msra.mxu0 %v1172
    %1182 = vmatmul.bf16.gmra.mxu0 %v1169
    %v1183 = vpop.f32.mrf.mxu0
    %v1184 = vadd.f32 0.0, %v1183
    %v1185 = vpop.f32.mrf.mxu0
    %1186 = vdwg.mxu0
    %1187 = vrot.lane.b32.xlu0 %v446, 120
    %v1188 = vpop.permute.xlu0 %1187
    %v1189 = vrot.slane %v1188, 4
    %1190 = vrot.lane.b32.xlu0 %v627, 88
    %v1191 = vpop.permute.xlu0 %1190
    %v1193 = vsel %vm454, %v1191, 0
    %v1196 = vsel %vm454, %v1189, 0
    %1198 = vmatpush.bf16.xpose.msra.mxu0 0
    %1199 = vmatpush.bf16.xpose.msra.mxu0 0
    %1200 = vmatpush.bf16.xpose.msra.mxu0 0
    %1201 = vmatpush.bf16.xpose.msra.mxu0 0
    %1202 = vmatpush.bf16.xpose.msra.mxu0 0
    %1203 = vmatpush.bf16.xpose.msra.mxu0 0
    %1204 = vmatpush.bf16.xpose.msra.mxu0 0
    %1205 = vmatpush.bf16.xpose.msra.mxu0 %v1196
    %1206 = vmatmul.bf16.gmra.mxu0 %v1193
    %v1207 = vpop.f32.mrf.mxu0
    %v1208 = vadd.f32 0.0, %v1207
    %v1209 = vpop.f32.mrf.mxu0
    %1210 = vdwg.mxu0
    %v1211 = vmul.f32 %v1184, 0.35355338
    %v1212 = vmul.f32 %v1208, 0.35355338
    %v1213 = vsel %vm454, %v1211, -inf
    %1214 = vmax.xlane.f32.xlu0 %v1213
    %v1215 = vpop.xlane.xlu0 %1214
    %v1216 = vsel %vm454, %v1212, -inf
    %1217 = vmax.xlane.f32.xlu0 %v1216
    %v1218 = vpop.xlane.xlu0 %1217
    %v1219 = vsub.f32 %v1211, %v1215
    %v1220 = vsub.f32 %v1212, %v1218
    %v1221 = vmul.f32 %v1219, 1.442695
    %v1222 = vpow.pop %v1221
    %v1223 = vmul.f32 %v1220, 1.442695
    %v1224 = vpow.pop %v1223
    %v1225 = vsel %vm454, %v1222, 0.0
    %1226 = vadd.xlane.f32.xlu0 %v1225
    %v1227 = vpop.xlane.xlu0 %1226
    %v1228 = vsel %vm454, %v1224, 0.0
    %1229 = vadd.xlane.f32.xlu0 %v1228
    %v1230 = vpop.xlane.xlu0 %1229
    %v1231 = vrcp.pop %v1227
    %v1232 = vmul.f32 %v1227, %v1231
    %v1233 = vsub.f32 1.0, %v1232
    %v1234 = vmul.f32 %v1231, %v1233
    %v1235 = vadd.f32 %v1231, %v1234
    %vm1236 = vweird.f32 %v1227
    %vm1237 = vweird.f32 %v1231
    %vm1238 = vmor %vm1236, %vm1237
    %v1239 = vsel %vm1238, %v1231, %v1235
    %v1240 = vand.u32 2147483647, %v1227
    %vm1241 = vcmp.eq.f32.partialorder %v1240, 8.507059e+37
    %v1242 = vand.u32 %v1227, 2147483648
    %v1243 = vor.u32 1.1754944e-38, %v1242
    %v1244 = vsel %vm1241, %v1243, %v1239
    %v1245 = vmul.f32 %v1222, %v1244
    %v1246 = vrcp.pop %v1230
    %v1247 = vmul.f32 %v1230, %v1246
    %v1248 = vsub.f32 1.0, %v1247
    %v1249 = vmul.f32 %v1246, %v1248
    %v1250 = vadd.f32 %v1246, %v1249
    %vm1251 = vweird.f32 %v1230
    %vm1252 = vweird.f32 %v1246
    %vm1253 = vmor %vm1251, %vm1252
    %v1254 = vsel %vm1253, %v1246, %v1250
    %v1255 = vand.u32 2147483647, %v1230
    %vm1256 = vcmp.eq.f32.partialorder %v1255, 8.507059e+37
    %v1257 = vand.u32 %v1230, 2147483648
    %v1258 = vor.u32 1.1754944e-38, %v1257
    %v1259 = vsel %vm1256, %v1258, %v1254
    %v1260 = vmul.f32 %v1224, %v1259
    %v1261 = vpack.c.bf16 %v1245, %v1245
    %v1262 = vpack.c.bf16 %v1260, %v1260
    %1263 = vrot.lane.b32.xlu0 %v552, 24
    %v1264 = vpop.permute.xlu0 %1263
    %v1266 = vsel %vm454, %v1261, 0
    %v1269 = vsel %vm558, %v1264, 0
    %1271 = vmatpush.bf16.msra.mxu0 0
    %1272 = vmatpush.bf16.msra.mxu0 0
    %1273 = vmatpush.bf16.msra.mxu0 0
    %1274 = vmatpush.bf16.msra.mxu0 0
    %1275 = vmatpush.bf16.msra.mxu0 0
    %1276 = vmatpush.bf16.msra.mxu0 0
    %1277 = vmatpush.bf16.msra.mxu0 0
    %1278 = vmatpush.bf16.msra.mxu0 %v1269
    %1279 = vmatmul.bf16.gmra.mxu0 %v1266
    %v1280 = vpop.f32.mrf.mxu0
    %v1281 = vadd.f32 0.0, %v1280
    %v1282 = vpop.f32.mrf.mxu0
    %1283 = vdwg.mxu0
    %1284 = vrot.lane.b32.xlu0 %v577, 24
    %v1285 = vpop.permute.xlu0 %1284
    %v1287 = vsel %vm454, %v1262, 0
    %v1290 = vsel %vm558, %v1285, 0
    %1292 = vmatpush.bf16.msra.mxu0 0
    %1293 = vmatpush.bf16.msra.mxu0 0
    %1294 = vmatpush.bf16.msra.mxu0 0
    %1295 = vmatpush.bf16.msra.mxu0 0
    %1296 = vmatpush.bf16.msra.mxu0 0
    %1297 = vmatpush.bf16.msra.mxu0 0
    %1298 = vmatpush.bf16.msra.mxu0 0
    %1299 = vmatpush.bf16.msra.mxu0 %v1290
    %1300 = vmatmul.bf16.gmra.mxu0 %v1287
    %v1301 = vpop.f32.mrf.mxu0
    %v1302 = vadd.f32 0.0, %v1301
    %v1303 = vpop.f32.mrf.mxu0
    %1304 = vdwg.mxu0
    %1305 = vrot.lane.b32.xlu0 %v445, 112
    %v1306 = vpop.permute.xlu0 %1305
    %v1307 = vrot.slane %v1306, 4
    %1308 = vrot.lane.b32.xlu0 %v601, 80
    %v1309 = vpop.permute.xlu0 %1308
    %v1311 = vsel %vm454, %v1309, 0
    %v1314 = vsel %vm454, %v1307, 0
    %1316 = vmatpush.bf16.xpose.msra.mxu0 0
    %1317 = vmatpush.bf16.xpose.msra.mxu0 0
    %1318 = vmatpush.bf16.xpose.msra.mxu0 0
    %1319 = vmatpush.bf16.xpose.msra.mxu0 0
    %1320 = vmatpush.bf16.xpose.msra.mxu0 0
    %1321 = vmatpush.bf16.xpose.msra.mxu0 0
    %1322 = vmatpush.bf16.xpose.msra.mxu0 0
    %1323 = vmatpush.bf16.xpose.msra.mxu0 %v1314
    %1324 = vmatmul.bf16.gmra.mxu0 %v1311
    %v1325 = vpop.f32.mrf.mxu0
    %v1326 = vadd.f32 0.0, %v1325
    %v1327 = vpop.f32.mrf.mxu0
    %1328 = vdwg.mxu0
    %1329 = vrot.lane.b32.xlu0 %v446, 112
    %v1330 = vpop.permute.xlu0 %1329
    %v1331 = vrot.slane %v1330, 4
    %1332 = vrot.lane.b32.xlu0 %v627, 80
    %v1333 = vpop.permute.xlu0 %1332
    %v1335 = vsel %vm454, %v1333, 0
    %v1338 = vsel %vm454, %v1331, 0
    %1340 = vmatpush.bf16.xpose.msra.mxu0 0
    %1341 = vmatpush.bf16.xpose.msra.mxu0 0
    %1342 = vmatpush.bf16.xpose.msra.mxu0 0
    %1343 = vmatpush.bf16.xpose.msra.mxu0 0
    %1344 = vmatpush.bf16.xpose.msra.mxu0 0
    %1345 = vmatpush.bf16.xpose.msra.mxu0 0
    %1346 = vmatpush.bf16.xpose.msra.mxu0 0
    %1347 = vmatpush.bf16.xpose.msra.mxu0 %v1338
    %1348 = vmatmul.bf16.gmra.mxu0 %v1335
    %v1349 = vpop.f32.mrf.mxu0
    %v1350 = vadd.f32 0.0, %v1349
    %v1351 = vpop.f32.mrf.mxu0
    %1352 = vdwg.mxu0
    %v1353 = vmul.f32 %v1326, 0.35355338
    %v1354 = vmul.f32 %v1350, 0.35355338
    %v1355 = vsel %vm454, %v1353, -inf
    %1356 = vmax.xlane.f32.xlu0 %v1355
    %v1357 = vpop.xlane.xlu0 %1356
    %v1358 = vsel %vm454, %v1354, -inf
    %1359 = vmax.xlane.f32.xlu0 %v1358
    %v1360 = vpop.xlane.xlu0 %1359
    %v1361 = vsub.f32 %v1353, %v1357
    %v1362 = vsub.f32 %v1354, %v1360
    %v1363 = vmul.f32 %v1361, 1.442695
    %v1364 = vpow.pop %v1363
    %v1365 = vmul.f32 %v1362, 1.442695
    %v1366 = vpow.pop %v1365
    %v1367 = vsel %vm454, %v1364, 0.0
    %1368 = vadd.xlane.f32.xlu0 %v1367
    %v1369 = vpop.xlane.xlu0 %1368
    %v1370 = vsel %vm454, %v1366, 0.0
    %1371 = vadd.xlane.f32.xlu0 %v1370
    %v1372 = vpop.xlane.xlu0 %1371
    %v1373 = vrcp.pop %v1369
    %v1374 = vmul.f32 %v1369, %v1373
    %v1375 = vsub.f32 1.0, %v1374
    %v1376 = vmul.f32 %v1373, %v1375
    %v1377 = vadd.f32 %v1373, %v1376
    %vm1378 = vweird.f32 %v1369
    %vm1379 = vweird.f32 %v1373
    %vm1380 = vmor %vm1378, %vm1379
    %v1381 = vsel %vm1380, %v1373, %v1377
    %v1382 = vand.u32 2147483647, %v1369
    %vm1383 = vcmp.eq.f32.partialorder %v1382, 8.507059e+37
    %v1384 = vand.u32 %v1369, 2147483648
    %v1385 = vor.u32 1.1754944e-38, %v1384
    %v1386 = vsel %vm1383, %v1385, %v1381
    %v1387 = vmul.f32 %v1364, %v1386
    %v1388 = vrcp.pop %v1372
    %v1389 = vmul.f32 %v1372, %v1388
    %v1390 = vsub.f32 1.0, %v1389
    %v1391 = vmul.f32 %v1388, %v1390
    %v1392 = vadd.f32 %v1388, %v1391
    %vm1393 = vweird.f32 %v1372
    %vm1394 = vweird.f32 %v1388
    %vm1395 = vmor %vm1393, %vm1394
    %v1396 = vsel %vm1395, %v1388, %v1392
    %v1397 = vand.u32 2147483647, %v1372
    %vm1398 = vcmp.eq.f32.partialorder %v1397, 8.507059e+37
    %v1399 = vand.u32 %v1372, 2147483648
    %v1400 = vor.u32 1.1754944e-38, %v1399
    %v1401 = vsel %vm1398, %v1400, %v1396
    %v1402 = vmul.f32 %v1366, %v1401
    %v1403 = vpack.c.bf16 %v1387, %v1387
    %v1404 = vpack.c.bf16 %v1402, %v1402
    %1405 = vrot.lane.b32.xlu0 %v552, 16
    %v1406 = vpop.permute.xlu0 %1405
    %v1408 = vsel %vm454, %v1403, 0
    %v1411 = vsel %vm558, %v1406, 0
    %1413 = vmatpush.bf16.msra.mxu0 0
    %1414 = vmatpush.bf16.msra.mxu0 0
    %1415 = vmatpush.bf16.msra.mxu0 0
    %1416 = vmatpush.bf16.msra.mxu0 0
    %1417 = vmatpush.bf16.msra.mxu0 0
    %1418 = vmatpush.bf16.msra.mxu0 0
    %1419 = vmatpush.bf16.msra.mxu0 0
    %1420 = vmatpush.bf16.msra.mxu0 %v1411
    %1421 = vmatmul.bf16.gmra.mxu0 %v1408
    %v1422 = vpop.f32.mrf.mxu0
    %v1423 = vadd.f32 0.0, %v1422
    %v1424 = vpop.f32.mrf.mxu0
    %1425 = vdwg.mxu0
    %1426 = vrot.lane.b32.xlu0 %v577, 16
    %v1427 = vpop.permute.xlu0 %1426
    %v1429 = vsel %vm454, %v1404, 0
    %v1432 = vsel %vm558, %v1427, 0
    %1434 = vmatpush.bf16.msra.mxu0 0
    %1435 = vmatpush.bf16.msra.mxu0 0
    %1436 = vmatpush.bf16.msra.mxu0 0
    %1437 = vmatpush.bf16.msra.mxu0 0
    %1438 = vmatpush.bf16.msra.mxu0 0
    %1439 = vmatpush.bf16.msra.mxu0 0
    %1440 = vmatpush.bf16.msra.mxu0 0
    %1441 = vmatpush.bf16.msra.mxu0 %v1432
    %1442 = vmatmul.bf16.gmra.mxu0 %v1429
    %v1443 = vpop.f32.mrf.mxu0
    %v1444 = vadd.f32 0.0, %v1443
    %v1445 = vpop.f32.mrf.mxu0
    %1446 = vdwg.mxu0
    %1447 = vrot.lane.b32.xlu0 %v445, 104
    %v1448 = vpop.permute.xlu0 %1447
    %v1449 = vrot.slane %v1448, 4
    %1450 = vrot.lane.b32.xlu0 %v601, 72
    %v1451 = vpop.permute.xlu0 %1450
    %v1453 = vsel %vm454, %v1451, 0
    %v1456 = vsel %vm454, %v1449, 0
    %1458 = vmatpush.bf16.xpose.msra.mxu0 0
    %1459 = vmatpush.bf16.xpose.msra.mxu0 0
    %1460 = vmatpush.bf16.xpose.msra.mxu0 0
    %1461 = vmatpush.bf16.xpose.msra.mxu0 0
    %1462 = vmatpush.bf16.xpose.msra.mxu0 0
    %1463 = vmatpush.bf16.xpose.msra.mxu0 0
    %1464 = vmatpush.bf16.xpose.msra.mxu0 0
    %1465 = vmatpush.bf16.xpose.msra.mxu0 %v1456
    %1466 = vmatmul.bf16.gmra.mxu0 %v1453
    %v1467 = vpop.f32.mrf.mxu0
    %v1468 = vadd.f32 0.0, %v1467
    %v1469 = vpop.f32.mrf.mxu0
    %1470 = vdwg.mxu0
    %1471 = vrot.lane.b32.xlu0 %v446, 104
    %v1472 = vpop.permute.xlu0 %1471
    %v1473 = vrot.slane %v1472, 4
    %1474 = vrot.lane.b32.xlu0 %v627, 72
    %v1475 = vpop.permute.xlu0 %1474
    %v1477 = vsel %vm454, %v1475, 0
    %v1480 = vsel %vm454, %v1473, 0
    %1482 = vmatpush.bf16.xpose.msra.mxu0 0
    %1483 = vmatpush.bf16.xpose.msra.mxu0 0
    %1484 = vmatpush.bf16.xpose.msra.mxu0 0
    %1485 = vmatpush.bf16.xpose.msra.mxu0 0
    %1486 = vmatpush.bf16.xpose.msra.mxu0 0
    %1487 = vmatpush.bf16.xpose.msra.mxu0 0
    %1488 = vmatpush.bf16.xpose.msra.mxu0 0
    %1489 = vmatpush.bf16.xpose.msra.mxu0 %v1480
    %1490 = vmatmul.bf16.gmra.mxu0 %v1477
    %v1491 = vpop.f32.mrf.mxu0
    %v1492 = vadd.f32 0.0, %v1491
    %v1493 = vpop.f32.mrf.mxu0
    %1494 = vdwg.mxu0
    %v1495 = vmul.f32 %v1468, 0.35355338
    %v1496 = vmul.f32 %v1492, 0.35355338
    %v1497 = vsel %vm454, %v1495, -inf
    %1498 = vmax.xlane.f32.xlu0 %v1497
    %v1499 = vpop.xlane.xlu0 %1498
    %v1500 = vsel %vm454, %v1496, -inf
    %1501 = vmax.xlane.f32.xlu0 %v1500
    %v1502 = vpop.xlane.xlu0 %1501
    %v1503 = vsub.f32 %v1495, %v1499
    %v1504 = vsub.f32 %v1496, %v1502
    %v1505 = vmul.f32 %v1503, 1.442695
    %v1506 = vpow.pop %v1505
    %v1507 = vmul.f32 %v1504, 1.442695
    %v1508 = vpow.pop %v1507
    %v1509 = vsel %vm454, %v1506, 0.0
    %1510 = vadd.xlane.f32.xlu0 %v1509
    %v1511 = vpop.xlane.xlu0 %1510
    %v1512 = vsel %vm454, %v1508, 0.0
    %1513 = vadd.xlane.f32.xlu0 %v1512
    %v1514 = vpop.xlane.xlu0 %1513
    %v1515 = vrcp.pop %v1511
    %v1516 = vmul.f32 %v1511, %v1515
    %v1517 = vsub.f32 1.0, %v1516
    %v1518 = vmul.f32 %v1515, %v1517
    %v1519 = vadd.f32 %v1515, %v1518
    %vm1520 = vweird.f32 %v1511
    %vm1521 = vweird.f32 %v1515
    %vm1522 = vmor %vm1520, %vm1521
    %v1523 = vsel %vm1522, %v1515, %v1519
    %v1524 = vand.u32 2147483647, %v1511
    %vm1525 = vcmp.eq.f32.partialorder %v1524, 8.507059e+37
    %v1526 = vand.u32 %v1511, 2147483648
    %v1527 = vor.u32 1.1754944e-38, %v1526
    %v1528 = vsel %vm1525, %v1527, %v1523
    %v1529 = vmul.f32 %v1506, %v1528
    %v1530 = vrcp.pop %v1514
    %v1531 = vmul.f32 %v1514, %v1530
    %v1532 = vsub.f32 1.0, %v1531
    %v1533 = vmul.f32 %v1530, %v1532
    %v1534 = vadd.f32 %v1530, %v1533
    %vm1535 = vweird.f32 %v1514
    %vm1536 = vweird.f32 %v1530
    %vm1537 = vmor %vm1535, %vm1536
    %v1538 = vsel %vm1537, %v1530, %v1534
    %v1539 = vand.u32 2147483647, %v1514
    %vm1540 = vcmp.eq.f32.partialorder %v1539, 8.507059e+37
    %v1541 = vand.u32 %v1514, 2147483648
    %v1542 = vor.u32 1.1754944e-38, %v1541
    %v1543 = vsel %vm1540, %v1542, %v1538
    %v1544 = vmul.f32 %v1508, %v1543
    %v1545 = vpack.c.bf16 %v1529, %v1529
    %v1546 = vpack.c.bf16 %v1544, %v1544
    %1547 = vrot.lane.b32.xlu0 %v552, 8
    %v1548 = vpop.permute.xlu0 %1547
    %v1550 = vsel %vm454, %v1545, 0
    %v1553 = vsel %vm558, %v1548, 0
    %1555 = vmatpush.bf16.msra.mxu0 0
    %1556 = vmatpush.bf16.msra.mxu0 0
    %1557 = vmatpush.bf16.msra.mxu0 0
    %1558 = vmatpush.bf16.msra.mxu0 0
    %1559 = vmatpush.bf16.msra.mxu0 0
    %1560 = vmatpush.bf16.msra.mxu0 0
    %1561 = vmatpush.bf16.msra.mxu0 0
    %1562 = vmatpush.bf16.msra.mxu0 %v1553
    %1563 = vmatmul.bf16.gmra.mxu0 %v1550
    %v1564 = vpop.f32.mrf.mxu0
    %v1565 = vadd.f32 0.0, %v1564
    %v1566 = vpop.f32.mrf.mxu0
    %1567 = vdwg.mxu0
    %1568 = vrot.lane.b32.xlu0 %v577, 8
    %v1569 = vpop.permute.xlu0 %1568
    %v1571 = vsel %vm454, %v1546, 0
    %v1574 = vsel %vm558, %v1569, 0
    %1576 = vmatpush.bf16.msra.mxu0 0
    %1577 = vmatpush.bf16.msra.mxu0 0
    %1578 = vmatpush.bf16.msra.mxu0 0
    %1579 = vmatpush.bf16.msra.mxu0 0
    %1580 = vmatpush.bf16.msra.mxu0 0
    %1581 = vmatpush.bf16.msra.mxu0 0
    %1582 = vmatpush.bf16.msra.mxu0 0
    %1583 = vmatpush.bf16.msra.mxu0 %v1574
    %1584 = vmatmul.bf16.gmra.mxu0 %v1571
    %v1585 = vpop.f32.mrf.mxu0
    %v1586 = vadd.f32 0.0, %v1585
    %v1587 = vpop.f32.mrf.mxu0
    %1588 = vdwg.mxu0
    %1589 = vrot.lane.b32.xlu0 %v445, 96
    %v1590 = vpop.permute.xlu0 %1589
    %v1591 = vrot.slane %v1590, 4
    %1592 = vrot.lane.b32.xlu0 %v601, 64
    %v1593 = vpop.permute.xlu0 %1592
    %v1595 = vsel %vm454, %v1593, 0
    %v1598 = vsel %vm454, %v1591, 0
    %1600 = vmatpush.bf16.xpose.msra.mxu0 0
    %1601 = vmatpush.bf16.xpose.msra.mxu0 0
    %1602 = vmatpush.bf16.xpose.msra.mxu0 0
    %1603 = vmatpush.bf16.xpose.msra.mxu0 0
    %1604 = vmatpush.bf16.xpose.msra.mxu0 0
    %1605 = vmatpush.bf16.xpose.msra.mxu0 0
    %1606 = vmatpush.bf16.xpose.msra.mxu0 0
    %1607 = vmatpush.bf16.xpose.msra.mxu0 %v1598
    %1608 = vmatmul.bf16.gmra.mxu0 %v1595
    %v1609 = vpop.f32.mrf.mxu0
    %v1610 = vadd.f32 0.0, %v1609
    %v1611 = vpop.f32.mrf.mxu0
    %1612 = vdwg.mxu0
    %1613 = vrot.lane.b32.xlu0 %v446, 96
    %v1614 = vpop.permute.xlu0 %1613
    %v1615 = vrot.slane %v1614, 4
    %1616 = vrot.lane.b32.xlu0 %v627, 64
    %v1617 = vpop.permute.xlu0 %1616
    %v1619 = vsel %vm454, %v1617, 0
    %v1622 = vsel %vm454, %v1615, 0
    %1624 = vmatpush.bf16.xpose.msra.mxu0 0
    %1625 = vmatpush.bf16.xpose.msra.mxu0 0
    %1626 = vmatpush.bf16.xpose.msra.mxu0 0
    %1627 = vmatpush.bf16.xpose.msra.mxu0 0
    %1628 = vmatpush.bf16.xpose.msra.mxu0 0
    %1629 = vmatpush.bf16.xpose.msra.mxu0 0
    %1630 = vmatpush.bf16.xpose.msra.mxu0 0
    %1631 = vmatpush.bf16.xpose.msra.mxu0 %v1622
    %1632 = vmatmul.bf16.gmra.mxu0 %v1619
    %v1633 = vpop.f32.mrf.mxu0
    %v1634 = vadd.f32 0.0, %v1633
    %v1635 = vpop.f32.mrf.mxu0
    %1636 = vdwg.mxu0
    %v1637 = vmul.f32 %v1610, 0.35355338
    %v1638 = vmul.f32 %v1634, 0.35355338
    %v1639 = vsel %vm454, %v1637, -inf
    %1640 = vmax.xlane.f32.xlu0 %v1639
    %v1641 = vpop.xlane.xlu0 %1640
    %v1642 = vsel %vm454, %v1638, -inf
    %1643 = vmax.xlane.f32.xlu0 %v1642
    %v1644 = vpop.xlane.xlu0 %1643
    %v1645 = vsub.f32 %v1637, %v1641
    %v1646 = vsub.f32 %v1638, %v1644
    %v1647 = vmul.f32 %v1645, 1.442695
    %v1648 = vpow.pop %v1647
    %v1649 = vmul.f32 %v1646, 1.442695
    %v1650 = vpow.pop %v1649
    %v1651 = vsel %vm454, %v1648, 0.0
    %1652 = vadd.xlane.f32.xlu0 %v1651
    %v1653 = vpop.xlane.xlu0 %1652
    %v1654 = vsel %vm454, %v1650, 0.0
    %1655 = vadd.xlane.f32.xlu0 %v1654
    %v1656 = vpop.xlane.xlu0 %1655
    %v1657 = vrcp.pop %v1653
    %v1658 = vmul.f32 %v1653, %v1657
    %v1659 = vsub.f32 1.0, %v1658
    %v1660 = vmul.f32 %v1657, %v1659
    %v1661 = vadd.f32 %v1657, %v1660
    %vm1662 = vweird.f32 %v1653
    %vm1663 = vweird.f32 %v1657
    %vm1664 = vmor %vm1662, %vm1663
    %v1665 = vsel %vm1664, %v1657, %v1661
    %v1666 = vand.u32 2147483647, %v1653
    %vm1667 = vcmp.eq.f32.partialorder %v1666, 8.507059e+37
    %v1668 = vand.u32 %v1653, 2147483648
    %v1669 = vor.u32 1.1754944e-38, %v1668
    %v1670 = vsel %vm1667, %v1669, %v1665
    %v1671 = vmul.f32 %v1648, %v1670
    %v1672 = vrcp.pop %v1656
    %v1673 = vmul.f32 %v1656, %v1672
    %v1674 = vsub.f32 1.0, %v1673
    %v1675 = vmul.f32 %v1672, %v1674
    %v1676 = vadd.f32 %v1672, %v1675
    %vm1677 = vweird.f32 %v1656
    %vm1678 = vweird.f32 %v1672
    %vm1679 = vmor %vm1677, %vm1678
    %v1680 = vsel %vm1679, %v1672, %v1676
    %v1681 = vand.u32 2147483647, %v1656
    %vm1682 = vcmp.eq.f32.partialorder %v1681, 8.507059e+37
    %v1683 = vand.u32 %v1656, 2147483648
    %v1684 = vor.u32 1.1754944e-38, %v1683
    %v1685 = vsel %vm1682, %v1684, %v1680
    %v1686 = vmul.f32 %v1650, %v1685
    %v1687 = vpack.c.bf16 %v1671, %v1671
    %v1688 = vpack.c.bf16 %v1686, %v1686
    %v1689 = vrot.slane %v447, 4
    %v1691 = vsel %vm454, %v1687, 0
    %v1694 = vsel %vm558, %v1689, 0
    %1696 = vmatpush.bf16.msra.mxu0 0
    %1697 = vmatpush.bf16.msra.mxu0 0
    %1698 = vmatpush.bf16.msra.mxu0 0
    %1699 = vmatpush.bf16.msra.mxu0 0
    %1700 = vmatpush.bf16.msra.mxu0 0
    %1701 = vmatpush.bf16.msra.mxu0 0
    %1702 = vmatpush.bf16.msra.mxu0 0
    %1703 = vmatpush.bf16.msra.mxu0 %v1694
    %1704 = vmatmul.bf16.gmra.mxu0 %v1691
    %v1705 = vpop.f32.mrf.mxu0
    %v1706 = vadd.f32 0.0, %v1705
    %v1707 = vpop.f32.mrf.mxu0
    %1708 = vdwg.mxu0
    %v1709 = vrot.slane %v448, 4
    %v1711 = vsel %vm454, %v1688, 0
    %v1714 = vsel %vm558, %v1709, 0
    %1716 = vmatpush.bf16.msra.mxu0 0
    %1717 = vmatpush.bf16.msra.mxu0 0
    %1718 = vmatpush.bf16.msra.mxu0 0
    %1719 = vmatpush.bf16.msra.mxu0 0
    %1720 = vmatpush.bf16.msra.mxu0 0
    %1721 = vmatpush.bf16.msra.mxu0 0
    %1722 = vmatpush.bf16.msra.mxu0 0
    %1723 = vmatpush.bf16.msra.mxu0 %v1714
    %1724 = vmatmul.bf16.gmra.mxu0 %v1711
    %v1725 = vpop.f32.mrf.mxu0
    %v1726 = vadd.f32 0.0, %v1725
    %v1727 = vpop.f32.mrf.mxu0
    %1728 = vdwg.mxu0
    %1729 = vrot.lane.b32.xlu0 %v445, 88
    %v1730 = vpop.permute.xlu0 %1729
    %v1731 = vrot.slane %v1730, 4
    %1732 = vrot.lane.b32.xlu0 %v601, 56
    %v1733 = vpop.permute.xlu0 %1732
    %v1735 = vsel %vm454, %v1733, 0
    %v1738 = vsel %vm454, %v1731, 0
    %1740 = vmatpush.bf16.xpose.msra.mxu0 0
    %1741 = vmatpush.bf16.xpose.msra.mxu0 0
    %1742 = vmatpush.bf16.xpose.msra.mxu0 0
    %1743 = vmatpush.bf16.xpose.msra.mxu0 0
    %1744 = vmatpush.bf16.xpose.msra.mxu0 0
    %1745 = vmatpush.bf16.xpose.msra.mxu0 0
    %1746 = vmatpush.bf16.xpose.msra.mxu0 0
    %1747 = vmatpush.bf16.xpose.msra.mxu0 %v1738
    %1748 = vmatmul.bf16.gmra.mxu0 %v1735
    %v1749 = vpop.f32.mrf.mxu0
    %v1750 = vadd.f32 0.0, %v1749
    %v1751 = vpop.f32.mrf.mxu0
    %1752 = vdwg.mxu0
    %1753 = vrot.lane.b32.xlu0 %v446, 88
    %v1754 = vpop.permute.xlu0 %1753
    %v1755 = vrot.slane %v1754, 4
    %1756 = vrot.lane.b32.xlu0 %v627, 56
    %v1757 = vpop.permute.xlu0 %1756
    %v1759 = vsel %vm454, %v1757, 0
    %v1762 = vsel %vm454, %v1755, 0
    %1764 = vmatpush.bf16.xpose.msra.mxu0 0
    %1765 = vmatpush.bf16.xpose.msra.mxu0 0
    %1766 = vmatpush.bf16.xpose.msra.mxu0 0
    %1767 = vmatpush.bf16.xpose.msra.mxu0 0
    %1768 = vmatpush.bf16.xpose.msra.mxu0 0
    %1769 = vmatpush.bf16.xpose.msra.mxu0 0
    %1770 = vmatpush.bf16.xpose.msra.mxu0 0
    %1771 = vmatpush.bf16.xpose.msra.mxu0 %v1762
    %1772 = vmatmul.bf16.gmra.mxu0 %v1759
    %v1773 = vpop.f32.mrf.mxu0
    %v1774 = vadd.f32 0.0, %v1773
    %v1775 = vpop.f32.mrf.mxu0
    %1776 = vdwg.mxu0
    %v1777 = vmul.f32 %v1750, 0.35355338
    %v1778 = vmul.f32 %v1774, 0.35355338
    %v1779 = vsel %vm454, %v1777, -inf
    %1780 = vmax.xlane.f32.xlu0 %v1779
    %v1781 = vpop.xlane.xlu0 %1780
    %v1782 = vsel %vm454, %v1778, -inf
    %1783 = vmax.xlane.f32.xlu0 %v1782
    %v1784 = vpop.xlane.xlu0 %1783
    %v1785 = vsub.f32 %v1777, %v1781
    %v1786 = vsub.f32 %v1778, %v1784
    %v1787 = vmul.f32 %v1785, 1.442695
    %v1788 = vpow.pop %v1787
    %v1789 = vmul.f32 %v1786, 1.442695
    %v1790 = vpow.pop %v1789
    %v1791 = vsel %vm454, %v1788, 0.0
    %1792 = vadd.xlane.f32.xlu0 %v1791
    %v1793 = vpop.xlane.xlu0 %1792
    %v1794 = vsel %vm454, %v1790, 0.0
    %1795 = vadd.xlane.f32.xlu0 %v1794
    %v1796 = vpop.xlane.xlu0 %1795
    %v1797 = vrcp.pop %v1793
    %v1798 = vmul.f32 %v1793, %v1797
    %v1799 = vsub.f32 1.0, %v1798
    %v1800 = vmul.f32 %v1797, %v1799
    %v1801 = vadd.f32 %v1797, %v1800
    %vm1802 = vweird.f32 %v1793
    %vm1803 = vweird.f32 %v1797
    %vm1804 = vmor %vm1802, %vm1803
    %v1805 = vsel %vm1804, %v1797, %v1801
    %v1806 = vand.u32 2147483647, %v1793
    %vm1807 = vcmp.eq.f32.partialorder %v1806, 8.507059e+37
    %v1808 = vand.u32 %v1793, 2147483648
    %v1809 = vor.u32 1.1754944e-38, %v1808
    %v1810 = vsel %vm1807, %v1809, %v1805
    %v1811 = vmul.f32 %v1788, %v1810
    %v1812 = vrcp.pop %v1796
    %v1813 = vmul.f32 %v1796, %v1812
    %v1814 = vsub.f32 1.0, %v1813
    %v1815 = vmul.f32 %v1812, %v1814
    %v1816 = vadd.f32 %v1812, %v1815
    %vm1817 = vweird.f32 %v1796
    %vm1818 = vweird.f32 %v1812
    %vm1819 = vmor %vm1817, %vm1818
    %v1820 = vsel %vm1819, %v1812, %v1816
    %v1821 = vand.u32 2147483647, %v1796
    %vm1822 = vcmp.eq.f32.partialorder %v1821, 8.507059e+37
    %v1823 = vand.u32 %v1796, 2147483648
    %v1824 = vor.u32 1.1754944e-38, %v1823
    %v1825 = vsel %vm1822, %v1824, %v1820
    %v1826 = vmul.f32 %v1790, %v1825
    %v1827 = vpack.c.bf16 %v1811, %v1811
    %v1828 = vpack.c.bf16 %v1826, %v1826
    %1829 = vrot.lane.b32.xlu0 %v447, 120
    %v1830 = vpop.permute.xlu0 %1829
    %v1831 = vrot.slane %v1830, 4
    %v1833 = vsel %vm454, %v1827, 0
    %v1836 = vsel %vm558, %v1831, 0
    %1838 = vmatpush.bf16.msra.mxu0 0
    %1839 = vmatpush.bf16.msra.mxu0 0
    %1840 = vmatpush.bf16.msra.mxu0 0
    %1841 = vmatpush.bf16.msra.mxu0 0
    %1842 = vmatpush.bf16.msra.mxu0 0
    %1843 = vmatpush.bf16.msra.mxu0 0
    %1844 = vmatpush.bf16.msra.mxu0 0
    %1845 = vmatpush.bf16.msra.mxu0 %v1836
    %1846 = vmatmul.bf16.gmra.mxu0 %v1833
    %v1847 = vpop.f32.mrf.mxu0
    %v1848 = vadd.f32 0.0, %v1847
    %v1849 = vpop.f32.mrf.mxu0
    %1850 = vdwg.mxu0
    %1851 = vrot.lane.b32.xlu0 %v448, 120
    %v1852 = vpop.permute.xlu0 %1851
    %v1853 = vrot.slane %v1852, 4
    %v1855 = vsel %vm454, %v1828, 0
    %v1858 = vsel %vm558, %v1853, 0
    %1860 = vmatpush.bf16.msra.mxu0 0
    %1861 = vmatpush.bf16.msra.mxu0 0
    %1862 = vmatpush.bf16.msra.mxu0 0
    %1863 = vmatpush.bf16.msra.mxu0 0
    %1864 = vmatpush.bf16.msra.mxu0 0
    %1865 = vmatpush.bf16.msra.mxu0 0
    %1866 = vmatpush.bf16.msra.mxu0 0
    %1867 = vmatpush.bf16.msra.mxu0 %v1858
    %1868 = vmatmul.bf16.gmra.mxu0 %v1855
    %v1869 = vpop.f32.mrf.mxu0
    %v1870 = vadd.f32 0.0, %v1869
    %v1871 = vpop.f32.mrf.mxu0
    %1872 = vdwg.mxu0
    %1873 = vrot.lane.b32.xlu0 %v445, 80
    %v1874 = vpop.permute.xlu0 %1873
    %v1875 = vrot.slane %v1874, 4
    %1876 = vrot.lane.b32.xlu0 %v601, 48
    %v1877 = vpop.permute.xlu0 %1876
    %v1879 = vsel %vm454, %v1877, 0
    %v1882 = vsel %vm454, %v1875, 0
    %1884 = vmatpush.bf16.xpose.msra.mxu0 0
    %1885 = vmatpush.bf16.xpose.msra.mxu0 0
    %1886 = vmatpush.bf16.xpose.msra.mxu0 0
    %1887 = vmatpush.bf16.xpose.msra.mxu0 0
    %1888 = vmatpush.bf16.xpose.msra.mxu0 0
    %1889 = vmatpush.bf16.xpose.msra.mxu0 0
    %1890 = vmatpush.bf16.xpose.msra.mxu0 0
    %1891 = vmatpush.bf16.xpose.msra.mxu0 %v1882
    %1892 = vmatmul.bf16.gmra.mxu0 %v1879
    %v1893 = vpop.f32.mrf.mxu0
    %v1894 = vadd.f32 0.0, %v1893
    %v1895 = vpop.f32.mrf.mxu0
    %1896 = vdwg.mxu0
    %1897 = vrot.lane.b32.xlu0 %v446, 80
    %v1898 = vpop.permute.xlu0 %1897
    %v1899 = vrot.slane %v1898, 4
    %1900 = vrot.lane.b32.xlu0 %v627, 48
    %v1901 = vpop.permute.xlu0 %1900
    %v1903 = vsel %vm454, %v1901, 0
    %v1906 = vsel %vm454, %v1899, 0
    %1908 = vmatpush.bf16.xpose.msra.mxu0 0
    %1909 = vmatpush.bf16.xpose.msra.mxu0 0
    %1910 = vmatpush.bf16.xpose.msra.mxu0 0
    %1911 = vmatpush.bf16.xpose.msra.mxu0 0
    %1912 = vmatpush.bf16.xpose.msra.mxu0 0
    %1913 = vmatpush.bf16.xpose.msra.mxu0 0
    %1914 = vmatpush.bf16.xpose.msra.mxu0 0
    %1915 = vmatpush.bf16.xpose.msra.mxu0 %v1906
    %1916 = vmatmul.bf16.gmra.mxu0 %v1903
    %v1917 = vpop.f32.mrf.mxu0
    %v1918 = vadd.f32 0.0, %v1917
    %v1919 = vpop.f32.mrf.mxu0
    %1920 = vdwg.mxu0
    %v1921 = vmul.f32 %v1894, 0.35355338
    %v1922 = vmul.f32 %v1918, 0.35355338
    %v1923 = vsel %vm454, %v1921, -inf
    %1924 = vmax.xlane.f32.xlu0 %v1923
    %v1925 = vpop.xlane.xlu0 %1924
    %v1926 = vsel %vm454, %v1922, -inf
    %1927 = vmax.xlane.f32.xlu0 %v1926
    %v1928 = vpop.xlane.xlu0 %1927
    %v1929 = vsub.f32 %v1921, %v1925
    %v1930 = vsub.f32 %v1922, %v1928
    %v1931 = vmul.f32 %v1929, 1.442695
    %v1932 = vpow.pop %v1931
    %v1933 = vmul.f32 %v1930, 1.442695
    %v1934 = vpow.pop %v1933
    %v1935 = vsel %vm454, %v1932, 0.0
    %1936 = vadd.xlane.f32.xlu0 %v1935
    %v1937 = vpop.xlane.xlu0 %1936
    %v1938 = vsel %vm454, %v1934, 0.0
    %1939 = vadd.xlane.f32.xlu0 %v1938
    %v1940 = vpop.xlane.xlu0 %1939
    %v1941 = vrcp.pop %v1937
    %v1942 = vmul.f32 %v1937, %v1941
    %v1943 = vsub.f32 1.0, %v1942
    %v1944 = vmul.f32 %v1941, %v1943
    %v1945 = vadd.f32 %v1941, %v1944
    %vm1946 = vweird.f32 %v1937
    %vm1947 = vweird.f32 %v1941
    %vm1948 = vmor %vm1946, %vm1947
    %v1949 = vsel %vm1948, %v1941, %v1945
    %v1950 = vand.u32 2147483647, %v1937
    %vm1951 = vcmp.eq.f32.partialorder %v1950, 8.507059e+37
    %v1952 = vand.u32 %v1937, 2147483648
    %v1953 = vor.u32 1.1754944e-38, %v1952
    %v1954 = vsel %vm1951, %v1953, %v1949
    %v1955 = vmul.f32 %v1932, %v1954
    %v1956 = vrcp.pop %v1940
    %v1957 = vmul.f32 %v1940, %v1956
    %v1958 = vsub.f32 1.0, %v1957
    %v1959 = vmul.f32 %v1956, %v1958
    %v1960 = vadd.f32 %v1956, %v1959
    %vm1961 = vweird.f32 %v1940
    %vm1962 = vweird.f32 %v1956
    %vm1963 = vmor %vm1961, %vm1962
    %v1964 = vsel %vm1963, %v1956, %v1960
    %v1965 = vand.u32 2147483647, %v1940
    %vm1966 = vcmp.eq.f32.partialorder %v1965, 8.507059e+37
    %v1967 = vand.u32 %v1940, 2147483648
    %v1968 = vor.u32 1.1754944e-38, %v1967
    %v1969 = vsel %vm1966, %v1968, %v1964
    %v1970 = vmul.f32 %v1934, %v1969
    %v1971 = vpack.c.bf16 %v1955, %v1955
    %v1972 = vpack.c.bf16 %v1970, %v1970
    %1973 = vrot.lane.b32.xlu0 %v447, 112
    %v1974 = vpop.permute.xlu0 %1973
    %v1975 = vrot.slane %v1974, 4
    %v1977 = vsel %vm454, %v1971, 0
    %v1980 = vsel %vm558, %v1975, 0
    %1982 = vmatpush.bf16.msra.mxu0 0
    %1983 = vmatpush.bf16.msra.mxu0 0
    %1984 = vmatpush.bf16.msra.mxu0 0
    %1985 = vmatpush.bf16.msra.mxu0 0
    %1986 = vmatpush.bf16.msra.mxu0 0
    %1987 = vmatpush.bf16.msra.mxu0 0
    %1988 = vmatpush.bf16.msra.mxu0 0
    %1989 = vmatpush.bf16.msra.mxu0 %v1980
    %1990 = vmatmul.bf16.gmra.mxu0 %v1977
    %v1991 = vpop.f32.mrf.mxu0
    %v1992 = vadd.f32 0.0, %v1991
    %v1993 = vpop.f32.mrf.mxu0
    %1994 = vdwg.mxu0
    %1995 = vrot.lane.b32.xlu0 %v448, 112
    %v1996 = vpop.permute.xlu0 %1995
    %v1997 = vrot.slane %v1996, 4
    %v1999 = vsel %vm454, %v1972, 0
    %v2002 = vsel %vm558, %v1997, 0
    %2004 = vmatpush.bf16.msra.mxu0 0
    %2005 = vmatpush.bf16.msra.mxu0 0
    %2006 = vmatpush.bf16.msra.mxu0 0
    %2007 = vmatpush.bf16.msra.mxu0 0
    %2008 = vmatpush.bf16.msra.mxu0 0
    %2009 = vmatpush.bf16.msra.mxu0 0
    %2010 = vmatpush.bf16.msra.mxu0 0
    %2011 = vmatpush.bf16.msra.mxu0 %v2002
    %2012 = vmatmul.bf16.gmra.mxu0 %v1999
    %v2013 = vpop.f32.mrf.mxu0
    %v2014 = vadd.f32 0.0, %v2013
    %v2015 = vpop.f32.mrf.mxu0
    %2016 = vdwg.mxu0
    %2017 = vrot.lane.b32.xlu0 %v445, 72
    %v2018 = vpop.permute.xlu0 %2017
    %v2019 = vrot.slane %v2018, 4
    %2020 = vrot.lane.b32.xlu0 %v601, 40
    %v2021 = vpop.permute.xlu0 %2020
    %v2023 = vsel %vm454, %v2021, 0
    %v2026 = vsel %vm454, %v2019, 0
    %2028 = vmatpush.bf16.xpose.msra.mxu0 0
    %2029 = vmatpush.bf16.xpose.msra.mxu0 0
    %2030 = vmatpush.bf16.xpose.msra.mxu0 0
    %2031 = vmatpush.bf16.xpose.msra.mxu0 0
    %2032 = vmatpush.bf16.xpose.msra.mxu0 0
    %2033 = vmatpush.bf16.xpose.msra.mxu0 0
    %2034 = vmatpush.bf16.xpose.msra.mxu0 0
    %2035 = vmatpush.bf16.xpose.msra.mxu0 %v2026
    %2036 = vmatmul.bf16.gmra.mxu0 %v2023
    %v2037 = vpop.f32.mrf.mxu0
    %v2038 = vadd.f32 0.0, %v2037
    %v2039 = vpop.f32.mrf.mxu0
    %2040 = vdwg.mxu0
    %2041 = vrot.lane.b32.xlu0 %v446, 72
    %v2042 = vpop.permute.xlu0 %2041
    %v2043 = vrot.slane %v2042, 4
    %2044 = vrot.lane.b32.xlu0 %v627, 40
    %v2045 = vpop.permute.xlu0 %2044
    %v2047 = vsel %vm454, %v2045, 0
    %v2050 = vsel %vm454, %v2043, 0
    %2052 = vmatpush.bf16.xpose.msra.mxu0 0
    %2053 = vmatpush.bf16.xpose.msra.mxu0 0
    %2054 = vmatpush.bf16.xpose.msra.mxu0 0
    %2055 = vmatpush.bf16.xpose.msra.mxu0 0
    %2056 = vmatpush.bf16.xpose.msra.mxu0 0
    %2057 = vmatpush.bf16.xpose.msra.mxu0 0
    %2058 = vmatpush.bf16.xpose.msra.mxu0 0
    %2059 = vmatpush.bf16.xpose.msra.mxu0 %v2050
    %2060 = vmatmul.bf16.gmra.mxu0 %v2047
    %v2061 = vpop.f32.mrf.mxu0
    %v2062 = vadd.f32 0.0, %v2061
    %v2063 = vpop.f32.mrf.mxu0
    %2064 = vdwg.mxu0
    %v2065 = vmul.f32 %v2038, 0.35355338
    %v2066 = vmul.f32 %v2062, 0.35355338
    %v2067 = vsel %vm454, %v2065, -inf
    %2068 = vmax.xlane.f32.xlu0 %v2067
    %v2069 = vpop.xlane.xlu0 %2068
    %v2070 = vsel %vm454, %v2066, -inf
    %2071 = vmax.xlane.f32.xlu0 %v2070
    %v2072 = vpop.xlane.xlu0 %2071
    %v2073 = vsub.f32 %v2065, %v2069
    %v2074 = vsub.f32 %v2066, %v2072
    %v2075 = vmul.f32 %v2073, 1.442695
    %v2076 = vpow.pop %v2075
    %v2077 = vmul.f32 %v2074, 1.442695
    %v2078 = vpow.pop %v2077
    %v2079 = vsel %vm454, %v2076, 0.0
    %2080 = vadd.xlane.f32.xlu0 %v2079
    %v2081 = vpop.xlane.xlu0 %2080
    %v2082 = vsel %vm454, %v2078, 0.0
    %2083 = vadd.xlane.f32.xlu0 %v2082
    %v2084 = vpop.xlane.xlu0 %2083
    %v2085 = vrcp.pop %v2081
    %v2086 = vmul.f32 %v2081, %v2085
    %v2087 = vsub.f32 1.0, %v2086
    %v2088 = vmul.f32 %v2085, %v2087
    %v2089 = vadd.f32 %v2085, %v2088
    %vm2090 = vweird.f32 %v2081
    %vm2091 = vweird.f32 %v2085
    %vm2092 = vmor %vm2090, %vm2091
    %v2093 = vsel %vm2092, %v2085, %v2089
    %v2094 = vand.u32 2147483647, %v2081
    %vm2095 = vcmp.eq.f32.partialorder %v2094, 8.507059e+37
    %v2096 = vand.u32 %v2081, 2147483648
    %v2097 = vor.u32 1.1754944e-38, %v2096
    %v2098 = vsel %vm2095, %v2097, %v2093
    %v2099 = vmul.f32 %v2076, %v2098
    %v2100 = vrcp.pop %v2084
    %v2101 = vmul.f32 %v2084, %v2100
    %v2102 = vsub.f32 1.0, %v2101
    %v2103 = vmul.f32 %v2100, %v2102
    %v2104 = vadd.f32 %v2100, %v2103
    %vm2105 = vweird.f32 %v2084
    %vm2106 = vweird.f32 %v2100
    %vm2107 = vmor %vm2105, %vm2106
    %v2108 = vsel %vm2107, %v2100, %v2104
    %v2109 = vand.u32 2147483647, %v2084
    %vm2110 = vcmp.eq.f32.partialorder %v2109, 8.507059e+37
    %v2111 = vand.u32 %v2084, 2147483648
    %v2112 = vor.u32 1.1754944e-38, %v2111
    %v2113 = vsel %vm2110, %v2112, %v2108
    %v2114 = vmul.f32 %v2078, %v2113
    %v2115 = vpack.c.bf16 %v2099, %v2099
    %v2116 = vpack.c.bf16 %v2114, %v2114
    %2117 = vrot.lane.b32.xlu0 %v447, 104
    %v2118 = vpop.permute.xlu0 %2117
    %v2119 = vrot.slane %v2118, 4
    %v2121 = vsel %vm454, %v2115, 0
    %v2124 = vsel %vm558, %v2119, 0
    %2126 = vmatpush.bf16.msra.mxu0 0
    %2127 = vmatpush.bf16.msra.mxu0 0
    %2128 = vmatpush.bf16.msra.mxu0 0
    %2129 = vmatpush.bf16.msra.mxu0 0
    %2130 = vmatpush.bf16.msra.mxu0 0
    %2131 = vmatpush.bf16.msra.mxu0 0
    %2132 = vmatpush.bf16.msra.mxu0 0
    %2133 = vmatpush.bf16.msra.mxu0 %v2124
    %2134 = vmatmul.bf16.gmra.mxu0 %v2121
    %v2135 = vpop.f32.mrf.mxu0
    %v2136 = vadd.f32 0.0, %v2135
    %v2137 = vpop.f32.mrf.mxu0
    %2138 = vdwg.mxu0
    %2139 = vrot.lane.b32.xlu0 %v448, 104
    %v2140 = vpop.permute.xlu0 %2139
    %v2141 = vrot.slane %v2140, 4
    %v2143 = vsel %vm454, %v2116, 0
    %v2146 = vsel %vm558, %v2141, 0
    %2148 = vmatpush.bf16.msra.mxu0 0
    %2149 = vmatpush.bf16.msra.mxu0 0
    %2150 = vmatpush.bf16.msra.mxu0 0
    %2151 = vmatpush.bf16.msra.mxu0 0
    %2152 = vmatpush.bf16.msra.mxu0 0
    %2153 = vmatpush.bf16.msra.mxu0 0
    %2154 = vmatpush.bf16.msra.mxu0 0
    %2155 = vmatpush.bf16.msra.mxu0 %v2146
    %2156 = vmatmul.bf16.gmra.mxu0 %v2143
    %v2157 = vpop.f32.mrf.mxu0
    %v2158 = vadd.f32 0.0, %v2157
    %v2159 = vpop.f32.mrf.mxu0
    %2160 = vdwg.mxu0
    %2163 = vrot.lane.b32.xlu0 %v721, 8
    %v2164 = vpop.permute.xlu0 %2163
    %2165 = vrot.lane.b32.xlu0 %v742, 8
    %v2166 = vpop.permute.xlu0 %2165
    %2171 = vrot.lane.b32.xlu0 %v861, 16
    %v2172 = vpop.permute.xlu0 %2171
    %2173 = vrot.lane.b32.xlu0 %v882, 16
    %v2174 = vpop.permute.xlu0 %2173
    %2179 = vrot.lane.b32.xlu0 %v1001, 24
    %v2180 = vpop.permute.xlu0 %2179
    %2181 = vrot.lane.b32.xlu0 %v1022, 24
    %v2182 = vpop.permute.xlu0 %2181
    %2187 = vrot.lane.b32.xlu0 %v1139, 32
    %v2188 = vpop.permute.xlu0 %2187
    %2189 = vrot.lane.b32.xlu0 %v1160, 32
    %v2190 = vpop.permute.xlu0 %2189
    %2195 = vrot.lane.b32.xlu0 %v1281, 40
    %v2196 = vpop.permute.xlu0 %2195
    %2197 = vrot.lane.b32.xlu0 %v1302, 40
    %v2198 = vpop.permute.xlu0 %2197
    %2203 = vrot.lane.b32.xlu0 %v1423, 48
    %v2204 = vpop.permute.xlu0 %2203
    %2205 = vrot.lane.b32.xlu0 %v1444, 48
    %v2206 = vpop.permute.xlu0 %2205
    %2211 = vrot.lane.b32.xlu0 %v1565, 56
    %v2212 = vpop.permute.xlu0 %2211
    %2213 = vrot.lane.b32.xlu0 %v1586, 56
    %v2214 = vpop.permute.xlu0 %2213
    %2219 = vrot.lane.b32.xlu0 %v1706, 64
    %v2220 = vpop.permute.xlu0 %2219
    %2221 = vrot.lane.b32.xlu0 %v1726, 64
    %v2222 = vpop.permute.xlu0 %2221
    %2227 = vrot.lane.b32.xlu0 %v1848, 72
    %v2228 = vpop.permute.xlu0 %2227
    %2229 = vrot.lane.b32.xlu0 %v1870, 72
    %v2230 = vpop.permute.xlu0 %2229
    %2235 = vrot.lane.b32.xlu0 %v1992, 80
    %v2236 = vpop.permute.xlu0 %2235
    %2237 = vrot.lane.b32.xlu0 %v2014, 80
    %v2238 = vpop.permute.xlu0 %2237
    %2243 = vrot.lane.b32.xlu0 %v2136, 88
    %v2244 = vpop.permute.xlu0 %2243
    %2245 = vrot.lane.b32.xlu0 %v2158, 88
    %v2246 = vpop.permute.xlu0 %2245
    %v2249 = vsel %vm454, %v572, %v2164
    %v2250 = vsel %vm454, %v596, %v2166
    %vm2251 = vcmask 130048
    %v2252 = vsel %vm2251, %v2249, %v2172
    %v2253 = vsel %vm2251, %v2250, %v2174
    %vm2254 = vcmask 195584
    %v2255 = vsel %vm2254, %v2252, %v2180
    %v2256 = vsel %vm2254, %v2253, %v2182
    %vm2257 = vcmask 261120
    %v2258 = vsel %vm2257, %v2255, %v2188
    %v2259 = vsel %vm2257, %v2256, %v2190
    %vm2260 = vcmask 326656
    %v2261 = vsel %vm2260, %v2258, %v2196
    %v2262 = vsel %vm2260, %v2259, %v2198
    %vm2263 = vcmask 392192
    %v2264 = vsel %vm2263, %v2261, %v2204
    %v2265 = vsel %vm2263, %v2262, %v2206
    %vm2266 = vcmask 457728
    %v2267 = vsel %vm2266, %v2264, %v2212
    %v2268 = vsel %vm2266, %v2265, %v2214
    %vm2269 = vcmask 523264
    %v2270 = vsel %vm2269, %v2267, %v2220
    %v2271 = vsel %vm2269, %v2268, %v2222
    %vm2272 = vcmask 588800
    %v2273 = vsel %vm2272, %v2270, %v2228
    %v2274 = vsel %vm2272, %v2271, %v2230
    %vm2275 = vcmask 654336
    %v2276 = vsel %vm2275, %v2273, %v2236
    %v2277 = vsel %vm2275, %v2274, %v2238
    %vm2278 = vcmask 719872
    %v2279 = vsel %vm2278, %v2276, %v2244
    %v2280 = vsel %vm2278, %v2277, %v2246
    %v2281 = vpack.c.bf16 %v2280, %v2279
    %v2294 = vunpack.c.l.b16 %v48
    %v2295 = vunpack.c.l.b16 %v49
    %v2296 = vunpack.c.l.b16 %v50
    %v2297 = vunpack.c.l.b16 %v51
    %v2298 = vunpack.c.l.b16 %v52
    %v2299 = vunpack.c.l.b16 %v53
    %v2300 = vunpack.c.l.b16 %v54
    %v2301 = vunpack.c.l.b16 %v55
    %v2302 = vunpack.c.l.b16 %v56
    %v2303 = vunpack.c.l.b16 %v57
    %v2304 = vunpack.c.l.b16 %v58
    %v2305 = vunpack.c.l.b16 %v59
    %v2306 = vpack.c.b16 %v2295, %v2294
    %v2307 = vpack.c.b16 %v2297, %v2296
    %v2308 = vpack.c.b16 %v2299, %v2298
    %v2309 = vpack.c.b16 %v2301, %v2300
    %v2310 = vpack.c.b16 %v2303, %v2302
    %v2311 = vpack.c.b16 %v2305, %v2304
    %v2319 = vsel %vm115, %v2281, 0
    %2321 = vmatpush.bf16.msra.mxu0 0
    %2322 = vmatpush.bf16.msra.mxu0 0
    %2323 = vmatpush.bf16.msra.mxu0 %v2311
    %2324 = vmatpush.bf16.msra.mxu0 %v2310
    %2325 = vmatpush.bf16.msra.mxu0 %v2309
    %2326 = vmatpush.bf16.msra.mxu0 %v2308
    %2327 = vmatpush.bf16.msra.mxu0 %v2307
    %2328 = vmatpush.bf16.msra.mxu0 %v2306
    %2329 = vmatmul.bf16.gmra.mxu0 %v2319
    %v2330 = vpop.f32.mrf.mxu0
    %v2331 = vadd.f32 0.0, %v2330
    %v2332 = vpop.f32.mrf.mxu0
    %v2333 = vadd.f32 0.0, %v2332
    %2334 = vdwg.mxu0
    %v2335 = vadd.f32 %v22, %v2331
    %v2336 = vadd.f32 %v23, %v2333
    %v2337 = vadd.f32 %v2335, %v100
    %v2338 = vadd.f32 %v2336, %v100
    %v2339 = vmul.f32 %v2337, %v112
    %v2340 = vmul.f32 %v2338, %v112
    %v2341 = vsel %vm115, %v2339, 0.0
    %2342 = vadd.xlane.f32.xlu0 %v2341
    %v2343 = vpop.xlane.xlu0 %2342
    %v2344 = vsel %vm115, %v2340, 0.0
    %2345 = vadd.xlane.f32.xlu0 %v2344
    %v2346 = vpop.xlane.xlu0 %2345
    %v2347 = vmul.f32 %v2343, 0.03125
    %v2348 = vmul.f32 %v2346, 0.03125
    %v2349 = vsub.f32 %v2337, %v2347
    %v2350 = vsub.f32 %v2338, %v2348
    %v2351 = vmul.f32 %v2349, %v2349
    %v2352 = vmul.f32 %v2350, %v2350
    %v2353 = vmul.f32 %v2351, %v112
    %v2354 = vmul.f32 %v2352, %v112
    %v2355 = vsel %vm115, %v2353, 0.0
    %2356 = vadd.xlane.f32.xlu0 %v2355
    %v2357 = vpop.xlane.xlu0 %2356
    %v2358 = vsel %vm115, %v2354, 0.0
    %2359 = vadd.xlane.f32.xlu0 %v2358
    %v2360 = vpop.xlane.xlu0 %2359
    %v2361 = vmul.f32 %v2357, 0.03125
    %v2362 = vmul.f32 %v2360, 0.03125
    %v2363 = vmul.f32 %v2347, %v112
    %v2364 = vmul.f32 %v2348, %v112
    %v2365 = vadd.f32 %v2363, 0.0
    %v2366 = vadd.f32 %v2364, 0.0
    %v2367 = vadd.f32 %v2361, 1e-05
    %v2368 = vadd.f32 %v2362, 1e-05
    %v2369 = vrsqrt.pop %v2367
    %v2370 = vmul.f32 %v2369, %v2367
    %v2371 = vmul.f32 %v2370, %v2369
    %v2372 = vmul.f32 0.5, %v2371
    %v2373 = vsub.f32 1.5, %v2372
    %v2374 = vmul.f32 %v2369, %v2373
    %vm2375 = vweird.f32 %v2367
    %vm2376 = vweird.f32 %v2369
    %vm2377 = vmor %vm2375, %vm2376
    %v2378 = vsel %vm2377, %v2369, %v2374
    %v2379 = vrsqrt.pop %v2368
    %v2380 = vmul.f32 %v2379, %v2368
    %v2381 = vmul.f32 %v2380, %v2379
    %v2382 = vmul.f32 0.5, %v2381
    %v2383 = vsub.f32 1.5, %v2382
    %v2384 = vmul.f32 %v2379, %v2383
    %vm2385 = vweird.f32 %v2368
    %vm2386 = vweird.f32 %v2379
    %vm2387 = vmor %vm2385, %vm2386
    %v2388 = vsel %vm2387, %v2379, %v2384
    %v2389 = vmul.f32 %v2378, %v112
    %v2390 = vmul.f32 %v2388, %v112
    %v2391 = vadd.f32 %v2389, 0.0
    %v2392 = vadd.f32 %v2390, 0.0
    %v2393 = vmul.f32 %v2337, %v172
    %v2394 = vmul.f32 %v2338, %v172
    %v2395 = vsel %vm115, %v2393, 0.0
    %2396 = vadd.xlane.f32.xlu0 %v2395
    %v2397 = vpop.xlane.xlu0 %2396
    %v2398 = vsel %vm115, %v2394, 0.0
    %2399 = vadd.xlane.f32.xlu0 %v2398
    %v2400 = vpop.xlane.xlu0 %2399
    %v2401 = vmul.f32 %v2397, 0.03125
    %v2402 = vmul.f32 %v2400, 0.03125
    %v2403 = vsub.f32 %v2337, %v2401
    %v2404 = vsub.f32 %v2338, %v2402
    %v2405 = vmul.f32 %v2403, %v2403
    %v2406 = vmul.f32 %v2404, %v2404
    %v2407 = vmul.f32 %v2405, %v172
    %v2408 = vmul.f32 %v2406, %v172
    %v2409 = vsel %vm115, %v2407, 0.0
    %2410 = vadd.xlane.f32.xlu0 %v2409
    %v2411 = vpop.xlane.xlu0 %2410
    %v2412 = vsel %vm115, %v2408, 0.0
    %2413 = vadd.xlane.f32.xlu0 %v2412
    %v2414 = vpop.xlane.xlu0 %2413
    %v2415 = vmul.f32 %v2411, 0.03125
    %v2416 = vmul.f32 %v2414, 0.03125
    %v2417 = vmul.f32 %v2401, %v172
    %v2418 = vmul.f32 %v2402, %v172
    %v2419 = vadd.f32 %v2365, %v2417
    %v2420 = vadd.f32 %v2366, %v2418
    %v2421 = vadd.f32 %v2415, 1e-05
    %v2422 = vadd.f32 %v2416, 1e-05
    %v2423 = vrsqrt.pop %v2421
    %v2424 = vmul.f32 %v2423, %v2421
    %v2425 = vmul.f32 %v2424, %v2423
    %v2426 = vmul.f32 0.5, %v2425
    %v2427 = vsub.f32 1.5, %v2426
    %v2428 = vmul.f32 %v2423, %v2427
    %vm2429 = vweird.f32 %v2421
    %vm2430 = vweird.f32 %v2423
    %vm2431 = vmor %vm2429, %vm2430
    %v2432 = vsel %vm2431, %v2423, %v2428
    %v2433 = vrsqrt.pop %v2422
    %v2434 = vmul.f32 %v2433, %v2422
    %v2435 = vmul.f32 %v2434, %v2433
    %v2436 = vmul.f32 0.5, %v2435
    %v2437 = vsub.f32 1.5, %v2436
    %v2438 = vmul.f32 %v2433, %v2437
    %vm2439 = vweird.f32 %v2422
    %vm2440 = vweird.f32 %v2433
    %vm2441 = vmor %vm2439, %vm2440
    %v2442 = vsel %vm2441, %v2433, %v2438
    %v2443 = vmul.f32 %v2432, %v172
    %v2444 = vmul.f32 %v2442, %v172
    %v2445 = vadd.f32 %v2391, %v2443
    %v2446 = vadd.f32 %v2392, %v2444
    %v2447 = vmul.f32 %v2337, %v231
    %v2448 = vmul.f32 %v2338, %v231
    %v2449 = vsel %vm115, %v2447, 0.0
    %2450 = vadd.xlane.f32.xlu0 %v2449
    %v2451 = vpop.xlane.xlu0 %2450
    %v2452 = vsel %vm115, %v2448, 0.0
    %2453 = vadd.xlane.f32.xlu0 %v2452
    %v2454 = vpop.xlane.xlu0 %2453
    %v2455 = vmul.f32 %v2451, 0.03125
    %v2456 = vmul.f32 %v2454, 0.03125
    %v2457 = vsub.f32 %v2337, %v2455
    %v2458 = vsub.f32 %v2338, %v2456
    %v2459 = vmul.f32 %v2457, %v2457
    %v2460 = vmul.f32 %v2458, %v2458
    %v2461 = vmul.f32 %v2459, %v231
    %v2462 = vmul.f32 %v2460, %v231
    %v2463 = vsel %vm115, %v2461, 0.0
    %2464 = vadd.xlane.f32.xlu0 %v2463
    %v2465 = vpop.xlane.xlu0 %2464
    %v2466 = vsel %vm115, %v2462, 0.0
    %2467 = vadd.xlane.f32.xlu0 %v2466
    %v2468 = vpop.xlane.xlu0 %2467
    %v2469 = vmul.f32 %v2465, 0.03125
    %v2470 = vmul.f32 %v2468, 0.03125
    %v2471 = vmul.f32 %v2455, %v231
    %v2472 = vmul.f32 %v2456, %v231
    %v2473 = vadd.f32 %v2419, %v2471
    %v2474 = vadd.f32 %v2420, %v2472
    %v2475 = vadd.f32 %v2469, 1e-05
    %v2476 = vadd.f32 %v2470, 1e-05
    %v2477 = vrsqrt.pop %v2475
    %v2478 = vmul.f32 %v2477, %v2475
    %v2479 = vmul.f32 %v2478, %v2477
    %v2480 = vmul.f32 0.5, %v2479
    %v2481 = vsub.f32 1.5, %v2480
    %v2482 = vmul.f32 %v2477, %v2481
    %vm2483 = vweird.f32 %v2475
    %vm2484 = vweird.f32 %v2477
    %vm2485 = vmor %vm2483, %vm2484
    %v2486 = vsel %vm2485, %v2477, %v2482
    %v2487 = vrsqrt.pop %v2476
    %v2488 = vmul.f32 %v2487, %v2476
    %v2489 = vmul.f32 %v2488, %v2487
    %v2490 = vmul.f32 0.5, %v2489
    %v2491 = vsub.f32 1.5, %v2490
    %v2492 = vmul.f32 %v2487, %v2491
    %vm2493 = vweird.f32 %v2476
    %vm2494 = vweird.f32 %v2487
    %vm2495 = vmor %vm2493, %vm2494
    %v2496 = vsel %vm2495, %v2487, %v2492
    %v2497 = vmul.f32 %v2486, %v231
    %v2498 = vmul.f32 %v2496, %v231
    %v2499 = vadd.f32 %v2445, %v2497
    %v2500 = vadd.f32 %v2446, %v2498
    %v2501 = vsub.f32 %v2337, %v2473
    %v2502 = vsub.f32 %v2338, %v2474
    %v2503 = vmul.f32 %v2501, %v2499
    %v2504 = vmul.f32 %v2502, %v2500
    %v2505 = vmul.f32 %v2503, %v101
    %v2506 = vmul.f32 %v2504, %v101
    %v2507 = vadd.f32 %v2505, %v102
    %v2508 = vadd.f32 %v2506, %v102
    %v2509 = vpack.c.bf16 %v2508, %v2507
    %v2511 = vperm.slane %v104, 0
    %v2512 = vperm.slane %v104, 1
    %v2527 = vunpack.c.l.b16 %v60
    %v2528 = vunpack.c.h.b16 %v60
    %v2529 = vunpack.c.l.b16 %v61
    %v2530 = vunpack.c.h.b16 %v61
    %v2531 = vunpack.c.l.b16 %v62
    %v2532 = vunpack.c.h.b16 %v62
    %v2533 = vunpack.c.l.b16 %v63
    %v2534 = vunpack.c.h.b16 %v63
    %v2535 = vunpack.c.l.b16 %v64
    %v2536 = vunpack.c.h.b16 %v64
    %v2537 = vunpack.c.l.b16 %v65
    %v2538 = vunpack.c.h.b16 %v65
    %v2539 = vunpack.c.l.b16 %v66
    %v2540 = vunpack.c.h.b16 %v66
    %v2541 = vunpack.c.l.b16 %v67
    %v2542 = vunpack.c.h.b16 %v67
    %v2543 = vunpack.c.l.b16 %v68
    %v2544 = vunpack.c.h.b16 %v68
    %v2545 = vunpack.c.l.b16 %v69
    %v2546 = vunpack.c.h.b16 %v69
    %v2547 = vunpack.c.l.b16 %v70
    %v2548 = vunpack.c.h.b16 %v70
    %v2549 = vunpack.c.l.b16 %v71
    %v2550 = vunpack.c.h.b16 %v71
    %v2551 = vpack.c.b16 %v2529, %v2527
    %v2552 = vpack.c.b16 %v2530, %v2528
    %v2553 = vpack.c.b16 %v2533, %v2531
    %v2554 = vpack.c.b16 %v2534, %v2532
    %v2555 = vpack.c.b16 %v2537, %v2535
    %v2556 = vpack.c.b16 %v2538, %v2536
    %v2557 = vpack.c.b16 %v2541, %v2539
    %v2558 = vpack.c.b16 %v2542, %v2540
    %v2559 = vpack.c.b16 %v2545, %v2543
    %v2560 = vpack.c.b16 %v2546, %v2544
    %v2561 = vpack.c.b16 %v2549, %v2547
    %v2562 = vpack.c.b16 %v2550, %v2548
    %v2576 = vsel %vm115, %v2509, 0
    %2578 = vmatpush.bf16.msra.mxu0 0
    %2579 = vmatpush.bf16.msra.mxu0 0
    %2580 = vmatpush.bf16.msra.mxu0 %v2561
    %2581 = vmatpush.bf16.msra.mxu0 %v2559
    %2582 = vmatpush.bf16.msra.mxu0 %v2557
    %2583 = vmatpush.bf16.msra.mxu0 %v2555
    %2584 = vmatpush.bf16.msra.mxu0 %v2553
    %2585 = vmatpush.bf16.msra.mxu0 %v2551
    %2586 = vmatmul.bf16.gmra.mxu0 %v2576
    %v2587 = vpop.f32.mrf.mxu0
    %v2588 = vadd.f32 %v2511, %v2587
    %v2589 = vpop.f32.mrf.mxu0
    %v2590 = vadd.f32 %v2511, %v2589
    %2591 = vdwg.mxu0
    %2592 = vmatpush.bf16.msra.mxu0 0
    %2593 = vmatpush.bf16.msra.mxu0 0
    %2594 = vmatpush.bf16.msra.mxu0 %v2562
    %2595 = vmatpush.bf16.msra.mxu0 %v2560
    %2596 = vmatpush.bf16.msra.mxu0 %v2558
    %2597 = vmatpush.bf16.msra.mxu0 %v2556
    %2598 = vmatpush.bf16.msra.mxu0 %v2554
    %2599 = vmatpush.bf16.msra.mxu0 %v2552
    %2600 = vmatmul.bf16.gmra.mxu0 %v2576
    %v2601 = vpop.f32.mrf.mxu0
    %v2602 = vadd.f32 %v2512, %v2601
    %v2603 = vpop.f32.mrf.mxu0
    %v2604 = vadd.f32 %v2512, %v2603
    %2605 = vdwg.mxu0
    %v2606 = vmul.f32 %v2588, %v2588
    %v2607 = vmul.f32 %v2602, %v2602
    %v2608 = vmul.f32 %v2590, %v2590
    %v2609 = vmul.f32 %v2604, %v2604
    %v2610 = vmul.f32 %v2588, %v2606
    %v2611 = vmul.f32 %v2602, %v2607
    %v2612 = vmul.f32 %v2590, %v2608
    %v2613 = vmul.f32 %v2604, %v2609
    %v2614 = vmul.f32 %v2610, 0.044715
    %v2615 = vmul.f32 %v2611, 0.044715
    %v2616 = vmul.f32 %v2612, 0.044715
    %v2617 = vmul.f32 %v2613, 0.044715
    %v2618 = vadd.f32 %v2588, %v2614
    %v2619 = vadd.f32 %v2602, %v2615
    %v2620 = vadd.f32 %v2590, %v2616
    %v2621 = vadd.f32 %v2604, %v2617
    %v2622 = vmul.f32 %v2618, 0.7978846
    %v2623 = vmul.f32 %v2619, 0.7978846
    %v2624 = vmul.f32 %v2620, 0.7978846
    %v2625 = vmul.f32 %v2621, 0.7978846
    %v2626 = vtanh.pop %v2622
    %v2627 = vtanh.pop %v2623
    %v2628 = vtanh.pop %v2624
    %v2629 = vtanh.pop %v2625
    %v2630 = vadd.f32 %v2626, 1.0
    %v2631 = vadd.f32 %v2627, 1.0
    %v2632 = vadd.f32 %v2628, 1.0
    %v2633 = vadd.f32 %v2629, 1.0
    %v2634 = vmul.f32 %v2630, 0.5
    %v2635 = vmul.f32 %v2631, 0.5
    %v2636 = vmul.f32 %v2632, 0.5
    %v2637 = vmul.f32 %v2633, 0.5
    %v2638 = vmul.f32 %v2588, %v2634
    %v2639 = vmul.f32 %v2602, %v2635
    %v2640 = vmul.f32 %v2590, %v2636
    %v2641 = vmul.f32 %v2604, %v2637
    %v2642 = vpack.c.bf16 %v2640, %v2638
    %v2643 = vpack.c.bf16 %v2641, %v2639
    %v2668 = vunpack.c.l.b16 %v72
    %v2669 = vunpack.c.l.b16 %v73
    %v2670 = vunpack.c.l.b16 %v74
    %v2671 = vunpack.c.l.b16 %v75
    %v2672 = vunpack.c.l.b16 %v76
    %v2673 = vunpack.c.l.b16 %v77
    %v2674 = vunpack.c.l.b16 %v78
    %v2675 = vunpack.c.l.b16 %v79
    %v2676 = vunpack.c.l.b16 %v80
    %v2677 = vunpack.c.l.b16 %v81
    %v2678 = vunpack.c.l.b16 %v82
    %v2679 = vunpack.c.l.b16 %v83
    %v2680 = vunpack.c.l.b16 %v84
    %v2681 = vunpack.c.l.b16 %v85
    %v2682 = vunpack.c.l.b16 %v86
    %v2683 = vunpack.c.l.b16 %v87
    %v2684 = vunpack.c.l.b16 %v88
    %v2685 = vunpack.c.l.b16 %v89
    %v2686 = vunpack.c.l.b16 %v90
    %v2687 = vunpack.c.l.b16 %v91
    %v2688 = vunpack.c.l.b16 %v92
    %v2689 = vunpack.c.l.b16 %v93
    %v2690 = vunpack.c.l.b16 %v94
    %v2691 = vunpack.c.l.b16 %v95
    %v2692 = vpack.c.b16 %v2669, %v2668
    %v2693 = vpack.c.b16 %v2671, %v2670
    %v2694 = vpack.c.b16 %v2673, %v2672
    %v2695 = vpack.c.b16 %v2675, %v2674
    %v2696 = vpack.c.b16 %v2677, %v2676
    %v2697 = vpack.c.b16 %v2679, %v2678
    %v2698 = vpack.c.b16 %v2681, %v2680
    %v2699 = vpack.c.b16 %v2683, %v2682
    %v2700 = vpack.c.b16 %v2685, %v2684
    %v2701 = vpack.c.b16 %v2687, %v2686
    %v2702 = vpack.c.b16 %v2689, %v2688
    %v2703 = vpack.c.b16 %v2691, %v2690
    %v2717 = vsel %vm2269, %v2643, 0
    %2719 = vmatpush.bf16.msra.mxu0 %v2699
    %2720 = vmatpush.bf16.msra.mxu0 %v2698
    %2721 = vmatpush.bf16.msra.mxu0 %v2697
    %2722 = vmatpush.bf16.msra.mxu0 %v2696
    %2723 = vmatpush.bf16.msra.mxu0 %v2695
    %2724 = vmatpush.bf16.msra.mxu0 %v2694
    %2725 = vmatpush.bf16.msra.mxu0 %v2693
    %2726 = vmatpush.bf16.msra.mxu0 %v2692
    %2727 = vmatmul.bf16.gmra.mxu0 %v2642
    %v2728 = vpop.f32.mrf.mxu0
    %v2729 = vadd.f32 0.0, %v2728
    %v2730 = vpop.f32.mrf.mxu0
    %v2731 = vadd.f32 0.0, %v2730
    %2732 = vdwg.mxu0
    %2733 = vmatpush.bf16.msra.mxu0 0
    %2734 = vmatpush.bf16.msra.mxu0 0
    %2735 = vmatpush.bf16.msra.mxu0 0
    %2736 = vmatpush.bf16.msra.mxu0 0
    %2737 = vmatpush.bf16.msra.mxu0 %v2703
    %2738 = vmatpush.bf16.msra.mxu0 %v2702
    %2739 = vmatpush.bf16.msra.mxu0 %v2701
    %2740 = vmatpush.bf16.msra.mxu0 %v2700
    %2741 = vmatmul.bf16.gmra.mxu0 %v2717
    %v2742 = vpop.f32.mrf.mxu0
    %v2743 = vadd.f32 %v2729, %v2742
    %v2744 = vpop.f32.mrf.mxu0
    %v2745 = vadd.f32 %v2731, %v2744
    %2746 = vdwg.mxu0
    %v2747 = vadd.f32 %v2337, %v2743
    %v2748 = vadd.f32 %v2338, %v2745
    %v2749 = vadd.f32 %v2747, %v105
    %v2750 = vadd.f32 %v2748, %v105
    %v2751 = vsel %vm115, %v2749, 0.0
    %2752 = vadd.xlane.f32.xlu0 %v2751
    %v2753 = vpop.xlane.xlu0 %2752
    %v2754 = vsel %vm115, %v2750, 0.0
    %2755 = vadd.xlane.f32.xlu0 %v2754
    %v2756 = vpop.xlane.xlu0 %2755
    %v2757 = vrcp.pop 96.0
    %v2758 = vmul.f32 96.0, %v2757
    %v2759 = vsub.f32 1.0, %v2758
    %v2760 = vmul.f32 %v2757, %v2759
    %v2761 = vadd.f32 %v2757, %v2760
    %vm2762 = vweird.f32 %v2757
    %v2763 = vsel %vm2762, %v2757, %v2761
    %v2764 = vmul.f32 %v2753, %v2763
    %v2765 = vmul.f32 %v2756, %v2763
    %v2766 = vsub.f32 %v2749, %v2764
    %v2767 = vsub.f32 %v2750, %v2765
    %v2768 = vmul.f32 %v2766, %v2766
    %v2769 = vmul.f32 %v2767, %v2767
    %v2770 = vsel %vm115, %v2768, 0.0
    %2771 = vadd.xlane.f32.xlu0 %v2770
    %v2772 = vpop.xlane.xlu0 %2771
    %v2773 = vsel %vm115, %v2769, 0.0
    %2774 = vadd.xlane.f32.xlu0 %v2773
    %v2775 = vpop.xlane.xlu0 %2774
    %v2776 = vmul.f32 %v2772, %v2763
    %v2777 = vmul.f32 %v2775, %v2763
    %v2778 = vadd.f32 %v2776, 1e-05
    %v2779 = vadd.f32 %v2777, 1e-05
    %v2780 = vrsqrt.pop %v2778
    %v2781 = vmul.f32 %v2780, %v2778
    %v2782 = vmul.f32 %v2781, %v2780
    %v2783 = vmul.f32 0.5, %v2782
    %v2784 = vsub.f32 1.5, %v2783
    %v2785 = vmul.f32 %v2780, %v2784
    %vm2786 = vweird.f32 %v2778
    %vm2787 = vweird.f32 %v2780
    %vm2788 = vmor %vm2786, %vm2787
    %v2789 = vsel %vm2788, %v2780, %v2785
    %v2790 = vrsqrt.pop %v2779
    %v2791 = vmul.f32 %v2790, %v2779
    %v2792 = vmul.f32 %v2791, %v2790
    %v2793 = vmul.f32 0.5, %v2792
    %v2794 = vsub.f32 1.5, %v2793
    %v2795 = vmul.f32 %v2790, %v2794
    %vm2796 = vweird.f32 %v2779
    %vm2797 = vweird.f32 %v2790
    %vm2798 = vmor %vm2796, %vm2797
    %v2799 = vsel %vm2798, %v2790, %v2795
    %v2800 = vmul.f32 %v2766, %v2789
    %v2801 = vmul.f32 %v2767, %v2799
    %v2802 = vmul.f32 %v2800, %v20
    %v2803 = vmul.f32 %v2801, %v20
    %v2804 = vadd.f32 %v2802, %v21
    %v2805 = vadd.f32 %v2803, %v21
    %v2806 = vadd.f32 %v2804, %v19
    %v2807 = vadd.f32 %v2805, %v19
    %v2808 = vld [vmem:[%s1 + $0x2d0] sm:$0xff]
    %v2809 = vld [vmem:[%s1 + $0x2d8] sm:$0xf]
    %v2810 = vld [vmem:[%s1 + $0x2dc] sm:$0xff]
    %v2811 = vld [vmem:[%s1 + $0x2e4] sm:$0xf]
    %v2812 = vld [vmem:[%s1 + $0x2e8] sm:$0xff]
    %v2813 = vld [vmem:[%s1 + $0x2f0] sm:$0xf]
    %v2814 = vld [vmem:[%s1 + $0x2f4] sm:$0xff]
    %v2815 = vld [vmem:[%s1 + $0x2fc] sm:$0xf]
    %v2816 = vld [vmem:[%s1 + $0x300] sm:$0xff]
    %v2817 = vld [vmem:[%s1 + $0x308] sm:$0xf]
    %v2818 = vld [vmem:[%s1 + $0x30c] sm:$0xff]
    %v2819 = vld [vmem:[%s1 + $0x314] sm:$0xf]
    %v2820 = vld [vmem:[%s1 + $0x318] sm:$0xff]
    %v2821 = vld [vmem:[%s1 + $0x320] sm:$0xf]
    %v2822 = vld [vmem:[%s1 + $0x324] sm:$0xff]
    %v2823 = vld [vmem:[%s1 + $0x32c] sm:$0xf]
    %v2824 = vld [vmem:[%s1 + $0x330] sm:$0xff]
    %v2825 = vld [vmem:[%s1 + $0x338] sm:$0xf]
    %v2826 = vld [vmem:[%s1 + $0x33c] sm:$0xff]
    %v2827 = vld [vmem:[%s1 + $0x344] sm:$0xf]
    %v2828 = vld [vmem:[%s1 + $0x348] sm:$0xff]
    %v2829 = vld [vmem:[%s1 + $0x350] sm:$0xf]
    %v2830 = vld [vmem:[%s1 + $0x354] sm:$0xff]
    %v2831 = vld [vmem:[%s1 + $0x35c] sm:$0xf]
    %v2832 = vld [vmem:[%s1 + $0x360] sm:$0xf]
    %v2833 = vld [vmem:[%s1 + $0x36c] sm:$0xf]
    %v2834 = vld [vmem:[%s1 + $0x378] sm:$0xf]
    %v2835 = vld [vmem:[%s1 + $0x384] sm:$0xf]
    %v2836 = vld [vmem:[%s1 + $0x390] sm:$0xf]
    %v2837 = vld [vmem:[%s1 + $0x39c] sm:$0xf]
    %v2838 = vld [vmem:[%s1 + $0x3a8] sm:$0xf]
    %v2839 = vld [vmem:[%s1 + $0x3b4] sm:$0xf]
    %v2840 = vld [vmem:[%s1 + $0x3c0] sm:$0xf]
    %v2841 = vld [vmem:[%s1 + $0x3cc] sm:$0xf]
    %v2842 = vld [vmem:[%s1 + $0x3d8] sm:$0xf]
    %v2843 = vld [vmem:[%s1 + $0x3e4] sm:$0xf]
    %v2844 = vld [vmem:[%s1 + $0x3f0] sm:$0xff]
    %v2845 = vld [vmem:[%s1 + $0x3fc] sm:$0xff]
    %v2846 = vld [vmem:[%s1 + $0x408] sm:$0xff]
    %v2847 = vld [vmem:[%s1 + $0x414] sm:$0xff]
    %v2848 = vld [vmem:[%s1 + $0x420] sm:$0xff]
    %v2849 = vld [vmem:[%s1 + $0x42c] sm:$0xff]
    %v2850 = vld [vmem:[%s1 + $0x438] sm:$0xff]
    %v2851 = vld [vmem:[%s1 + $0x444] sm:$0xff]
    %v2852 = vld [vmem:[%s1 + $0x450] sm:$0xff]
    %v2853 = vld [vmem:[%s1 + $0x45c] sm:$0xff]
    %v2854 = vld [vmem:[%s1 + $0x468] sm:$0xff]
    %v2855 = vld [vmem:[%s1 + $0x474] sm:$0xff]
    %v2856 = vld [vmem:[%s1 + $0x480] sm:$0xf]
    %v2857 = vld [vmem:[%s1 + $0x48c] sm:$0xf]
    %v2858 = vld [vmem:[%s1 + $0x498] sm:$0xf]
    %v2859 = vld [vmem:[%s1 + $0x4a4] sm:$0xf]
    %v2860 = vld [vmem:[%s1 + $0x4b0] sm:$0xf]
    %v2861 = vld [vmem:[%s1 + $0x4bc] sm:$0xf]
    %v2862 = vld [vmem:[%s1 + $0x4c8] sm:$0xf]
    %v2863 = vld [vmem:[%s1 + $0x4d4] sm:$0xf]
    %v2864 = vld [vmem:[%s1 + $0x4e0] sm:$0xf]
    %v2865 = vld [vmem:[%s1 + $0x4ec] sm:$0xf]
    %v2866 = vld [vmem:[%s1 + $0x4f8] sm:$0xf]
    %v2867 = vld [vmem:[%s1 + $0x504] sm:$0xf]
    %v2868 = vld [vmem:[%s1 + $0x510] sm:$0xf]
    %v2869 = vld [vmem:[%s1 + $0x51c] sm:$0xf]
    %v2870 = vld [vmem:[%s1 + $0x528] sm:$0xf]
    %v2871 = vld [vmem:[%s1 + $0x534] sm:$0xf]
    %v2872 = vld [vmem:[%s1 + $0x540] sm:$0xf]
    %v2873 = vld [vmem:[%s1 + $0x54c] sm:$0xf]
    %v2874 = vld [vmem:[%s1 + $0x558] sm:$0xf]
    %v2875 = vld [vmem:[%s1 + $0x564] sm:$0xf]
    %v2876 = vld [vmem:[%s1 + $0x570] sm:$0xf]
    %v2877 = vld [vmem:[%s1 + $0x57c] sm:$0xf]
    %v2878 = vld [vmem:[%s1 + $0x588] sm:$0xf]
    %v2879 = vld [vmem:[%s1 + $0x594] sm:$0xf]
    %v2880 = vld [vmem:[%s2 + $0x4a] ss:$0 sm:$0xff]
    %v2881 = vld [vmem:[%s2 + $0x4b] ss:$0 sm:$0xff]
    %s2882 = scalar_lea.vmem %s2, 76
    %v2883 = vld [vmem:[%s2882] ss:$8 sm:$0x7]
    %v2884 = vld [vmem:[%s2 + $0x4d] ss:$0 sm:$0xff]
    %v2885 = vld [vmem:[%s2 + $0x4e] ss:$0 sm:$0xff]
    %v2886 = vld [vmem:[%s2 + $0x4f] ss:$0 sm:$0xff]
    %s2887 = scalar_lea.vmem %s2, 96
    %v2888 = vld [vmem:[%s2887] ss:$8 sm:$0x3]
    %v2889 = vld [vmem:[%s2 + $0x61] ss:$0 sm:$0xff]
    %v2890 = vsel %vm115, %v2806, 0.0
    %2891 = vadd.xlane.f32.xlu0 %v2890
    %v2892 = vpop.xlane.xlu0 %2891
    %v2893 = vsel %vm115, %v2807, 0.0
    %2894 = vadd.xlane.f32.xlu0 %v2893
    %v2895 = vpop.xlane.xlu0 %2894
    %v2896 = vmul.f32 %v2892, %v2763
    %v2897 = vmul.f32 %v2895, %v2763
    %v2898 = vsub.f32 %v2806, %v2896
    %v2899 = vsub.f32 %v2807, %v2897
    %v2900 = vmul.f32 %v2898, %v2898
    %v2901 = vmul.f32 %v2899, %v2899
    %v2902 = vsel %vm115, %v2900, 0.0
    %2903 = vadd.xlane.f32.xlu0 %v2902
    %v2904 = vpop.xlane.xlu0 %2903
    %v2905 = vsel %vm115, %v2901, 0.0
    %2906 = vadd.xlane.f32.xlu0 %v2905
    %v2907 = vpop.xlane.xlu0 %2906
    %v2908 = vmul.f32 %v2904, %v2763
    %v2909 = vmul.f32 %v2907, %v2763
    %v2910 = vadd.f32 %v2908, 1e-05
    %v2911 = vadd.f32 %v2909, 1e-05
    %v2912 = vrsqrt.pop %v2910
    %v2913 = vmul.f32 %v2912, %v2910
    %v2914 = vmul.f32 %v2913, %v2912
    %v2915 = vmul.f32 0.5, %v2914
    %v2916 = vsub.f32 1.5, %v2915
    %v2917 = vmul.f32 %v2912, %v2916
    %vm2918 = vweird.f32 %v2910
    %vm2919 = vweird.f32 %v2912
    %vm2920 = vmor %vm2918, %vm2919
    %v2921 = vsel %vm2920, %v2912, %v2917
    %v2922 = vrsqrt.pop %v2911
    %v2923 = vmul.f32 %v2922, %v2911
    %v2924 = vmul.f32 %v2923, %v2922
    %v2925 = vmul.f32 0.5, %v2924
    %v2926 = vsub.f32 1.5, %v2925
    %v2927 = vmul.f32 %v2922, %v2926
    %vm2928 = vweird.f32 %v2911
    %vm2929 = vweird.f32 %v2922
    %vm2930 = vmor %vm2928, %vm2929
    %v2931 = vsel %vm2930, %v2922, %v2927
    %v2932 = vmul.f32 %v2898, %v2921
    %v2933 = vmul.f32 %v2899, %v2931
    %v2934 = vmul.f32 %v2932, %v2880
    %v2935 = vmul.f32 %v2933, %v2880
    %v2936 = vadd.f32 %v2934, %v2881
    %v2937 = vadd.f32 %v2935, %v2881
    %v2938 = vpack.c.bf16 %v2937, %v2936
    %v2940 = vperm.slane %v2883, 0
    %v2941 = vperm.slane %v2883, 1
    %v2942 = vperm.slane %v2883, 2
    %v2970 = vunpack.c.l.b16 %v2808
    %v2971 = vunpack.c.h.b16 %v2808
    %v2972 = vunpack.c.l.b16 %v2809
    %v2973 = vunpack.c.l.b16 %v2810
    %v2974 = vunpack.c.h.b16 %v2810
    %v2975 = vunpack.c.l.b16 %v2811
    %v2976 = vunpack.c.l.b16 %v2812
    %v2977 = vunpack.c.h.b16 %v2812
    %v2978 = vunpack.c.l.b16 %v2813
    %v2979 = vunpack.c.l.b16 %v2814
    %v2980 = vunpack.c.h.b16 %v2814
    %v2981 = vunpack.c.l.b16 %v2815
    %v2982 = vunpack.c.l.b16 %v2816
    %v2983 = vunpack.c.h.b16 %v2816
    %v2984 = vunpack.c.l.b16 %v2817
    %v2985 = vunpack.c.l.b16 %v2818
    %v2986 = vunpack.c.h.b16 %v2818
    %v2987 = vunpack.c.l.b16 %v2819
    %v2988 = vunpack.c.l.b16 %v2820
    %v2989 = vunpack.c.h.b16 %v2820
    %v2990 = vunpack.c.l.b16 %v2821
    %v2991 = vunpack.c.l.b16 %v2822
    %v2992 = vunpack.c.h.b16 %v2822
    %v2993 = vunpack.c.l.b16 %v2823
    %v2994 = vunpack.c.l.b16 %v2824
    %v2995 = vunpack.c.h.b16 %v2824
    %v2996 = vunpack.c.l.b16 %v2825
    %v2997 = vunpack.c.l.b16 %v2826
    %v2998 = vunpack.c.h.b16 %v2826
    %v2999 = vunpack.c.l.b16 %v2827
    %v3000 = vunpack.c.l.b16 %v2828
    %v3001 = vunpack.c.h.b16 %v2828
    %v3002 = vunpack.c.l.b16 %v2829
    %v3003 = vunpack.c.l.b16 %v2830
    %v3004 = vunpack.c.h.b16 %v2830
    %v3005 = vunpack.c.l.b16 %v2831
    %v3006 = vpack.c.b16 %v2973, %v2970
    %v3007 = vpack.c.b16 %v2974, %v2971
    %v3008 = vpack.c.b16 %v2975, %v2972
    %v3009 = vpack.c.b16 %v2979, %v2976
    %v3010 = vpack.c.b16 %v2980, %v2977
    %v3011 = vpack.c.b16 %v2981, %v2978
    %v3012 = vpack.c.b16 %v2985, %v2982
    %v3013 = vpack.c.b16 %v2986, %v2983
    %v3014 = vpack.c.b16 %v2987, %v2984
    %v3015 = vpack.c.b16 %v2991, %v2988
    %v3016 = vpack.c.b16 %v2992, %v2989
    %v3017 = vpack.c.b16 %v2993, %v2990
    %v3018 = vpack.c.b16 %v2997, %v2994
    %v3019 = vpack.c.b16 %v2998, %v2995
    %v3020 = vpack.c.b16 %v2999, %v2996
    %v3021 = vpack.c.b16 %v3003, %v3000
    %v3022 = vpack.c.b16 %v3004, %v3001
    %v3023 = vpack.c.b16 %v3005, %v3002
    %v3043 = vsel %vm115, %v2938, 0
    %3045 = vmatpush.bf16.msra.mxu0 0
    %3046 = vmatpush.bf16.msra.mxu0 0
    %3047 = vmatpush.bf16.msra.mxu0 %v3021
    %3048 = vmatpush.bf16.msra.mxu0 %v3018
    %3049 = vmatpush.bf16.msra.mxu0 %v3015
    %3050 = vmatpush.bf16.msra.mxu0 %v3012
    %3051 = vmatpush.bf16.msra.mxu0 %v3009
    %3052 = vmatpush.bf16.msra.mxu0 %v3006
    %3053 = vmatmul.bf16.gmra.mxu0 %v3043
    %v3054 = vpop.f32.mrf.mxu0
    %v3055 = vadd.f32 %v2940, %v3054
    %v3056 = vpop.f32.mrf.mxu0
    %v3057 = vadd.f32 %v2940, %v3056
    %3058 = vdwg.mxu0
    %3059 = vmatpush.bf16.msra.mxu0 0
    %3060 = vmatpush.bf16.msra.mxu0 0
    %3061 = vmatpush.bf16.msra.mxu0 %v3022
    %3062 = vmatpush.bf16.msra.mxu0 %v3019
    %3063 = vmatpush.bf16.msra.mxu0 %v3016
    %3064 = vmatpush.bf16.msra.mxu0 %v3013
    %3065 = vmatpush.bf16.msra.mxu0 %v3010
    %3066 = vmatpush.bf16.msra.mxu0 %v3007
    %3067 = vmatmul.bf16.gmra.mxu0 %v3043
    %v3068 = vpop.f32.mrf.mxu0
    %v3069 = vadd.f32 %v2941, %v3068
    %v3070 = vpop.f32.mrf.mxu0
    %v3071 = vadd.f32 %v2941, %v3070
    %3072 = vdwg.mxu0
    %3073 = vmatpush.bf16.msra.mxu0 0
    %3074 = vmatpush.bf16.msra.mxu0 0
    %3075 = vmatpush.bf16.msra.mxu0 %v3023
    %3076 = vmatpush.bf16.msra.mxu0 %v3020
    %3077 = vmatpush.bf16.msra.mxu0 %v3017
    %3078 = vmatpush.bf16.msra.mxu0 %v3014
    %3079 = vmatpush.bf16.msra.mxu0 %v3011
    %3080 = vmatpush.bf16.msra.mxu0 %v3008
    %3081 = vmatmul.bf16.gmra.mxu0 %v3043
    %v3082 = vpop.f32.mrf.mxu0
    %v3083 = vadd.f32 %v2942, %v3082
    %v3084 = vpop.f32.mrf.mxu0
    %v3085 = vadd.f32 %v2942, %v3084
    %3086 = vdwg.mxu0
    %v3087 = vpack.c.bf16 %v3055, %v3055
    %v3088 = vpack.c.bf16 %v3057, %v3057
    %v3089 = vpack.c.bf16 %v3069, %v3055
    %v3090 = vpack.c.bf16 %v3071, %v3057
    %v3091 = vpack.c.bf16 %v3083, %v3069
    %v3092 = vpack.c.bf16 %v3085, %v3071
    %v3094 = vunpack.c.l.b16 %v3089
    %v3095 = vpack.c.b16 %v3094, %v3094
    %3096 = vrot.lane.b32.xlu0 %v3095, 32
    %v3097 = vpop.permute.xlu0 %3096
    %v3099 = vsel %vm2254, %v3087, 0
    %v3102 = vsel %vm2254, %v3097, 0
    %3104 = vmatpush.bf16.xpose.msra.mxu0 0
    %3105 = vmatpush.bf16.xpose.msra.mxu0 0
    %3106 = vmatpush.bf16.xpose.msra.mxu0 0
    %3107 = vmatpush.bf16.xpose.msra.mxu0 0
    %3108 = vmatpush.bf16.xpose.msra.mxu0 0
    %3109 = vmatpush.bf16.xpose.msra.mxu0 0
    %3110 = vmatpush.bf16.xpose.msra.mxu0 0
    %3111 = vmatpush.bf16.xpose.msra.mxu0 %v3102
    %3112 = vmatmul.bf16.gmra.mxu0 %v3099
    %v3113 = vpop.f32.mrf.mxu0
    %v3114 = vadd.f32 0.0, %v3113
    %v3115 = vpop.f32.mrf.mxu0
    %3116 = vdwg.mxu0
    %v3118 = vunpack.c.l.b16 %v3090
    %v3119 = vpack.c.b16 %v3118, %v3118
    %3120 = vrot.lane.b32.xlu0 %v3119, 32
    %v3121 = vpop.permute.xlu0 %3120
    %v3123 = vsel %vm2254, %v3088, 0
    %v3126 = vsel %vm2254, %v3121, 0
    %3128 = vmatpush.bf16.xpose.msra.mxu0 0
    %3129 = vmatpush.bf16.xpose.msra.mxu0 0
    %3130 = vmatpush.bf16.xpose.msra.mxu0 0
    %3131 = vmatpush.bf16.xpose.msra.mxu0 0
    %3132 = vmatpush.bf16.xpose.msra.mxu0 0
    %3133 = vmatpush.bf16.xpose.msra.mxu0 0
    %3134 = vmatpush.bf16.xpose.msra.mxu0 0
    %3135 = vmatpush.bf16.xpose.msra.mxu0 %v3126
    %3136 = vmatmul.bf16.gmra.mxu0 %v3123
    %v3137 = vpop.f32.mrf.mxu0
    %v3138 = vadd.f32 0.0, %v3137
    %v3139 = vpop.f32.mrf.mxu0
    %3140 = vdwg.mxu0
    %v3141 = vmul.f32 %v3114, 0.20412415
    %v3142 = vmul.f32 %v3138, 0.20412415
    %v3143 = vsel %vm454, %v3141, -inf
    %3144 = vmax.xlane.f32.xlu0 %v3143
    %v3145 = vpop.xlane.xlu0 %3144
    %v3146 = vsel %vm454, %v3142, -inf
    %3147 = vmax.xlane.f32.xlu0 %v3146
    %v3148 = vpop.xlane.xlu0 %3147
    %v3149 = vsub.f32 %v3141, %v3145
    %v3150 = vsub.f32 %v3142, %v3148
    %v3151 = vmul.f32 %v3149, 1.442695
    %v3152 = vpow.pop %v3151
    %v3153 = vmul.f32 %v3150, 1.442695
    %v3154 = vpow.pop %v3153
    %v3155 = vsel %vm454, %v3152, 0.0
    %3156 = vadd.xlane.f32.xlu0 %v3155
    %v3157 = vpop.xlane.xlu0 %3156
    %v3158 = vsel %vm454, %v3154, 0.0
    %3159 = vadd.xlane.f32.xlu0 %v3158
    %v3160 = vpop.xlane.xlu0 %3159
    %v3161 = vrcp.pop %v3157
    %v3162 = vmul.f32 %v3157, %v3161
    %v3163 = vsub.f32 1.0, %v3162
    %v3164 = vmul.f32 %v3161, %v3163
    %v3165 = vadd.f32 %v3161, %v3164
    %vm3166 = vweird.f32 %v3157
    %vm3167 = vweird.f32 %v3161
    %vm3168 = vmor %vm3166, %vm3167
    %v3169 = vsel %vm3168, %v3161, %v3165
    %v3170 = vand.u32 2147483647, %v3157
    %vm3171 = vcmp.eq.f32.partialorder %v3170, 8.507059e+37
    %v3172 = vand.u32 %v3157, 2147483648
    %v3173 = vor.u32 1.1754944e-38, %v3172
    %v3174 = vsel %vm3171, %v3173, %v3169
    %v3175 = vmul.f32 %v3152, %v3174
    %v3176 = vrcp.pop %v3160
    %v3177 = vmul.f32 %v3160, %v3176
    %v3178 = vsub.f32 1.0, %v3177
    %v3179 = vmul.f32 %v3176, %v3178
    %v3180 = vadd.f32 %v3176, %v3179
    %vm3181 = vweird.f32 %v3160
    %vm3182 = vweird.f32 %v3176
    %vm3183 = vmor %vm3181, %vm3182
    %v3184 = vsel %vm3183, %v3176, %v3180
    %v3185 = vand.u32 2147483647, %v3160
    %vm3186 = vcmp.eq.f32.partialorder %v3185, 8.507059e+37
    %v3187 = vand.u32 %v3160, 2147483648
    %v3188 = vor.u32 1.1754944e-38, %v3187
    %v3189 = vsel %vm3186, %v3188, %v3184
    %v3190 = vmul.f32 %v3154, %v3189
    %v3191 = vpack.c.bf16 %v3175, %v3175
    %v3192 = vpack.c.bf16 %v3190, %v3190
    %v3194 = vunpack.c.l.b16 %v3091
    %v3195 = vpack.c.b16 %v3194, %v3194
    %3196 = vrot.lane.b32.xlu0 %v3195, 64
    %v3197 = vpop.permute.xlu0 %3196
    %v3199 = vsel %vm454, %v3191, 0
    %v3202 = vsel %vm558, %v3197, 0
    %3204 = vmatpush.bf16.msra.mxu0 0
    %3205 = vmatpush.bf16.msra.mxu0 0
    %3206 = vmatpush.bf16.msra.mxu0 0
    %3207 = vmatpush.bf16.msra.mxu0 0
    %3208 = vmatpush.bf16.msra.mxu0 0
    %3209 = vmatpush.bf16.msra.mxu0 0
    %3210 = vmatpush.bf16.msra.mxu0 0
    %3211 = vmatpush.bf16.msra.mxu0 %v3202
    %3212 = vmatmul.bf16.gmra.mxu0 %v3199
    %v3213 = vpop.f32.mrf.mxu0
    %v3214 = vadd.f32 0.0, %v3213
    %v3215 = vpop.f32.mrf.mxu0
    %3216 = vdwg.mxu0
    %v3218 = vunpack.c.l.b16 %v3092
    %v3219 = vpack.c.b16 %v3218, %v3218
    %3220 = vrot.lane.b32.xlu0 %v3219, 64
    %v3221 = vpop.permute.xlu0 %3220
    %v3223 = vsel %vm454, %v3192, 0
    %v3226 = vsel %vm558, %v3221, 0
    %3228 = vmatpush.bf16.msra.mxu0 0
    %3229 = vmatpush.bf16.msra.mxu0 0
    %3230 = vmatpush.bf16.msra.mxu0 0
    %3231 = vmatpush.bf16.msra.mxu0 0
    %3232 = vmatpush.bf16.msra.mxu0 0
    %3233 = vmatpush.bf16.msra.mxu0 0
    %3234 = vmatpush.bf16.msra.mxu0 0
    %3235 = vmatpush.bf16.msra.mxu0 %v3226
    %3236 = vmatmul.bf16.gmra.mxu0 %v3223
    %v3237 = vpop.f32.mrf.mxu0
    %v3238 = vadd.f32 0.0, %v3237
    %v3239 = vpop.f32.mrf.mxu0
    %3240 = vdwg.mxu0
    %v3242 = vunpack.c.l.b16 %v3087
    %v3243 = vpack.c.b16 %v3242, %v3242
    %3244 = vrot.lane.b32.xlu0 %v3243, 104
    %v3245 = vpop.permute.xlu0 %3244
    %v3246 = vunpack.c.h.b16 %v3089
    %v3247 = vpack.c.b16 %v3246, %v3246
    %3248 = vrot.lane.b32.xlu0 %v3095, 8
    %v3249 = vpop.permute.xlu0 %3248
    %3250 = vrot.lane.b32.xlu0 %v3247, 8
    %v3251 = vpop.permute.xlu0 %3250
    %vm3252 = vcmask 64512
    %v3253 = vsel %vm3252, %v3249, %v3251
    %v3255 = vsel %vm2254, %v3245, 0
    %v3258 = vsel %vm2254, %v3253, 0
    %3260 = vmatpush.bf16.xpose.msra.mxu0 0
    %3261 = vmatpush.bf16.xpose.msra.mxu0 0
    %3262 = vmatpush.bf16.xpose.msra.mxu0 0
    %3263 = vmatpush.bf16.xpose.msra.mxu0 0
    %3264 = vmatpush.bf16.xpose.msra.mxu0 0
    %3265 = vmatpush.bf16.xpose.msra.mxu0 0
    %3266 = vmatpush.bf16.xpose.msra.mxu0 0
    %3267 = vmatpush.bf16.xpose.msra.mxu0 %v3258
    %3268 = vmatmul.bf16.gmra.mxu0 %v3255
    %v3269 = vpop.f32.mrf.mxu0
    %v3270 = vadd.f32 0.0, %v3269
    %v3271 = vpop.f32.mrf.mxu0
    %3272 = vdwg.mxu0
    %v3274 = vunpack.c.l.b16 %v3088
    %v3275 = vpack.c.b16 %v3274, %v3274
    %3276 = vrot.lane.b32.xlu0 %v3275, 104
    %v3277 = vpop.permute.xlu0 %3276
    %v3278 = vunpack.c.h.b16 %v3090
    %v3279 = vpack.c.b16 %v3278, %v3278
    %3280 = vrot.lane.b32.xlu0 %v3119, 8
    %v3281 = vpop.permute.xlu0 %3280
    %3282 = vrot.lane.b32.xlu0 %v3279, 8
    %v3283 = vpop.permute.xlu0 %3282
    %v3284 = vsel %vm3252, %v3281, %v3283
    %v3286 = vsel %vm2254, %v3277, 0
    %v3289 = vsel %vm2254, %v3284, 0
    %3291 = vmatpush.bf16.xpose.msra.mxu0 0
    %3292 = vmatpush.bf16.xpose.msra.mxu0 0
    %3293 = vmatpush.bf16.xpose.msra.mxu0 0
    %3294 = vmatpush.bf16.xpose.msra.mxu0 0
    %3295 = vmatpush.bf16.xpose.msra.mxu0 0
    %3296 = vmatpush.bf16.xpose.msra.mxu0 0
    %3297 = vmatpush.bf16.xpose.msra.mxu0 0
    %3298 = vmatpush.bf16.xpose.msra.mxu0 %v3289
    %3299 = vmatmul.bf16.gmra.mxu0 %v3286
    %v3300 = vpop.f32.mrf.mxu0
    %v3301 = vadd.f32 0.0, %v3300
    %v3302 = vpop.f32.mrf.mxu0
    %3303 = vdwg.mxu0
    %v3304 = vmul.f32 %v3270, 0.20412415
    %v3305 = vmul.f32 %v3301, 0.20412415
    %v3306 = vsel %vm454, %v3304, -inf
    %3307 = vmax.xlane.f32.xlu0 %v3306
    %v3308 = vpop.xlane.xlu0 %3307
    %v3309 = vsel %vm454, %v3305, -inf
    %3310 = vmax.xlane.f32.xlu0 %v3309
    %v3311 = vpop.xlane.xlu0 %3310
    %v3312 = vsub.f32 %v3304, %v3308
    %v3313 = vsub.f32 %v3305, %v3311
    %v3314 = vmul.f32 %v3312, 1.442695
    %v3315 = vpow.pop %v3314
    %v3316 = vmul.f32 %v3313, 1.442695
    %v3317 = vpow.pop %v3316
    %v3318 = vsel %vm454, %v3315, 0.0
    %3319 = vadd.xlane.f32.xlu0 %v3318
    %v3320 = vpop.xlane.xlu0 %3319
    %v3321 = vsel %vm454, %v3317, 0.0
    %3322 = vadd.xlane.f32.xlu0 %v3321
    %v3323 = vpop.xlane.xlu0 %3322
    %v3324 = vrcp.pop %v3320
    %v3325 = vmul.f32 %v3320, %v3324
    %v3326 = vsub.f32 1.0, %v3325
    %v3327 = vmul.f32 %v3324, %v3326
    %v3328 = vadd.f32 %v3324, %v3327
    %vm3329 = vweird.f32 %v3320
    %vm3330 = vweird.f32 %v3324
    %vm3331 = vmor %vm3329, %vm3330
    %v3332 = vsel %vm3331, %v3324, %v3328
    %v3333 = vand.u32 2147483647, %v3320
    %vm3334 = vcmp.eq.f32.partialorder %v3333, 8.507059e+37
    %v3335 = vand.u32 %v3320, 2147483648
    %v3336 = vor.u32 1.1754944e-38, %v3335
    %v3337 = vsel %vm3334, %v3336, %v3332
    %v3338 = vmul.f32 %v3315, %v3337
    %v3339 = vrcp.pop %v3323
    %v3340 = vmul.f32 %v3323, %v3339
    %v3341 = vsub.f32 1.0, %v3340
    %v3342 = vmul.f32 %v3339, %v3341
    %v3343 = vadd.f32 %v3339, %v3342
    %vm3344 = vweird.f32 %v3323
    %vm3345 = vweird.f32 %v3339
    %vm3346 = vmor %vm3344, %vm3345
    %v3347 = vsel %vm3346, %v3339, %v3343
    %v3348 = vand.u32 2147483647, %v3323
    %vm3349 = vcmp.eq.f32.partialorder %v3348, 8.507059e+37
    %v3350 = vand.u32 %v3323, 2147483648
    %v3351 = vor.u32 1.1754944e-38, %v3350
    %v3352 = vsel %vm3349, %v3351, %v3347
    %v3353 = vmul.f32 %v3317, %v3352
    %v3354 = vpack.c.bf16 %v3338, %v3338
    %v3355 = vpack.c.bf16 %v3353, %v3353
    %3356 = vrot.lane.b32.xlu0 %v3195, 40
    %v3357 = vpop.permute.xlu0 %3356
    %v3359 = vsel %vm454, %v3354, 0
    %v3362 = vsel %vm558, %v3357, 0
    %3364 = vmatpush.bf16.msra.mxu0 0
    %3365 = vmatpush.bf16.msra.mxu0 0
    %3366 = vmatpush.bf16.msra.mxu0 0
    %3367 = vmatpush.bf16.msra.mxu0 0
    %3368 = vmatpush.bf16.msra.mxu0 0
    %3369 = vmatpush.bf16.msra.mxu0 0
    %3370 = vmatpush.bf16.msra.mxu0 0
    %3371 = vmatpush.bf16.msra.mxu0 %v3362
    %3372 = vmatmul.bf16.gmra.mxu0 %v3359
    %v3373 = vpop.f32.mrf.mxu0
    %v3374 = vadd.f32 0.0, %v3373
    %v3375 = vpop.f32.mrf.mxu0
    %3376 = vdwg.mxu0
    %3377 = vrot.lane.b32.xlu0 %v3219, 40
    %v3378 = vpop.permute.xlu0 %3377
    %v3380 = vsel %vm454, %v3355, 0
    %v3383 = vsel %vm558, %v3378, 0
    %3385 = vmatpush.bf16.msra.mxu0 0
    %3386 = vmatpush.bf16.msra.mxu0 0
    %3387 = vmatpush.bf16.msra.mxu0 0
    %3388 = vmatpush.bf16.msra.mxu0 0
    %3389 = vmatpush.bf16.msra.mxu0 0
    %3390 = vmatpush.bf16.msra.mxu0 0
    %3391 = vmatpush.bf16.msra.mxu0 0
    %3392 = vmatpush.bf16.msra.mxu0 %v3383
    %3393 = vmatmul.bf16.gmra.mxu0 %v3380
    %v3394 = vpop.f32.mrf.mxu0
    %v3395 = vadd.f32 0.0, %v3394
    %v3396 = vpop.f32.mrf.mxu0
    %3397 = vdwg.mxu0
    %3398 = vrot.lane.b32.xlu0 %v3089, 112
    %v3399 = vpop.permute.xlu0 %3398
    %v3400 = vrot.slane %v3399, 4
    %3401 = vrot.lane.b32.xlu0 %v3243, 80
    %v3402 = vpop.permute.xlu0 %3401
    %v3404 = vsel %vm2254, %v3402, 0
    %v3407 = vsel %vm2254, %v3400, 0
    %3409 = vmatpush.bf16.xpose.msra.mxu0 0
    %3410 = vmatpush.bf16.xpose.msra.mxu0 0
    %3411 = vmatpush.bf16.xpose.msra.mxu0 0
    %3412 = vmatpush.bf16.xpose.msra.mxu0 0
    %3413 = vmatpush.bf16.xpose.msra.mxu0 0
    %3414 = vmatpush.bf16.xpose.msra.mxu0 0
    %3415 = vmatpush.bf16.xpose.msra.mxu0 0
    %3416 = vmatpush.bf16.xpose.msra.mxu0 %v3407
    %3417 = vmatmul.bf16.gmra.mxu0 %v3404
    %v3418 = vpop.f32.mrf.mxu0
    %v3419 = vadd.f32 0.0, %v3418
    %v3420 = vpop.f32.mrf.mxu0
    %3421 = vdwg.mxu0
    %3422 = vrot.lane.b32.xlu0 %v3090, 112
    %v3423 = vpop.permute.xlu0 %3422
    %v3424 = vrot.slane %v3423, 4
    %3425 = vrot.lane.b32.xlu0 %v3275, 80
    %v3426 = vpop.permute.xlu0 %3425
    %v3428 = vsel %vm2254, %v3426, 0
    %v3431 = vsel %vm2254, %v3424, 0
    %3433 = vmatpush.bf16.xpose.msra.mxu0 0
    %3434 = vmatpush.bf16.xpose.msra.mxu0 0
    %3435 = vmatpush.bf16.xpose.msra.mxu0 0
    %3436 = vmatpush.bf16.xpose.msra.mxu0 0
    %3437 = vmatpush.bf16.xpose.msra.mxu0 0
    %3438 = vmatpush.bf16.xpose.msra.mxu0 0
    %3439 = vmatpush.bf16.xpose.msra.mxu0 0
    %3440 = vmatpush.bf16.xpose.msra.mxu0 %v3431
    %3441 = vmatmul.bf16.gmra.mxu0 %v3428
    %v3442 = vpop.f32.mrf.mxu0
    %v3443 = vadd.f32 0.0, %v3442
    %v3444 = vpop.f32.mrf.mxu0
    %3445 = vdwg.mxu0
    %v3446 = vmul.f32 %v3419, 0.20412415
    %v3447 = vmul.f32 %v3443, 0.20412415
    %v3448 = vsel %vm454, %v3446, -inf
    %3449 = vmax.xlane.f32.xlu0 %v3448
    %v3450 = vpop.xlane.xlu0 %3449
    %v3451 = vsel %vm454, %v3447, -inf
    %3452 = vmax.xlane.f32.xlu0 %v3451
    %v3453 = vpop.xlane.xlu0 %3452
    %v3454 = vsub.f32 %v3446, %v3450
    %v3455 = vsub.f32 %v3447, %v3453
    %v3456 = vmul.f32 %v3454, 1.442695
    %v3457 = vpow.pop %v3456
    %v3458 = vmul.f32 %v3455, 1.442695
    %v3459 = vpow.pop %v3458
    %v3460 = vsel %vm454, %v3457, 0.0
    %3461 = vadd.xlane.f32.xlu0 %v3460
    %v3462 = vpop.xlane.xlu0 %3461
    %v3463 = vsel %vm454, %v3459, 0.0
    %3464 = vadd.xlane.f32.xlu0 %v3463
    %v3465 = vpop.xlane.xlu0 %3464
    %v3466 = vrcp.pop %v3462
    %v3467 = vmul.f32 %v3462, %v3466
    %v3468 = vsub.f32 1.0, %v3467
    %v3469 = vmul.f32 %v3466, %v3468
    %v3470 = vadd.f32 %v3466, %v3469
    %vm3471 = vweird.f32 %v3462
    %vm3472 = vweird.f32 %v3466
    %vm3473 = vmor %vm3471, %vm3472
    %v3474 = vsel %vm3473, %v3466, %v3470
    %v3475 = vand.u32 2147483647, %v3462
    %vm3476 = vcmp.eq.f32.partialorder %v3475, 8.507059e+37
    %v3477 = vand.u32 %v3462, 2147483648
    %v3478 = vor.u32 1.1754944e-38, %v3477
    %v3479 = vsel %vm3476, %v3478, %v3474
    %v3480 = vmul.f32 %v3457, %v3479
    %v3481 = vrcp.pop %v3465
    %v3482 = vmul.f32 %v3465, %v3481
    %v3483 = vsub.f32 1.0, %v3482
    %v3484 = vmul.f32 %v3481, %v3483
    %v3485 = vadd.f32 %v3481, %v3484
    %vm3486 = vweird.f32 %v3465
    %vm3487 = vweird.f32 %v3481
    %vm3488 = vmor %vm3486, %vm3487
    %v3489 = vsel %vm3488, %v3481, %v3485
    %v3490 = vand.u32 2147483647, %v3465
    %vm3491 = vcmp.eq.f32.partialorder %v3490, 8.507059e+37
    %v3492 = vand.u32 %v3465, 2147483648
    %v3493 = vor.u32 1.1754944e-38, %v3492
    %v3494 = vsel %vm3491, %v3493, %v3489
    %v3495 = vmul.f32 %v3459, %v3494
    %v3496 = vpack.c.bf16 %v3480, %v3480
    %v3497 = vpack.c.bf16 %v3495, %v3495
    %v3498 = vunpack.c.h.b16 %v3091
    %v3499 = vpack.c.b16 %v3498, %v3498
    %3500 = vrot.lane.b32.xlu0 %v3195, 16
    %v3501 = vpop.permute.xlu0 %3500
    %3502 = vrot.lane.b32.xlu0 %v3499, 16
    %v3503 = vpop.permute.xlu0 %3502
    %vm3504 = vcmask 130048
    %v3505 = vsel %vm3504, %v3501, %v3503
    %v3507 = vsel %vm454, %v3496, 0
    %v3510 = vsel %vm558, %v3505, 0
    %3512 = vmatpush.bf16.msra.mxu0 0
    %3513 = vmatpush.bf16.msra.mxu0 0
    %3514 = vmatpush.bf16.msra.mxu0 0
    %3515 = vmatpush.bf16.msra.mxu0 0
    %3516 = vmatpush.bf16.msra.mxu0 0
    %3517 = vmatpush.bf16.msra.mxu0 0
    %3518 = vmatpush.bf16.msra.mxu0 0
    %3519 = vmatpush.bf16.msra.mxu0 %v3510
    %3520 = vmatmul.bf16.gmra.mxu0 %v3507
    %v3521 = vpop.f32.mrf.mxu0
    %v3522 = vadd.f32 0.0, %v3521
    %v3523 = vpop.f32.mrf.mxu0
    %3524 = vdwg.mxu0
    %v3525 = vunpack.c.h.b16 %v3092
    %v3526 = vpack.c.b16 %v3525, %v3525
    %3527 = vrot.lane.b32.xlu0 %v3219, 16
    %v3528 = vpop.permute.xlu0 %3527
    %3529 = vrot.lane.b32.xlu0 %v3526, 16
    %v3530 = vpop.permute.xlu0 %3529
    %v3531 = vsel %vm3504, %v3528, %v3530
    %v3533 = vsel %vm454, %v3497, 0
    %v3536 = vsel %vm558, %v3531, 0
    %3538 = vmatpush.bf16.msra.mxu0 0
    %3539 = vmatpush.bf16.msra.mxu0 0
    %3540 = vmatpush.bf16.msra.mxu0 0
    %3541 = vmatpush.bf16.msra.mxu0 0
    %3542 = vmatpush.bf16.msra.mxu0 0
    %3543 = vmatpush.bf16.msra.mxu0 0
    %3544 = vmatpush.bf16.msra.mxu0 0
    %3545 = vmatpush.bf16.msra.mxu0 %v3536
    %3546 = vmatmul.bf16.gmra.mxu0 %v3533
    %v3547 = vpop.f32.mrf.mxu0
    %v3548 = vadd.f32 0.0, %v3547
    %v3549 = vpop.f32.mrf.mxu0
    %3550 = vdwg.mxu0
    %3551 = vrot.lane.b32.xlu0 %v3089, 88
    %v3552 = vpop.permute.xlu0 %3551
    %v3553 = vrot.slane %v3552, 4
    %3554 = vrot.lane.b32.xlu0 %v3243, 56
    %v3555 = vpop.permute.xlu0 %3554
    %v3557 = vsel %vm2254, %v3555, 0
    %v3560 = vsel %vm2254, %v3553, 0
    %3562 = vmatpush.bf16.xpose.msra.mxu0 0
    %3563 = vmatpush.bf16.xpose.msra.mxu0 0
    %3564 = vmatpush.bf16.xpose.msra.mxu0 0
    %3565 = vmatpush.bf16.xpose.msra.mxu0 0
    %3566 = vmatpush.bf16.xpose.msra.mxu0 0
    %3567 = vmatpush.bf16.xpose.msra.mxu0 0
    %3568 = vmatpush.bf16.xpose.msra.mxu0 0
    %3569 = vmatpush.bf16.xpose.msra.mxu0 %v3560
    %3570 = vmatmul.bf16.gmra.mxu0 %v3557
    %v3571 = vpop.f32.mrf.mxu0
    %v3572 = vadd.f32 0.0, %v3571
    %v3573 = vpop.f32.mrf.mxu0
    %3574 = vdwg.mxu0
    %3575 = vrot.lane.b32.xlu0 %v3090, 88
    %v3576 = vpop.permute.xlu0 %3575
    %v3577 = vrot.slane %v3576, 4
    %3578 = vrot.lane.b32.xlu0 %v3275, 56
    %v3579 = vpop.permute.xlu0 %3578
    %v3581 = vsel %vm2254, %v3579, 0
    %v3584 = vsel %vm2254, %v3577, 0
    %3586 = vmatpush.bf16.xpose.msra.mxu0 0
    %3587 = vmatpush.bf16.xpose.msra.mxu0 0
    %3588 = vmatpush.bf16.xpose.msra.mxu0 0
    %3589 = vmatpush.bf16.xpose.msra.mxu0 0
    %3590 = vmatpush.bf16.xpose.msra.mxu0 0
    %3591 = vmatpush.bf16.xpose.msra.mxu0 0
    %3592 = vmatpush.bf16.xpose.msra.mxu0 0
    %3593 = vmatpush.bf16.xpose.msra.mxu0 %v3584
    %3594 = vmatmul.bf16.gmra.mxu0 %v3581
    %v3595 = vpop.f32.mrf.mxu0
    %v3596 = vadd.f32 0.0, %v3595
    %v3597 = vpop.f32.mrf.mxu0
    %3598 = vdwg.mxu0
    %v3599 = vmul.f32 %v3572, 0.20412415
    %v3600 = vmul.f32 %v3596, 0.20412415
    %v3601 = vsel %vm454, %v3599, -inf
    %3602 = vmax.xlane.f32.xlu0 %v3601
    %v3603 = vpop.xlane.xlu0 %3602
    %v3604 = vsel %vm454, %v3600, -inf
    %3605 = vmax.xlane.f32.xlu0 %v3604
    %v3606 = vpop.xlane.xlu0 %3605
    %v3607 = vsub.f32 %v3599, %v3603
    %v3608 = vsub.f32 %v3600, %v3606
    %v3609 = vmul.f32 %v3607, 1.442695
    %v3610 = vpow.pop %v3609
    %v3611 = vmul.f32 %v3608, 1.442695
    %v3612 = vpow.pop %v3611
    %v3613 = vsel %vm454, %v3610, 0.0
    %3614 = vadd.xlane.f32.xlu0 %v3613
    %v3615 = vpop.xlane.xlu0 %3614
    %v3616 = vsel %vm454, %v3612, 0.0
    %3617 = vadd.xlane.f32.xlu0 %v3616
    %v3618 = vpop.xlane.xlu0 %3617
    %v3619 = vrcp.pop %v3615
    %v3620 = vmul.f32 %v3615, %v3619
    %v3621 = vsub.f32 1.0, %v3620
    %v3622 = vmul.f32 %v3619, %v3621
    %v3623 = vadd.f32 %v3619, %v3622
    %vm3624 = vweird.f32 %v3615
    %vm3625 = vweird.f32 %v3619
    %vm3626 = vmor %vm3624, %vm3625
    %v3627 = vsel %vm3626, %v3619, %v3623
    %v3628 = vand.u32 2147483647, %v3615
    %vm3629 = vcmp.eq.f32.partialorder %v3628, 8.507059e+37
    %v3630 = vand.u32 %v3615, 2147483648
    %v3631 = vor.u32 1.1754944e-38, %v3630
    %v3632 = vsel %vm3629, %v3631, %v3627
    %v3633 = vmul.f32 %v3610, %v3632
    %v3634 = vrcp.pop %v3618
    %v3635 = vmul.f32 %v3618, %v3634
    %v3636 = vsub.f32 1.0, %v3635
    %v3637 = vmul.f32 %v3634, %v3636
    %v3638 = vadd.f32 %v3634, %v3637
    %vm3639 = vweird.f32 %v3618
    %vm3640 = vweird.f32 %v3634
    %vm3641 = vmor %vm3639, %vm3640
    %v3642 = vsel %vm3641, %v3634, %v3638
    %v3643 = vand.u32 2147483647, %v3618
    %vm3644 = vcmp.eq.f32.partialorder %v3643, 8.507059e+37
    %v3645 = vand.u32 %v3618, 2147483648
    %v3646 = vor.u32 1.1754944e-38, %v3645
    %v3647 = vsel %vm3644, %v3646, %v3642
    %v3648 = vmul.f32 %v3612, %v3647
    %v3649 = vpack.c.bf16 %v3633, %v3633
    %v3650 = vpack.c.bf16 %v3648, %v3648
    %3651 = vrot.lane.b32.xlu0 %v3091, 120
    %v3652 = vpop.permute.xlu0 %3651
    %v3653 = vrot.slane %v3652, 4
    %v3655 = vsel %vm454, %v3649, 0
    %v3658 = vsel %vm558, %v3653, 0
    %3660 = vmatpush.bf16.msra.mxu0 0
    %3661 = vmatpush.bf16.msra.mxu0 0
    %3662 = vmatpush.bf16.msra.mxu0 0
    %3663 = vmatpush.bf16.msra.mxu0 0
    %3664 = vmatpush.bf16.msra.mxu0 0
    %3665 = vmatpush.bf16.msra.mxu0 0
    %3666 = vmatpush.bf16.msra.mxu0 0
    %3667 = vmatpush.bf16.msra.mxu0 %v3658
    %3668 = vmatmul.bf16.gmra.mxu0 %v3655
    %v3669 = vpop.f32.mrf.mxu0
    %v3670 = vadd.f32 0.0, %v3669
    %v3671 = vpop.f32.mrf.mxu0
    %3672 = vdwg.mxu0
    %3673 = vrot.lane.b32.xlu0 %v3092, 120
    %v3674 = vpop.permute.xlu0 %3673
    %v3675 = vrot.slane %v3674, 4
    %v3677 = vsel %vm454, %v3650, 0
    %v3680 = vsel %vm558, %v3675, 0
    %3682 = vmatpush.bf16.msra.mxu0 0
    %3683 = vmatpush.bf16.msra.mxu0 0
    %3684 = vmatpush.bf16.msra.mxu0 0
    %3685 = vmatpush.bf16.msra.mxu0 0
    %3686 = vmatpush.bf16.msra.mxu0 0
    %3687 = vmatpush.bf16.msra.mxu0 0
    %3688 = vmatpush.bf16.msra.mxu0 0
    %3689 = vmatpush.bf16.msra.mxu0 %v3680
    %3690 = vmatmul.bf16.gmra.mxu0 %v3677
    %v3691 = vpop.f32.mrf.mxu0
    %v3692 = vadd.f32 0.0, %v3691
    %v3693 = vpop.f32.mrf.mxu0
    %3694 = vdwg.mxu0
    %3697 = vrot.lane.b32.xlu0 %v3374, 24
    %v3698 = vpop.permute.xlu0 %3697
    %3699 = vrot.lane.b32.xlu0 %v3395, 24
    %v3700 = vpop.permute.xlu0 %3699
    %3705 = vrot.lane.b32.xlu0 %v3522, 48
    %v3706 = vpop.permute.xlu0 %3705
    %3707 = vrot.lane.b32.xlu0 %v3548, 48
    %v3708 = vpop.permute.xlu0 %3707
    %3713 = vrot.lane.b32.xlu0 %v3670, 72
    %v3714 = vpop.permute.xlu0 %3713
    %3715 = vrot.lane.b32.xlu0 %v3692, 72
    %v3716 = vpop.permute.xlu0 %3715
    %v3719 = vsel %vm2254, %v3214, %v3698
    %v3720 = vsel %vm2254, %v3238, %v3700
    %v3721 = vsel %vm2263, %v3719, %v3706
    %v3722 = vsel %vm2263, %v3720, %v3708
    %v3723 = vsel %vm2272, %v3721, %v3714
    %v3724 = vsel %vm2272, %v3722, %v3716
    %v3725 = vpack.c.bf16 %v3724, %v3723
    %v3738 = vunpack.c.l.b16 %v2832
    %v3739 = vunpack.c.l.b16 %v2833
    %v3740 = vunpack.c.l.b16 %v2834
    %v3741 = vunpack.c.l.b16 %v2835
    %v3742 = vunpack.c.l.b16 %v2836
    %v3743 = vunpack.c.l.b16 %v2837
    %v3744 = vunpack.c.l.b16 %v2838
    %v3745 = vunpack.c.l.b16 %v2839
    %v3746 = vunpack.c.l.b16 %v2840
    %v3747 = vunpack.c.l.b16 %v2841
    %v3748 = vunpack.c.l.b16 %v2842
    %v3749 = vunpack.c.l.b16 %v2843
    %v3750 = vpack.c.b16 %v3739, %v3738
    %v3751 = vpack.c.b16 %v3741, %v3740
    %v3752 = vpack.c.b16 %v3743, %v3742
    %v3753 = vpack.c.b16 %v3745, %v3744
    %v3754 = vpack.c.b16 %v3747, %v3746
    %v3755 = vpack.c.b16 %v3749, %v3748
    %v3763 = vsel %vm115, %v3725, 0
    %3765 = vmatpush.bf16.msra.mxu0 0
    %3766 = vmatpush.bf16.msra.mxu0 0
    %3767 = vmatpush.bf16.msra.mxu0 %v3755
    %3768 = vmatpush.bf16.msra.mxu0 %v3754
    %3769 = vmatpush.bf16.msra.mxu0 %v3753
    %3770 = vmatpush.bf16.msra.mxu0 %v3752
    %3771 = vmatpush.bf16.msra.mxu0 %v3751
    %3772 = vmatpush.bf16.msra.mxu0 %v3750
    %3773 = vmatmul.bf16.gmra.mxu0 %v3763
    %v3774 = vpop.f32.mrf.mxu0
    %v3775 = vadd.f32 0.0, %v3774
    %v3776 = vpop.f32.mrf.mxu0
    %v3777 = vadd.f32 0.0, %v3776
    %3778 = vdwg.mxu0
    %v3779 = vadd.f32 %v2806, %v3775
    %v3780 = vadd.f32 %v2807, %v3777
    %v3781 = vadd.f32 %v3779, %v2884
    %v3782 = vadd.f32 %v3780, %v2884
    %v3783 = vsel %vm115, %v3781, 0.0
    %3784 = vadd.xlane.f32.xlu0 %v3783
    %v3785 = vpop.xlane.xlu0 %3784
    %v3786 = vsel %vm115, %v3782, 0.0
    %3787 = vadd.xlane.f32.xlu0 %v3786
    %v3788 = vpop.xlane.xlu0 %3787
    %v3789 = vmul.f32 %v3785, %v2763
    %v3790 = vmul.f32 %v3788, %v2763
    %v3791 = vsub.f32 %v3781, %v3789
    %v3792 = vsub.f32 %v3782, %v3790
    %v3793 = vmul.f32 %v3791, %v3791
    %v3794 = vmul.f32 %v3792, %v3792
    %v3795 = vsel %vm115, %v3793, 0.0
    %3796 = vadd.xlane.f32.xlu0 %v3795
    %v3797 = vpop.xlane.xlu0 %3796
    %v3798 = vsel %vm115, %v3794, 0.0
    %3799 = vadd.xlane.f32.xlu0 %v3798
    %v3800 = vpop.xlane.xlu0 %3799
    %v3801 = vmul.f32 %v3797, %v2763
    %v3802 = vmul.f32 %v3800, %v2763
    %v3803 = vadd.f32 %v3801, 1e-05
    %v3804 = vadd.f32 %v3802, 1e-05
    %v3805 = vrsqrt.pop %v3803
    %v3806 = vmul.f32 %v3805, %v3803
    %v3807 = vmul.f32 %v3806, %v3805
    %v3808 = vmul.f32 0.5, %v3807
    %v3809 = vsub.f32 1.5, %v3808
    %v3810 = vmul.f32 %v3805, %v3809
    %vm3811 = vweird.f32 %v3803
    %vm3812 = vweird.f32 %v3805
    %vm3813 = vmor %vm3811, %vm3812
    %v3814 = vsel %vm3813, %v3805, %v3810
    %v3815 = vrsqrt.pop %v3804
    %v3816 = vmul.f32 %v3815, %v3804
    %v3817 = vmul.f32 %v3816, %v3815
    %v3818 = vmul.f32 0.5, %v3817
    %v3819 = vsub.f32 1.5, %v3818
    %v3820 = vmul.f32 %v3815, %v3819
    %vm3821 = vweird.f32 %v3804
    %vm3822 = vweird.f32 %v3815
    %vm3823 = vmor %vm3821, %vm3822
    %v3824 = vsel %vm3823, %v3815, %v3820
    %v3825 = vmul.f32 %v3791, %v3814
    %v3826 = vmul.f32 %v3792, %v3824
    %v3827 = vmul.f32 %v3825, %v2885
    %v3828 = vmul.f32 %v3826, %v2885
    %v3829 = vadd.f32 %v3827, %v2886
    %v3830 = vadd.f32 %v3828, %v2886
    %v3831 = vpack.c.bf16 %v3830, %v3829
    %v3833 = vperm.slane %v2888, 0
    %v3834 = vperm.slane %v2888, 1
    %v3849 = vunpack.c.l.b16 %v2844
    %v3850 = vunpack.c.h.b16 %v2844
    %v3851 = vunpack.c.l.b16 %v2845
    %v3852 = vunpack.c.h.b16 %v2845
    %v3853 = vunpack.c.l.b16 %v2846
    %v3854 = vunpack.c.h.b16 %v2846
    %v3855 = vunpack.c.l.b16 %v2847
    %v3856 = vunpack.c.h.b16 %v2847
    %v3857 = vunpack.c.l.b16 %v2848
    %v3858 = vunpack.c.h.b16 %v2848
    %v3859 = vunpack.c.l.b16 %v2849
    %v3860 = vunpack.c.h.b16 %v2849
    %v3861 = vunpack.c.l.b16 %v2850
    %v3862 = vunpack.c.h.b16 %v2850
    %v3863 = vunpack.c.l.b16 %v2851
    %v3864 = vunpack.c.h.b16 %v2851
    %v3865 = vunpack.c.l.b16 %v2852
    %v3866 = vunpack.c.h.b16 %v2852
    %v3867 = vunpack.c.l.b16 %v2853
    %v3868 = vunpack.c.h.b16 %v2853
    %v3869 = vunpack.c.l.b16 %v2854
    %v3870 = vunpack.c.h.b16 %v2854
    %v3871 = vunpack.c.l.b16 %v2855
    %v3872 = vunpack.c.h.b16 %v2855
    %v3873 = vpack.c.b16 %v3851, %v3849
    %v3874 = vpack.c.b16 %v3852, %v3850
    %v3875 = vpack.c.b16 %v3855, %v3853
    %v3876 = vpack.c.b16 %v3856, %v3854
    %v3877 = vpack.c.b16 %v3859, %v3857
    %v3878 = vpack.c.b16 %v3860, %v3858
    %v3879 = vpack.c.b16 %v3863, %v3861
    %v3880 = vpack.c.b16 %v3864, %v3862
    %v3881 = vpack.c.b16 %v3867, %v3865
    %v3882 = vpack.c.b16 %v3868, %v3866
    %v3883 = vpack.c.b16 %v3871, %v3869
    %v3884 = vpack.c.b16 %v3872, %v3870
    %v3898 = vsel %vm115, %v3831, 0
    %3900 = vmatpush.bf16.msra.mxu0 0
    %3901 = vmatpush.bf16.msra.mxu0 0
    %3902 = vmatpush.bf16.msra.mxu0 %v3883
    %3903 = vmatpush.bf16.msra.mxu0 %v3881
    %3904 = vmatpush.bf16.msra.mxu0 %v3879
    %3905 = vmatpush.bf16.msra.mxu0 %v3877
    %3906 = vmatpush.bf16.msra.mxu0 %v3875
    %3907 = vmatpush.bf16.msra.mxu0 %v3873
    %3908 = vmatmul.bf16.gmra.mxu0 %v3898
    %v3909 = vpop.f32.mrf.mxu0
    %v3910 = vadd.f32 %v3833, %v3909
    %v3911 = vpop.f32.mrf.mxu0
    %v3912 = vadd.f32 %v3833, %v3911
    %3913 = vdwg.mxu0
    %3914 = vmatpush.bf16.msra.mxu0 0
    %3915 = vmatpush.bf16.msra.mxu0 0
    %3916 = vmatpush.bf16.msra.mxu0 %v3884
    %3917 = vmatpush.bf16.msra.mxu0 %v3882
    %3918 = vmatpush.bf16.msra.mxu0 %v3880
    %3919 = vmatpush.bf16.msra.mxu0 %v3878
    %3920 = vmatpush.bf16.msra.mxu0 %v3876
    %3921 = vmatpush.bf16.msra.mxu0 %v3874
    %3922 = vmatmul.bf16.gmra.mxu0 %v3898
    %v3923 = vpop.f32.mrf.mxu0
    %v3924 = vadd.f32 %v3834, %v3923
    %v3925 = vpop.f32.mrf.mxu0
    %v3926 = vadd.f32 %v3834, %v3925
    %3927 = vdwg.mxu0
    %v3928 = vmul.f32 %v3910, %v3910
    %v3929 = vmul.f32 %v3924, %v3924
    %v3930 = vmul.f32 %v3912, %v3912
    %v3931 = vmul.f32 %v3926, %v3926
    %v3932 = vmul.f32 %v3910, %v3928
    %v3933 = vmul.f32 %v3924, %v3929
    %v3934 = vmul.f32 %v3912, %v3930
    %v3935 = vmul.f32 %v3926, %v3931
    %v3936 = vmul.f32 %v3932, 0.044715
    %v3937 = vmul.f32 %v3933, 0.044715
    %v3938 = vmul.f32 %v3934, 0.044715
    %v3939 = vmul.f32 %v3935, 0.044715
    %v3940 = vadd.f32 %v3910, %v3936
    %v3941 = vadd.f32 %v3924, %v3937
    %v3942 = vadd.f32 %v3912, %v3938
    %v3943 = vadd.f32 %v3926, %v3939
    %v3944 = vmul.f32 %v3940, 0.7978846
    %v3945 = vmul.f32 %v3941, 0.7978846
    %v3946 = vmul.f32 %v3942, 0.7978846
    %v3947 = vmul.f32 %v3943, 0.7978846
    %v3948 = vtanh.pop %v3944
    %v3949 = vtanh.pop %v3945
    %v3950 = vtanh.pop %v3946
    %v3951 = vtanh.pop %v3947
    %v3952 = vadd.f32 %v3948, 1.0
    %v3953 = vadd.f32 %v3949, 1.0
    %v3954 = vadd.f32 %v3950, 1.0
    %v3955 = vadd.f32 %v3951, 1.0
    %v3956 = vmul.f32 %v3952, 0.5
    %v3957 = vmul.f32 %v3953, 0.5
    %v3958 = vmul.f32 %v3954, 0.5
    %v3959 = vmul.f32 %v3955, 0.5
    %v3960 = vmul.f32 %v3910, %v3956
    %v3961 = vmul.f32 %v3924, %v3957
    %v3962 = vmul.f32 %v3912, %v3958
    %v3963 = vmul.f32 %v3926, %v3959
    %v3964 = vpack.c.bf16 %v3962, %v3960
    %v3965 = vpack.c.bf16 %v3963, %v3961
    %v3990 = vunpack.c.l.b16 %v2856
    %v3991 = vunpack.c.l.b16 %v2857
    %v3992 = vunpack.c.l.b16 %v2858
    %v3993 = vunpack.c.l.b16 %v2859
    %v3994 = vunpack.c.l.b16 %v2860
    %v3995 = vunpack.c.l.b16 %v2861
    %v3996 = vunpack.c.l.b16 %v2862
    %v3997 = vunpack.c.l.b16 %v2863
    %v3998 = vunpack.c.l.b16 %v2864
    %v3999 = vunpack.c.l.b16 %v2865
    %v4000 = vunpack.c.l.b16 %v2866
    %v4001 = vunpack.c.l.b16 %v2867
    %v4002 = vunpack.c.l.b16 %v2868
    %v4003 = vunpack.c.l.b16 %v2869
    %v4004 = vunpack.c.l.b16 %v2870
    %v4005 = vunpack.c.l.b16 %v2871
    %v4006 = vunpack.c.l.b16 %v2872
    %v4007 = vunpack.c.l.b16 %v2873
    %v4008 = vunpack.c.l.b16 %v2874
    %v4009 = vunpack.c.l.b16 %v2875
    %v4010 = vunpack.c.l.b16 %v2876
    %v4011 = vunpack.c.l.b16 %v2877
    %v4012 = vunpack.c.l.b16 %v2878
    %v4013 = vunpack.c.l.b16 %v2879
    %v4014 = vpack.c.b16 %v3991, %v3990
    %v4015 = vpack.c.b16 %v3993, %v3992
    %v4016 = vpack.c.b16 %v3995, %v3994
    %v4017 = vpack.c.b16 %v3997, %v3996
    %v4018 = vpack.c.b16 %v3999, %v3998
    %v4019 = vpack.c.b16 %v4001, %v4000
    %v4020 = vpack.c.b16 %v4003, %v4002
    %v4021 = vpack.c.b16 %v4005, %v4004
    %v4022 = vpack.c.b16 %v4007, %v4006
    %v4023 = vpack.c.b16 %v4009, %v4008
    %v4024 = vpack.c.b16 %v4011, %v4010
    %v4025 = vpack.c.b16 %v4013, %v4012
    %v4039 = vsel %vm2269, %v3965, 0
    %4041 = vmatpush.bf16.msra.mxu0 %v4021
    %4042 = vmatpush.bf16.msra.mxu0 %v4020
    %4043 = vmatpush.bf16.msra.mxu0 %v4019
    %4044 = vmatpush.bf16.msra.mxu0 %v4018
    %4045 = vmatpush.bf16.msra.mxu0 %v4017
    %4046 = vmatpush.bf16.msra.mxu0 %v4016
    %4047 = vmatpush.bf16.msra.mxu0 %v4015
    %4048 = vmatpush.bf16.msra.mxu0 %v4014
    %4049 = vmatmul.bf16.gmra.mxu0 %v3964
    %v4050 = vpop.f32.mrf.mxu0
    %v4051 = vadd.f32 0.0, %v4050
    %v4052 = vpop.f32.mrf.mxu0
    %v4053 = vadd.f32 0.0, %v4052
    %4054 = vdwg.mxu0
    %4055 = vmatpush.bf16.msra.mxu0 0
    %4056 = vmatpush.bf16.msra.mxu0 0
    %4057 = vmatpush.bf16.msra.mxu0 0
    %4058 = vmatpush.bf16.msra.mxu0 0
    %4059 = vmatpush.bf16.msra.mxu0 %v4025
    %4060 = vmatpush.bf16.msra.mxu0 %v4024
    %4061 = vmatpush.bf16.msra.mxu0 %v4023
    %4062 = vmatpush.bf16.msra.mxu0 %v4022
    %4063 = vmatmul.bf16.gmra.mxu0 %v4039
    %v4064 = vpop.f32.mrf.mxu0
    %v4065 = vadd.f32 %v4051, %v4064
    %v4066 = vpop.f32.mrf.mxu0
    %v4067 = vadd.f32 %v4053, %v4066
    %4068 = vdwg.mxu0
    %v4069 = vadd.f32 %v3781, %v4065
    %v4070 = vadd.f32 %v3782, %v4067
    %v4071 = vadd.f32 %v4069, %v2889
    %v4072 = vadd.f32 %v4070, %v2889
    %v4073 = vadd.f32 %v4071, %v2804
    %v4074 = vadd.f32 %v4072, %v2805
    %v4075 = vsel %vm115, %v4073, 0.0
    %4076 = vadd.xlane.f32.xlu0 %v4075
    %v4077 = vpop.xlane.xlu0 %4076
    %v4078 = vsel %vm115, %v4074, 0.0
    %4079 = vadd.xlane.f32.xlu0 %v4078
    %v4080 = vpop.xlane.xlu0 %4079
    %v4081 = vmul.f32 %v4077, %v2763
    %v4082 = vmul.f32 %v4080, %v2763
    %v4083 = vsub.f32 %v4073, %v4081
    %v4084 = vsub.f32 %v4074, %v4082
    %v4085 = vmul.f32 %v4083, %v4083
    %v4086 = vmul.f32 %v4084, %v4084
    %v4087 = vsel %vm115, %v4085, 0.0
    %4088 = vadd.xlane.f32.xlu0 %v4087
    %v4089 = vpop.xlane.xlu0 %4088
    %v4090 = vsel %vm115, %v4086, 0.0
    %4091 = vadd.xlane.f32.xlu0 %v4090
    %v4092 = vpop.xlane.xlu0 %4091
    %v4093 = vmul.f32 %v4089, %v2763
    %v4094 = vmul.f32 %v4092, %v2763
    %v4095 = vadd.f32 %v4093, 1e-05
    %v4096 = vadd.f32 %v4094, 1e-05
    %v4097 = vrsqrt.pop %v4095
    %v4098 = vmul.f32 %v4097, %v4095
    %v4099 = vmul.f32 %v4098, %v4097
    %v4100 = vmul.f32 0.5, %v4099
    %v4101 = vsub.f32 1.5, %v4100
    %v4102 = vmul.f32 %v4097, %v4101
    %vm4103 = vweird.f32 %v4095
    %vm4104 = vweird.f32 %v4097
    %vm4105 = vmor %vm4103, %vm4104
    %v4106 = vsel %vm4105, %v4097, %v4102
    %v4107 = vrsqrt.pop %v4096
    %v4108 = vmul.f32 %v4107, %v4096
    %v4109 = vmul.f32 %v4108, %v4107
    %v4110 = vmul.f32 0.5, %v4109
    %v4111 = vsub.f32 1.5, %v4110
    %v4112 = vmul.f32 %v4107, %v4111
    %vm4113 = vweird.f32 %v4096
    %vm4114 = vweird.f32 %v4107
    %vm4115 = vmor %vm4113, %vm4114
    %v4116 = vsel %vm4115, %v4107, %v4112
    %v4117 = vmul.f32 %v4083, %v4106
    %v4118 = vmul.f32 %v4084, %v4116
    %v4119 = vmul.f32 %v4117, %v20
    %v4120 = vmul.f32 %v4118, %v20
    %v4121 = vadd.f32 %v4119, %v21
    %v4122 = vadd.f32 %v4120, %v21
    %v4123 = vld [vmem:[%s1 + $0x5a0] sm:$0xff]
    %v4124 = vld [vmem:[%s1 + $0x5ac] sm:$0xff]
    %v4125 = vld [vmem:[%s1 + $0x5b8] sm:$0xff]
    %v4126 = vld [vmem:[%s1 + $0x5c4] sm:$0xff]
    %v4127 = vld [vmem:[%s1 + $0x5d0] sm:$0xff]
    %v4128 = vld [vmem:[%s1 + $0x5dc] sm:$0xff]
    %v4129 = vld [vmem:[%s1 + $0x5e8] sm:$0xff]
    %v4130 = vld [vmem:[%s1 + $0x5f4] sm:$0xff]
    %v4131 = vld [vmem:[%s1 + $0x600] sm:$0xff]
    %v4132 = vld [vmem:[%s1 + $0x60c] sm:$0xff]
    %v4133 = vld [vmem:[%s1 + $0x618] sm:$0xff]
    %v4134 = vld [vmem:[%s1 + $0x624] sm:$0xff]
    %v4135 = vld [vmem:[%s1 + $0x630] sm:$0xf]
    %v4136 = vld [vmem:[%s1 + $0x63c] sm:$0xf]
    %v4137 = vld [vmem:[%s1 + $0x648] sm:$0xf]
    %v4138 = vld [vmem:[%s1 + $0x654] sm:$0xf]
    %v4139 = vld [vmem:[%s2 + $0x62] ss:$0 sm:$0xff]
    %v4140 = vld [vmem:[%s2 + $0x63] ss:$0 sm:$0xff]
    %v4141 = vpack.c.bf16 %v4122, %v4121
    %v4154 = vunpack.c.l.b16 %v4123
    %v4155 = vunpack.c.h.b16 %v4123
    %v4156 = vunpack.c.l.b16 %v4124
    %v4157 = vunpack.c.h.b16 %v4124
    %v4158 = vunpack.c.l.b16 %v4125
    %v4159 = vunpack.c.h.b16 %v4125
    %v4160 = vunpack.c.l.b16 %v4126
    %v4161 = vunpack.c.h.b16 %v4126
    %v4162 = vunpack.c.l.b16 %v4127
    %v4163 = vunpack.c.h.b16 %v4127
    %v4164 = vunpack.c.l.b16 %v4128
    %v4165 = vunpack.c.h.b16 %v4128
    %v4166 = vunpack.c.l.b16 %v4129
    %v4167 = vunpack.c.h.b16 %v4129
    %v4168 = vunpack.c.l.b16 %v4130
    %v4169 = vunpack.c.h.b16 %v4130
    %v4170 = vunpack.c.l.b16 %v4131
    %v4171 = vunpack.c.h.b16 %v4131
    %v4172 = vunpack.c.l.b16 %v4132
    %v4173 = vunpack.c.h.b16 %v4132
    %v4174 = vunpack.c.l.b16 %v4133
    %v4175 = vunpack.c.h.b16 %v4133
    %v4176 = vunpack.c.l.b16 %v4134
    %v4177 = vunpack.c.h.b16 %v4134
    %v4178 = vpack.c.b16 %v4156, %v4154
    %v4179 = vpack.c.b16 %v4157, %v4155
    %v4180 = vpack.c.b16 %v4160, %v4158
    %v4181 = vpack.c.b16 %v4161, %v4159
    %v4182 = vpack.c.b16 %v4164, %v4162
    %v4183 = vpack.c.b16 %v4165, %v4163
    %v4184 = vpack.c.b16 %v4168, %v4166
    %v4185 = vpack.c.b16 %v4169, %v4167
    %v4186 = vpack.c.b16 %v4172, %v4170
    %v4187 = vpack.c.b16 %v4173, %v4171
    %v4188 = vpack.c.b16 %v4176, %v4174
    %v4189 = vpack.c.b16 %v4177, %v4175
    %v4203 = vsel %vm115, %v4141, 0
    %4205 = vmatpush.bf16.msra.mxu0 0
    %4206 = vmatpush.bf16.msra.mxu0 0
    %4207 = vmatpush.bf16.msra.mxu0 %v4188
    %4208 = vmatpush.bf16.msra.mxu0 %v4186
    %4209 = vmatpush.bf16.msra.mxu0 %v4184
    %4210 = vmatpush.bf16.msra.mxu0 %v4182
    %4211 = vmatpush.bf16.msra.mxu0 %v4180
    %4212 = vmatpush.bf16.msra.mxu0 %v4178
    %4213 = vmatmul.bf16.gmra.mxu0 %v4203
    %v4214 = vpop.f32.mrf.mxu0
    %v4215 = vadd.f32 0.0, %v4214
    %v4216 = vpop.f32.mrf.mxu0
    %v4217 = vadd.f32 0.0, %v4216
    %4218 = vdwg.mxu0
    %4219 = vmatpush.bf16.msra.mxu0 0
    %4220 = vmatpush.bf16.msra.mxu0 0
    %4221 = vmatpush.bf16.msra.mxu0 %v4189
    %4222 = vmatpush.bf16.msra.mxu0 %v4187
    %4223 = vmatpush.bf16.msra.mxu0 %v4185
    %4224 = vmatpush.bf16.msra.mxu0 %v4183
    %4225 = vmatpush.bf16.msra.mxu0 %v4181
    %4226 = vmatpush.bf16.msra.mxu0 %v4179
    %4227 = vmatmul.bf16.gmra.mxu0 %v4203
    %v4228 = vpop.f32.mrf.mxu0
    %v4229 = vadd.f32 0.0, %v4228
    %v4230 = vpop.f32.mrf.mxu0
    %v4231 = vadd.f32 0.0, %v4230
    %4232 = vdwg.mxu0
    %v4235 = vrot.slane %v4217, 7
    %vm4236 = vcmask 1041409
    %v4237 = vsel %vm4236, %v4235, %v4215
    %v4239 = vadd.f32 %v4139, %v4237
    %v4240 = vrot.slane %v4215, 1
    %v4241 = vsel %vm4236, %v4217, %v4240
    %4242 = vrot.lane.b32.xlu0 %v4241, 96
    %v4243 = vpop.permute.xlu0 %4242
    %v4245 = vadd.f32 %v4239, %v4243
    %v4246 = vrot.slane %v4215, 2
    %v4247 = vrot.slane %v4217, 1
    %v4248 = vsel %vm4236, %v4247, %v4246
    %4249 = vrot.lane.b32.xlu0 %v4248, 64
    %v4250 = vpop.permute.xlu0 %4249
    %v4252 = vadd.f32 %v4245, %v4250
    %v4253 = vrot.slane %v4215, 3
    %v4254 = vrot.slane %v4217, 2
    %v4255 = vsel %vm4236, %v4254, %v4253
    %4256 = vrot.lane.b32.xlu0 %v4255, 32
    %v4257 = vpop.permute.xlu0 %4256
    %v4259 = vadd.f32 %v4252, %v4257
    %v4262 = vrot.slane %v4229, 4
    %v4263 = vrot.slane %v4231, 3
    %v4264 = vsel %vm4236, %v4263, %v4262
    %v4266 = vadd.f32 %v4259, %v4264
    %v4267 = vrot.slane %v4229, 5
    %v4268 = vrot.slane %v4231, 4
    %v4269 = vsel %vm4236, %v4268, %v4267
    %4270 = vrot.lane.b32.xlu0 %v4269, 96
    %v4271 = vpop.permute.xlu0 %4270
    %v4273 = vadd.f32 %v4266, %v4271
    %v4274 = vrot.slane %v4229, 6
    %v4275 = vrot.slane %v4231, 5
    %v4276 = vsel %vm4236, %v4275, %v4274
    %4277 = vrot.lane.b32.xlu0 %v4276, 64
    %v4278 = vpop.permute.xlu0 %4277
    %v4280 = vadd.f32 %v4273, %v4278
    %v4281 = vrot.slane %v4229, 7
    %v4282 = vrot.slane %v4231, 6
    %v4283 = vsel %vm4236, %v4282, %v4281
    %4284 = vrot.lane.b32.xlu0 %v4283, 32
    %v4285 = vpop.permute.xlu0 %4284
    %v4287 = vadd.f32 %v4280, %v4285
    %v4288 = vmax.f32 %v4287, 0.0
    %v4289 = vpack.c.bf16 %v4288, %v4288
    %v4294 = vunpack.c.l.b16 %v4135
    %v4295 = vunpack.c.l.b16 %v4136
    %v4296 = vunpack.c.l.b16 %v4137
    %v4297 = vunpack.c.l.b16 %v4138
    %v4298 = vpack.c.b16 %v4295, %v4294
    %v4299 = vpack.c.b16 %v4297, %v4296
    %v4303 = vsel %vm2257, %v4289, 0
    %4305 = vmatpush.bf16.msra.mxu0 0
    %4306 = vmatpush.bf16.msra.mxu0 0
    %4307 = vmatpush.bf16.msra.mxu0 0
    %4308 = vmatpush.bf16.msra.mxu0 0
    %4309 = vmatpush.bf16.msra.mxu0 0
    %4310 = vmatpush.bf16.msra.mxu0 0
    %4311 = vmatpush.bf16.msra.mxu0 %v4299
    %4312 = vmatpush.bf16.msra.mxu0 %v4298
    %4313 = vmatmul.bf16.gmra.mxu0 %v4303
    %v4314 = vpop.f32.mrf.mxu0
    %v4315 = vadd.f32 %v4140, %v4314
    %v4316 = vpop.f32.mrf.mxu0
    %4317 = vdwg.mxu0
    %vm4318 = vcmask 25600
    %4319 = vst.msk [vmem:[#allocation2] sm:$0x3] %vm4318, %v4315
    // Predicated region
    $region14: #{transformer_forward.1} parent=1 // pred_check
      _
    $region15: #{transformer_forward.1} parent=1 // pred_check_branch
      %4321 = sbr.rel (0) target = $region17
    $region16: #{transformer_forward.1} parent=1 // pred_region
      %4323 = vsyncadd [#allocation3], 0
      %s4325 = sshll.u32 [#allocation2], 4
      %s4326 = int_to_ptr.vmem [resolvable:$true] %s4325
      %s4327 = sshll.u32 %s3, 4
      %s4328 = int_to_ptr.hbm [resolvable:$true] %s4327
      %4330 = dma.vmem_to_hbm [thread:$0]  %s4326, 32, %s4328, [#allocation3]
    $region17: #{transformer_forward.1} parent=1 // pred_fallthru
      _
    // Predicated region
    $region18: #{transformer_forward.1} parent=1 // pred_check
      _
    $region19: #{transformer_forward.1} parent=1 // pred_check_branch
      %4332 = sbr.rel (0) target = $region21
    $region20: #{transformer_forward.1} parent=1 // pred_region
      %4334 = dma.done [#allocation3], 32
    $region21: #{transformer_forward.1} parent=1 // pred_fallthru
      _
    %4335 = vsyncpa [#allocation3], 1

</llo_original>
